<compile_context>
chip_gen: v7x
topology: tpu7x:2x2x1
jax: 0.10.0
libtpu: 0.0.40
codegen_flags: <defaults>
</compile_context>

<pallas_src>
import math
import functools

import jax
import jax.numpy as jnp
from jax.experimental import pallas as pl
from jax.experimental.pallas import tpu as pltpu


MASK_VALUE = -1e10          # causal mask constant, applied in f32
_VMEM_LIMIT_BYTES = 64 * 1024 * 1024


def _gelu(x):
    # GPT-2 tanh-approximation GELU (numerically ~identical to nn.GELU()).
    c = math.sqrt(2.0 / math.pi)
    return 0.5 * x * (1.0 + jnp.tanh(c * (x + 0.044715 * x * x * x)))


def _layernorm(x, gamma, beta, eps=1e-5):
    mu = jnp.mean(x, axis=-1, keepdims=True)
    xc = x - mu
    var = jnp.mean(xc * xc, axis=-1, keepdims=True)
    return xc * jax.lax.rsqrt(var + eps) * gamma + beta


def _choose_tile(n, target=256):
    # Largest divisor of n among {target, 256, 128, ..., 8}; else n (full dim).
    # TODO(synk): make this a per-TPU-generation constant (v5e is fine with 128).
    for t in (target, 256, 128, 64, 32, 16, 8):
        if t <= n and n % t == 0:
            return t
    return n


# ---------------------------------------------------------------------------
# Kernel 1: x1 = x + attn(ln_1(x))
# ---------------------------------------------------------------------------
def _attn_kernel(
    x_ref,                            # (T, D)  rows of x (batch dim squeezed)
    g1_ref, b1_ref,                   # ln_1 scale / shift       (1, D)  f32
    wq_ref, wk_ref, wv_ref,           # per-projection weights   (D, D)  bf16
    bq_ref, bk_ref, bv_ref,           # per-projection biases    (1, D)  f32
    wo_ref, bo_ref,                   # attn.c_proj              (D, D) bf16 / (1, D) f32
    o_ref,                            # (T, D)  x + attn(ln_1(x))
    *, n_head, kv_tile,
):
    x = x_ref[...].astype(jnp.float32)                # (T, D)
    T, D = x.shape
    hd = D // n_head
    scale = 1.0 / math.sqrt(hd)

    # LN1 in f32; cast to bf16 only for the MXU matmuls.
    h = _layernorm(x, g1_ref[...], b1_ref[...]).astype(jnp.bfloat16)

    def proj(w_ref, b_ref):
        y = jnp.dot(h, w_ref[...], preferred_element_type=jnp.float32) + b_ref[...]
        # (T, D) -> (n_head, T, hd): batched-head layout for the einsums below.
        return y.astype(jnp.bfloat16).reshape(T, n_head, hd).swapaxes(0, 1)

    q = proj(wq_ref, bq_ref)                          # (H, T, hd) bf16
    k = proj(wk_ref, bk_ref)
    v = proj(wv_ref, bv_ref)

    # Flash-style online-softmax loop over KV tiles: score working set is
    # (H, T, kv_tile); the full (H, T, T) matrix is never materialized.
    num_kv = T // kv_tile                             # static trip count
    row = jax.lax.broadcasted_iota(jnp.int32, (n_head, T, kv_tile), 1)
    m_i = jnp.full((n_head, T, 1), -1e30, jnp.float32)
    l_i = jnp.zeros((n_head, T, 1), jnp.float32)
    acc = jnp.zeros((n_head, T, hd), jnp.float32)
    for kv in range(num_kv):
        k_t = k[:, kv * kv_tile:(kv + 1) * kv_tile, :]
        v_t = v[:, kv * kv_tile:(kv + 1) * kv_tile, :]
        s = jnp.einsum("hqd,hkd->hqk", q, k_t,
                       preferred_element_type=jnp.float32) * scale
        col = kv * kv_tile + jax.lax.broadcasted_iota(
            jnp.int32, (n_head, T, kv_tile), 2)
        s = jnp.where(col <= row, s, MASK_VALUE)      # causal mask, f32
        m_new = jnp.maximum(m_i, s.max(axis=-1, keepdims=True))
        alpha = jnp.exp(m_i - m_new)
        p = jnp.exp(s - m_new)
        l_i = alpha * l_i + p.sum(axis=-1, keepdims=True)
        acc = alpha * acc + jnp.einsum("hqk,hkd->hqd", p.astype(jnp.bfloat16),
                                       v_t, preferred_element_type=jnp.float32)
        m_i = m_new

    attn = acc / l_i                                  # softmax normalization (f32)
    attn = attn.swapaxes(0, 1).reshape(T, D)          # lane-dense (T, D) slab, no concat

    proj_out = jnp.dot(attn.astype(jnp.bfloat16), wo_ref[...],
                       preferred_element_type=jnp.float32) + bo_ref[...]
    o_ref[...] = (x + proj_out).astype(o_ref.dtype)   # residual 1


# ---------------------------------------------------------------------------
# Kernel 2: out = x1 + mlp(ln_2(x1)), tiled over the sequence axis
# ---------------------------------------------------------------------------
def _mlp_kernel(
    x_ref,                            # (TQ, D) rows of x1 (batch dim squeezed)
    g2_ref, b2_ref,                   # ln_2                      (1, D)  f32
    wfc_ref, bfc_ref,                 # mlp.c_fc   (D, 4D) bf16 / (1, 4D) f32
    wp_ref, bp_ref,                   # mlp.c_proj (4D, D) bf16 / (1, D)  f32
    o_ref,
):
    x = x_ref[...].astype(jnp.float32)
    h = _layernorm(x, g2_ref[...], b2_ref[...]).astype(jnp.bfloat16)
    ff = jnp.dot(h, wfc_ref[...], preferred_element_type=jnp.float32) + bfc_ref[...]
    ff = _gelu(ff).astype(jnp.bfloat16)
    ff = jnp.dot(ff, wp_ref[...], preferred_element_type=jnp.float32) + bp_ref[...]
    o_ref[...] = (x + ff).astype(o_ref.dtype)         # residual 2


# ---------------------------------------------------------------------------
# pallas_call plumbing
# ---------------------------------------------------------------------------
def _weight_specs(weights, single_buffer):
    specs = []
    for w in weights:
        nd = w.ndim
        kwargs = {}
        if single_buffer:
            # Weights never change across the grid -> one VMEM buffer suffices.
            kwargs["pipeline_mode"] = pl.Buffered(1)
        specs.append(pl.BlockSpec(w.shape, lambda *_, _nd=nd: (0,) * _nd, **kwargs))
    return specs


def _run_block_kernel(kernel, x, x_spec, weights, grid, dim_sem):
    out_shape = jax.ShapeDtypeStruct(x.shape, x.dtype)

    def build(single_buffer_weights):
        return pl.pallas_call(
            kernel,
            out_shape=out_shape,
            grid=grid,
            in_specs=[x_spec] + _weight_specs(weights, single_buffer_weights),
            out_specs=x_spec,
            compiler_params=pltpu.CompilerParams(
                dimension_semantics=dim_sem,
                vmem_limit_bytes=_VMEM_LIMIT_BYTES,
            ),
        )

    try:
        return build(single_buffer_weights=True)(x, *weights)
    except Exception:
        # Fallback for JAX builds that reject pl.Buffered(1): default buffering.
        return build(single_buffer_weights=False)(x, *weights)


def gpt2_block(x, params, n_head):
    B, T, D = x.shape
    bf16, f32 = jnp.bfloat16, jnp.float32

    # Split the fused c_attn (Conv1D) weight into lane-aligned per-projection
    # weights/biases and cast the large matmul weights to bf16 (accumulation
    # inside the kernels is f32).
    wqkv, bqkv = params["wqkv"], params["bqkv"]
    wq = wqkv[:, 0 * D:1 * D].astype(bf16)
    wk = wqkv[:, 1 * D:2 * D].astype(bf16)
    wv = wqkv[:, 2 * D:3 * D].astype(bf16)
    bq = bqkv[:, 0 * D:1 * D].astype(f32)
    bk = bqkv[:, 1 * D:2 * D].astype(f32)
    bv = bqkv[:, 2 * D:3 * D].astype(f32)
    wo = params["wo"].astype(bf16)
    wfc = params["wfc"].astype(bf16)
    wp = params["wp"].astype(bf16)

    # ---- kernel 1: x1 = x + attn(ln_1(x)) --------------------------------
    kv_tile = _choose_tile(T)
    x_spec = pl.BlockSpec((pl.Squeezed(), T, D), lambda b: (b, 0, 0))
    attn_weights = [params["g1"].astype(f32), params["b1"].astype(f32),
                    wq, wk, wv, bq, bk, bv,
                    wo, params["bo"].astype(f32)]
    x1 = _run_block_kernel(
        functools.partial(_attn_kernel, n_head=n_head, kv_tile=kv_tile),
        x, x_spec, attn_weights, grid=(B,), dim_sem=("parallel",))

    # ---- kernel 2: out = x1 + mlp(ln_2(x1)), sequence-tiled --------------
    tq = _choose_tile(T)
    row_spec = pl.BlockSpec((pl.Squeezed(), tq, D), lambda b, q: (b, q, 0))
    mlp_weights = [params["g2"].astype(f32), params["b2"].astype(f32),
                   wfc, params["bfc"].astype(f32),
                   wp, params["bp"].astype(f32)]
    out = _run_block_kernel(
        _mlp_kernel, x1, row_spec, mlp_weights,
        grid=(B, T // tq), dim_sem=("parallel", "parallel"))
    return out


# ---------------------------------------------------------------------------
# Parameters (GPT-2 Conv1D convention: W is [in, out], y = x @ W + b)
# ---------------------------------------------------------------------------
def init_params(key, d_model):
    ks = jax.random.split(key, 4)
    std = 0.02
    return {
        # LayerNorms
        "g1": jnp.ones((1, d_model), jnp.float32),
        "b1": jnp.zeros((1, d_model), jnp.float32),
        "g2": jnp.ones((1, d_model), jnp.float32),
        "b2": jnp.zeros((1, d_model), jnp.float32),
        # Attention
        "wqkv": std * jax.random.normal(ks[0], (d_model, 3 * d_model), jnp.float32),
        "bqkv": jnp.zeros((1, 3 * d_model), jnp.float32),
        "wo":   std * jax.random.normal(ks[1], (d_model, d_model), jnp.float32),
        "bo":   jnp.zeros((1, d_model), jnp.float32),
        # FeedForward: d_model -> 4*d_model -> d_model
        "wfc":  std * jax.random.normal(ks[2], (d_model, 4 * d_model), jnp.float32),
        "bfc":  jnp.zeros((1, 4 * d_model), jnp.float32),
        "wp":   std * jax.random.normal(ks[3], (4 * d_model, d_model), jnp.float32),
        "bp":   jnp.zeros((1, d_model), jnp.float32),
    }


# ---------------------------------------------------------------------------
# Pure-JAX f32 reference (for a loose sanity check against the bf16 kernels)
# ---------------------------------------------------------------------------
def _reference(x, params, n_head):
    B, T, D = x.shape
    hd = D // n_head

    def ln(v, g, b):
        mu = v.mean(-1, keepdims=True)
        var = ((v - mu) ** 2).mean(-1, keepdims=True)
        return (v - mu) * jax.lax.rsqrt(var + 1e-5) * g + b

    h = ln(x, params["g1"], params["b1"])
    qkv = h @ params["wqkv"] + params["bqkv"]
    q, k, v = jnp.split(qkv, 3, axis=-1)
    heads = lambda t: t.reshape(B, T, n_head, hd).transpose(0, 2, 1, 3)
    qh, kh, vh = heads(q), heads(k), heads(v)
    s = jnp.einsum("bhqd,bhkd->bhqk", qh, kh) / math.sqrt(hd)
    s = jnp.where(jnp.tril(jnp.ones((T, T), bool)), s, MASK_VALUE)
    p = jax.nn.softmax(s, axis=-1)
    a = jnp.einsum("bhqk,bhkd->bhqd", p, vh).transpose(0, 2, 1, 3).reshape(B, T, D)
    x1 = x + a @ params["wo"] + params["bo"]
    h2 = ln(x1, params["g2"], params["b2"])
    ff = _gelu(h2 @ params["wfc"] + params["bfc"]) @ params["wp"] + params["bp"]
    return x1 + ff


if __name__ == "__main__":
    B, T, D, n_head = 2, 8, 32, 4    # n_ctx = T = 8

    key = jax.random.PRNGKey(0)
    kx, kp = jax.random.split(key)
    x = jax.random.normal(kx, (B, T, D), jnp.float32)
    params = init_params(kp, D)

    out = gpt2_block(x, params, n_head)
    out = jax.block_until_ready(out)

    assert out.shape == (B, T, D)
    assert bool(jnp.all(jnp.isfinite(out)))

    ref = _reference(x, params, n_head)
    max_err = float(jnp.max(jnp.abs(out - ref)))
    assert max_err < 5e-2, f"mismatch vs f32 reference: {max_err}"

    print("KERNEL_OK")
</pallas_src>

<mosaic_0001>
module attributes {stable_mosaic.version = 11 : i64} {
  func.func @_attn_kernel(%arg0: i32, %arg1: memref<1x8x32xf32, #tpu.memory_space<vmem>>, %arg2: memref<1x32xf32, #tpu.memory_space<vmem>>, %arg3: memref<1x32xf32, #tpu.memory_space<vmem>>, %arg4: memref<32x32xbf16, #tpu.memory_space<vmem>>, %arg5: memref<32x32xbf16, #tpu.memory_space<vmem>>, %arg6: memref<32x32xbf16, #tpu.memory_space<vmem>>, %arg7: memref<1x32xf32, #tpu.memory_space<vmem>>, %arg8: memref<1x32xf32, #tpu.memory_space<vmem>>, %arg9: memref<1x32xf32, #tpu.memory_space<vmem>>, %arg10: memref<32x32xbf16, #tpu.memory_space<vmem>>, %arg11: memref<1x32xf32, #tpu.memory_space<vmem>>, %arg12: memref<1x8x32xf32, #tpu.memory_space<vmem>>) attributes {dimension_semantics = [#tpu.dimension_semantics<parallel>], iteration_bounds = array<i64: 2>, scalar_prefetch = 0 : i64, scratch_operands = 0 : i64, tpu.core_type = #tpu.core_type<tc>, window_params = [{transform_indices = @transform_0, window_bounds = array<i64: 1, 8, 32>}, {pipeline_mode = #tpu.pipeline_mode<synchronous>, transform_indices = @transform_1, window_bounds = array<i64: 1, 32>}, {pipeline_mode = #tpu.pipeline_mode<synchronous>, transform_indices = @transform_2, window_bounds = array<i64: 1, 32>}, {pipeline_mode = #tpu.pipeline_mode<synchronous>, transform_indices = @transform_3, window_bounds = array<i64: 32, 32>}, {pipeline_mode = #tpu.pipeline_mode<synchronous>, transform_indices = @transform_4, window_bounds = array<i64: 32, 32>}, {pipeline_mode = #tpu.pipeline_mode<synchronous>, transform_indices = @transform_5, window_bounds = array<i64: 32, 32>}, {pipeline_mode = #tpu.pipeline_mode<synchronous>, transform_indices = @transform_6, window_bounds = array<i64: 1, 32>}, {pipeline_mode = #tpu.pipeline_mode<synchronous>, transform_indices = @transform_7, window_bounds = array<i64: 1, 32>}, {pipeline_mode = #tpu.pipeline_mode<synchronous>, transform_indices = @transform_8, window_bounds = array<i64: 1, 32>}, {pipeline_mode = #tpu.pipeline_mode<synchronous>, transform_indices = @transform_9, window_bounds = array<i64: 32, 32>}, {pipeline_mode = #tpu.pipeline_mode<synchronous>, transform_indices = @transform_10, window_bounds = array<i64: 1, 32>}, {transform_indices = @transform_11, window_bounds = array<i64: 1, 8, 32>}]} {
    %c0 = arith.constant 0 : index
    %c0_0 = arith.constant 0 : index
    %c0_1 = arith.constant 0 : index
    %0 = vector.load %arg1[%c0, %c0_0, %c0_1] : memref<1x8x32xf32, #tpu.memory_space<vmem>>, vector<1x8x32xf32>
    %1 = vector.shape_cast %0 : vector<1x8x32xf32> to vector<8x32xf32>
    %c0_2 = arith.constant 0 : index
    %c0_3 = arith.constant 0 : index
    %2 = vector.load %arg2[%c0_2, %c0_3] : memref<1x32xf32, #tpu.memory_space<vmem>>, vector<1x32xf32>
    %c0_4 = arith.constant 0 : index
    %c0_5 = arith.constant 0 : index
    %3 = vector.load %arg3[%c0_4, %c0_5] : memref<1x32xf32, #tpu.memory_space<vmem>>, vector<1x32xf32>
    %cst = arith.constant dense<0.000000e+00> : vector<8xf32>
    %4 = vector.multi_reduction <add>, %1, %cst [1] : vector<8x32xf32> to vector<8xf32>
    %5 = vector.shape_cast %4 : vector<8xf32> to vector<8x1xf32>
    %cst_6 = arith.constant 3.200000e+01 : f32
    %6 = vector.broadcast %cst_6 : f32 to vector<8x1xf32>
    %7 = arith.divf %5, %6 : vector<8x1xf32>
    %8 = vector.broadcast %7 : vector<8x1xf32> to vector<8x32xf32>
    %9 = arith.subf %1, %8 : vector<8x32xf32>
    %10 = arith.mulf %9, %9 : vector<8x32xf32>
    %cst_7 = arith.constant dense<0.000000e+00> : vector<8xf32>
    %11 = vector.multi_reduction <add>, %10, %cst_7 [1] : vector<8x32xf32> to vector<8xf32>
    %12 = vector.shape_cast %11 : vector<8xf32> to vector<8x1xf32>
    %cst_8 = arith.constant 3.200000e+01 : f32
    %13 = vector.broadcast %cst_8 : f32 to vector<8x1xf32>
    %14 = arith.divf %12, %13 : vector<8x1xf32>
    %cst_9 = arith.constant 9.99999974E-6 : f32
    %15 = vector.broadcast %cst_9 : f32 to vector<8x1xf32>
    %16 = arith.addf %14, %15 : vector<8x1xf32>
    %17 = math.rsqrt %16 : vector<8x1xf32>
    %18 = vector.broadcast %17 : vector<8x1xf32> to vector<8x32xf32>
    %19 = arith.mulf %9, %18 : vector<8x32xf32>
    %20 = vector.broadcast %2 : vector<1x32xf32> to vector<8x32xf32>
    %21 = arith.mulf %19, %20 : vector<8x32xf32>
    %22 = vector.broadcast %3 : vector<1x32xf32> to vector<8x32xf32>
    %23 = arith.addf %21, %22 : vector<8x32xf32>
    %24 = arith.truncf %23 : vector<8x32xf32> to vector<8x32xbf16>
    %c0_10 = arith.constant 0 : index
    %c0_11 = arith.constant 0 : index
    %25 = vector.load %arg4[%c0_10, %c0_11] : memref<32x32xbf16, #tpu.memory_space<vmem>>, vector<32x32xbf16>
    %cst_12 = arith.constant dense<0.000000e+00> : vector<8x32xf32>
    %26 = tpu.matmul %24, %25, %cst_12 {dimension_numbers = #tpu.dot_dimension_numbers<[1], [0], [0], [1], [0, 0, 1, 1], [], []>} : vector<8x32xbf16>, vector<32x32xbf16>, vector<8x32xf32> -> vector<8x32xf32>
    %c0_13 = arith.constant 0 : index
    %c0_14 = arith.constant 0 : index
    %27 = vector.load %arg7[%c0_13, %c0_14] : memref<1x32xf32, #tpu.memory_space<vmem>>, vector<1x32xf32>
    %28 = vector.broadcast %27 : vector<1x32xf32> to vector<8x32xf32>
    %29 = arith.addf %26, %28 : vector<8x32xf32>
    %30 = arith.truncf %29 : vector<8x32xf32> to vector<8x32xbf16>
    %31 = vector.shape_cast %30 : vector<8x32xbf16> to vector<8x4x8xbf16>
    %32 = tpu.transpose %31, [1, 0, 2] : vector<8x4x8xbf16> -> vector<4x8x8xbf16>
    %c0_15 = arith.constant 0 : index
    %c0_16 = arith.constant 0 : index
    %33 = vector.load %arg5[%c0_15, %c0_16] : memref<32x32xbf16, #tpu.memory_space<vmem>>, vector<32x32xbf16>
    %cst_17 = arith.constant dense<0.000000e+00> : vector<8x32xf32>
    %34 = tpu.matmul %24, %33, %cst_17 {dimension_numbers = #tpu.dot_dimension_numbers<[1], [0], [0], [1], [0, 0, 1, 1], [], []>} : vector<8x32xbf16>, vector<32x32xbf16>, vector<8x32xf32> -> vector<8x32xf32>
    %c0_18 = arith.constant 0 : index
    %c0_19 = arith.constant 0 : index
    %35 = vector.load %arg8[%c0_18, %c0_19] : memref<1x32xf32, #tpu.memory_space<vmem>>, vector<1x32xf32>
    %36 = vector.broadcast %35 : vector<1x32xf32> to vector<8x32xf32>
    %37 = arith.addf %34, %36 : vector<8x32xf32>
    %38 = arith.truncf %37 : vector<8x32xf32> to vector<8x32xbf16>
    %39 = vector.shape_cast %38 : vector<8x32xbf16> to vector<8x4x8xbf16>
    %40 = tpu.transpose %39, [1, 0, 2] : vector<8x4x8xbf16> -> vector<4x8x8xbf16>
    %c0_20 = arith.constant 0 : index
    %c0_21 = arith.constant 0 : index
    %41 = vector.load %arg6[%c0_20, %c0_21] : memref<32x32xbf16, #tpu.memory_space<vmem>>, vector<32x32xbf16>
    %cst_22 = arith.constant dense<0.000000e+00> : vector<8x32xf32>
    %42 = tpu.matmul %24, %41, %cst_22 {dimension_numbers = #tpu.dot_dimension_numbers<[1], [0], [0], [1], [0, 0, 1, 1], [], []>} : vector<8x32xbf16>, vector<32x32xbf16>, vector<8x32xf32> -> vector<8x32xf32>
    %c0_23 = arith.constant 0 : index
    %c0_24 = arith.constant 0 : index
    %43 = vector.load %arg9[%c0_23, %c0_24] : memref<1x32xf32, #tpu.memory_space<vmem>>, vector<1x32xf32>
    %44 = vector.broadcast %43 : vector<1x32xf32> to vector<8x32xf32>
    %45 = arith.addf %42, %44 : vector<8x32xf32>
    %46 = arith.truncf %45 : vector<8x32xf32> to vector<8x32xbf16>
    %47 = vector.shape_cast %46 : vector<8x32xbf16> to vector<8x4x8xbf16>
    %48 = tpu.transpose %47, [1, 0, 2] : vector<8x4x8xbf16> -> vector<4x8x8xbf16>
    %49 = tpu.iota {dimensions = array<i32: 1>} : vector<4x8x8xi32>
    %cst_25 = arith.constant -1.000000e+30 : f32
    %50 = vector.broadcast %cst_25 : f32 to vector<4x8x1xf32>
    %cst_26 = arith.constant 0.000000e+00 : f32
    %51 = vector.broadcast %cst_26 : f32 to vector<4x8x1xf32>
    %cst_27 = arith.constant 0.000000e+00 : f32
    %52 = vector.broadcast %cst_27 : f32 to vector<4x8x8xf32>
    "tpu.trace_start"() <{level = 10 : i32, message = "hqd,hkd->hqk"}> : () -> ()
    %cst_28 = arith.constant dense<0.000000e+00> : vector<4x8x8xf32>
    %53 = tpu.matmul %32, %40, %cst_28 {dimension_numbers = #tpu.dot_dimension_numbers<[2], [2], [1], [1], [0, 0, 0, 1, 1, 1], [0], [0]>} : vector<4x8x8xbf16>, vector<4x8x8xbf16>, vector<4x8x8xf32> -> vector<4x8x8xf32>
    "tpu.trace_stop"() : () -> ()
    %cst_29 = arith.constant 0.353553385 : f32
    %54 = vector.broadcast %cst_29 : f32 to vector<4x8x8xf32>
    %55 = arith.mulf %53, %54 : vector<4x8x8xf32>
    %56 = tpu.iota {dimensions = array<i32: 2>} : vector<4x8x8xi32>
    %c0_i32 = arith.constant 0 : i32
    %57 = vector.broadcast %c0_i32 : i32 to vector<4x8x8xi32>
    %58 = arith.addi %57, %56 : vector<4x8x8xi32>
    %59 = arith.cmpi sle, %58, %49 : vector<4x8x8xi32>
    %cst_30 = arith.constant -1.000000e+10 : f32
    %60 = vector.broadcast %cst_30 : f32 to vector<4x8x8xf32>
    %61 = arith.select %59, %55, %60 : vector<4x8x8xi1>, vector<4x8x8xf32>
    %cst_31 = arith.constant dense<0xFF800000> : vector<4x8xf32>
    %62 = vector.multi_reduction <maximumf>, %61, %cst_31 [2] : vector<4x8x8xf32> to vector<4x8xf32>
    %63 = vector.shape_cast %62 : vector<4x8xf32> to vector<4x8x1xf32>
    %64 = arith.maximumf %50, %63 : vector<4x8x1xf32>
    %65 = arith.subf %50, %64 : vector<4x8x1xf32>
    %66 = math.exp %65 : vector<4x8x1xf32>
    %67 = vector.broadcast %64 : vector<4x8x1xf32> to vector<4x8x8xf32>
    %68 = arith.subf %61, %67 : vector<4x8x8xf32>
    %69 = math.exp %68 : vector<4x8x8xf32>
    %70 = arith.mulf %66, %51 : vector<4x8x1xf32>
    %cst_32 = arith.constant dense<0.000000e+00> : vector<4x8xf32>
    %71 = vector.multi_reduction <add>, %69, %cst_32 [2] : vector<4x8x8xf32> to vector<4x8xf32>
    %72 = vector.shape_cast %71 : vector<4x8xf32> to vector<4x8x1xf32>
    %73 = arith.addf %70, %72 : vector<4x8x1xf32>
    %74 = vector.broadcast %66 : vector<4x8x1xf32> to vector<4x8x8xf32>
    %75 = arith.mulf %74, %52 : vector<4x8x8xf32>
    %76 = arith.truncf %69 : vector<4x8x8xf32> to vector<4x8x8xbf16>
    "tpu.trace_start"() <{level = 10 : i32, message = "hqk,hkd->hqd"}> : () -> ()
    %cst_33 = arith.constant dense<0.000000e+00> : vector<4x8x8xf32>
    %77 = tpu.matmul %76, %48, %cst_33 {dimension_numbers = #tpu.dot_dimension_numbers<[2], [1], [1], [2], [0, 0, 0, 1, 1, 2], [0], [0]>} : vector<4x8x8xbf16>, vector<4x8x8xbf16>, vector<4x8x8xf32> -> vector<4x8x8xf32>
    "tpu.trace_stop"() : () -> ()
    %78 = arith.addf %75, %77 : vector<4x8x8xf32>
    %79 = vector.broadcast %73 : vector<4x8x1xf32> to vector<4x8x8xf32>
    %80 = arith.divf %78, %79 : vector<4x8x8xf32>
    %81 = tpu.transpose %80, [1, 0, 2] : vector<4x8x8xf32> -> vector<8x4x8xf32>
    %82 = vector.shape_cast %81 : vector<8x4x8xf32> to vector<8x32xf32>
    %83 = arith.truncf %82 : vector<8x32xf32> to vector<8x32xbf16>
    %c0_34 = arith.constant 0 : index
    %c0_35 = arith.constant 0 : index
    %84 = vector.load %arg10[%c0_34, %c0_35] : memref<32x32xbf16, #tpu.memory_space<vmem>>, vector<32x32xbf16>
    %cst_36 = arith.constant dense<0.000000e+00> : vector<8x32xf32>
    %85 = tpu.matmul %83, %84, %cst_36 {dimension_numbers = #tpu.dot_dimension_numbers<[1], [0], [0], [1], [0, 0, 1, 1], [], []>} : vector<8x32xbf16>, vector<32x32xbf16>, vector<8x32xf32> -> vector<8x32xf32>
    %c0_37 = arith.constant 0 : index
    %c0_38 = arith.constant 0 : index
    %86 = vector.load %arg11[%c0_37, %c0_38] : memref<1x32xf32, #tpu.memory_space<vmem>>, vector<1x32xf32>
    %87 = vector.broadcast %86 : vector<1x32xf32> to vector<8x32xf32>
    %88 = arith.addf %85, %87 : vector<8x32xf32>
    %89 = arith.addf %1, %88 : vector<8x32xf32>
    %c0_39 = arith.constant 0 : index
    %c0_40 = arith.constant 0 : index
    %c0_41 = arith.constant 0 : index
    %90 = vector.load %arg12[%c0_39, %c0_40, %c0_41] : memref<1x8x32xf32, #tpu.memory_space<vmem>>, vector<1x8x32xf32>
    %91 = vector.shape_cast %90 : vector<1x8x32xf32> to vector<8x32xf32>
    %92 = vector.shape_cast %89 : vector<8x32xf32> to vector<1x8x32xf32>
    tpu.vector_store %arg12[%c0_39, %c0_40, %c0_41], %92 {strides = array<i32>} : memref<1x8x32xf32, #tpu.memory_space<vmem>>, vector<1x8x32xf32>,
    return
  }
  func.func @transform_0(%arg0: i32) -> (i32, i32, i32) {
    %c0_i32 = arith.constant 0 : i32
    %c0_i32_0 = arith.constant 0 : i32
    %c0_i32_1 = arith.constant 0 : i32
    return %arg0, %c0_i32, %c0_i32_0 : i32, i32, i32
  }
  func.func @transform_1(%arg0: i32) -> (i32, i32) {
    %c0_i32 = arith.constant 0 : i32
    %c0_i32_0 = arith.constant 0 : i32
    %c0_i32_1 = arith.constant 0 : i32
    return %c0_i32, %c0_i32_0 : i32, i32
  }
  func.func @transform_2(%arg0: i32) -> (i32, i32) {
    %c0_i32 = arith.constant 0 : i32
    %c0_i32_0 = arith.constant 0 : i32
    %c0_i32_1 = arith.constant 0 : i32
    return %c0_i32, %c0_i32_0 : i32, i32
  }
  func.func @transform_3(%arg0: i32) -> (i32, i32) {
    %c0_i32 = arith.constant 0 : i32
    %c0_i32_0 = arith.constant 0 : i32
    %c0_i32_1 = arith.constant 0 : i32
    return %c0_i32, %c0_i32_0 : i32, i32
  }
  func.func @transform_4(%arg0: i32) -> (i32, i32) {
    %c0_i32 = arith.constant 0 : i32
    %c0_i32_0 = arith.constant 0 : i32
    %c0_i32_1 = arith.constant 0 : i32
    return %c0_i32, %c0_i32_0 : i32, i32
  }
  func.func @transform_5(%arg0: i32) -> (i32, i32) {
    %c0_i32 = arith.constant 0 : i32
    %c0_i32_0 = arith.constant 0 : i32
    %c0_i32_1 = arith.constant 0 : i32
    return %c0_i32, %c0_i32_0 : i32, i32
  }
  func.func @transform_6(%arg0: i32) -> (i32, i32) {
    %c0_i32 = arith.constant 0 : i32
    %c0_i32_0 = arith.constant 0 : i32
    %c0_i32_1 = arith.constant 0 : i32
    return %c0_i32, %c0_i32_0 : i32, i32
  }
  func.func @transform_7(%arg0: i32) -> (i32, i32) {
    %c0_i32 = arith.constant 0 : i32
    %c0_i32_0 = arith.constant 0 : i32
    %c0_i32_1 = arith.constant 0 : i32
    return %c0_i32, %c0_i32_0 : i32, i32
  }
  func.func @transform_8(%arg0: i32) -> (i32, i32) {
    %c0_i32 = arith.constant 0 : i32
    %c0_i32_0 = arith.constant 0 : i32
    %c0_i32_1 = arith.constant 0 : i32
    return %c0_i32, %c0_i32_0 : i32, i32
  }
  func.func @transform_9(%arg0: i32) -> (i32, i32) {
    %c0_i32 = arith.constant 0 : i32
    %c0_i32_0 = arith.constant 0 : i32
    %c0_i32_1 = arith.constant 0 : i32
    return %c0_i32, %c0_i32_0 : i32, i32
  }
  func.func @transform_10(%arg0: i32) -> (i32, i32) {
    %c0_i32 = arith.constant 0 : i32
    %c0_i32_0 = arith.constant 0 : i32
    %c0_i32_1 = arith.constant 0 : i32
    return %c0_i32, %c0_i32_0 : i32, i32
  }
  func.func @transform_11(%arg0: i32) -> (i32, i32, i32) {
    %c0_i32 = arith.constant 0 : i32
    %c0_i32_0 = arith.constant 0 : i32
    %c0_i32_1 = arith.constant 0 : i32
    return %arg0, %c0_i32, %c0_i32_0 : i32, i32, i32
  }
}

module attributes {stable_mosaic.version = 11 : i64} {
  func.func @_attn_kernel(%arg0: i32, %arg1: memref<1x8x32xf32, #tpu.memory_space<vmem>>, %arg2: memref<1x32xf32, #tpu.memory_space<vmem>>, %arg3: memref<1x32xf32, #tpu.memory_space<vmem>>, %arg4: memref<32x32xbf16, #tpu.memory_space<vmem>>, %arg5: memref<32x32xbf16, #tpu.memory_space<vmem>>, %arg6: memref<32x32xbf16, #tpu.memory_space<vmem>>, %arg7: memref<1x32xf32, #tpu.memory_space<vmem>>, %arg8: memref<1x32xf32, #tpu.memory_space<vmem>>, %arg9: memref<1x32xf32, #tpu.memory_space<vmem>>, %arg10: memref<32x32xbf16, #tpu.memory_space<vmem>>, %arg11: memref<1x32xf32, #tpu.memory_space<vmem>>, %arg12: memref<1x8x32xf32, #tpu.memory_space<vmem>>) attributes {dimension_semantics = [#tpu.dimension_semantics<parallel>], iteration_bounds = array<i64: 2>, scalar_prefetch = 0 : i64, scratch_operands = 0 : i64, tpu.core_type = #tpu.core_type<tc>, window_params = [{transform_indices = @transform_0, window_bounds = array<i64: 1, 8, 32>}, {pipeline_mode = #tpu.pipeline_mode<synchronous>, transform_indices = @transform_1, window_bounds = array<i64: 1, 32>}, {pipeline_mode = #tpu.pipeline_mode<synchronous>, transform_indices = @transform_2, window_bounds = array<i64: 1, 32>}, {pipeline_mode = #tpu.pipeline_mode<synchronous>, transform_indices = @transform_3, window_bounds = array<i64: 32, 32>}, {pipeline_mode = #tpu.pipeline_mode<synchronous>, transform_indices = @transform_4, window_bounds = array<i64: 32, 32>}, {pipeline_mode = #tpu.pipeline_mode<synchronous>, transform_indices = @transform_5, window_bounds = array<i64: 32, 32>}, {pipeline_mode = #tpu.pipeline_mode<synchronous>, transform_indices = @transform_6, window_bounds = array<i64: 1, 32>}, {pipeline_mode = #tpu.pipeline_mode<synchronous>, transform_indices = @transform_7, window_bounds = array<i64: 1, 32>}, {pipeline_mode = #tpu.pipeline_mode<synchronous>, transform_indices = @transform_8, window_bounds = array<i64: 1, 32>}, {pipeline_mode = #tpu.pipeline_mode<synchronous>, transform_indices = @transform_9, window_bounds = array<i64: 32, 32>}, {pipeline_mode = #tpu.pipeline_mode<synchronous>, transform_indices = @transform_10, window_bounds = array<i64: 1, 32>}, {transform_indices = @transform_11, window_bounds = array<i64: 1, 8, 32>}]} {
    %c0 = arith.constant 0 : index
    %c0_0 = arith.constant 0 : index
    %c0_1 = arith.constant 0 : index
    %0 = vector.load %arg1[%c0, %c0_0, %c0_1] : memref<1x8x32xf32, #tpu.memory_space<vmem>>, vector<1x8x32xf32>
    %1 = vector.shape_cast %0 : vector<1x8x32xf32> to vector<8x32xf32>
    %c0_2 = arith.constant 0 : index
    %c0_3 = arith.constant 0 : index
    %2 = vector.load %arg2[%c0_2, %c0_3] : memref<1x32xf32, #tpu.memory_space<vmem>>, vector<1x32xf32>
    %c0_4 = arith.constant 0 : index
    %c0_5 = arith.constant 0 : index
    %3 = vector.load %arg3[%c0_4, %c0_5] : memref<1x32xf32, #tpu.memory_space<vmem>>, vector<1x32xf32>
    %cst = arith.constant dense<0.000000e+00> : vector<8xf32>
    %4 = vector.multi_reduction <add>, %1, %cst [1] : vector<8x32xf32> to vector<8xf32>
    %5 = vector.shape_cast %4 : vector<8xf32> to vector<8x1xf32>
    %cst_6 = arith.constant 3.200000e+01 : f32
    %6 = vector.broadcast %cst_6 : f32 to vector<8x1xf32>
    %7 = arith.divf %5, %6 : vector<8x1xf32>
    %8 = vector.broadcast %7 : vector<8x1xf32> to vector<8x32xf32>
    %9 = arith.subf %1, %8 : vector<8x32xf32>
    %10 = arith.mulf %9, %9 : vector<8x32xf32>
    %cst_7 = arith.constant dense<0.000000e+00> : vector<8xf32>
    %11 = vector.multi_reduction <add>, %10, %cst_7 [1] : vector<8x32xf32> to vector<8xf32>
    %12 = vector.shape_cast %11 : vector<8xf32> to vector<8x1xf32>
    %cst_8 = arith.constant 3.200000e+01 : f32
    %13 = vector.broadcast %cst_8 : f32 to vector<8x1xf32>
    %14 = arith.divf %12, %13 : vector<8x1xf32>
    %cst_9 = arith.constant 9.99999974E-6 : f32
    %15 = vector.broadcast %cst_9 : f32 to vector<8x1xf32>
    %16 = arith.addf %14, %15 : vector<8x1xf32>
    %17 = math.rsqrt %16 : vector<8x1xf32>
    %18 = vector.broadcast %17 : vector<8x1xf32> to vector<8x32xf32>
    %19 = arith.mulf %9, %18 : vector<8x32xf32>
    %20 = vector.broadcast %2 : vector<1x32xf32> to vector<8x32xf32>
    %21 = arith.mulf %19, %20 : vector<8x32xf32>
    %22 = vector.broadcast %3 : vector<1x32xf32> to vector<8x32xf32>
    %23 = arith.addf %21, %22 : vector<8x32xf32>
    %24 = arith.truncf %23 : vector<8x32xf32> to vector<8x32xbf16>
    %c0_10 = arith.constant 0 : index
    %c0_11 = arith.constant 0 : index
    %25 = vector.load %arg4[%c0_10, %c0_11] : memref<32x32xbf16, #tpu.memory_space<vmem>>, vector<32x32xbf16>
    %cst_12 = arith.constant dense<0.000000e+00> : vector<8x32xf32>
    %26 = tpu.matmul %24, %25, %cst_12 {dimension_numbers = #tpu.dot_dimension_numbers<[1], [0], [0], [1], [0, 0, 1, 1], [], []>} : vector<8x32xbf16>, vector<32x32xbf16>, vector<8x32xf32> -> vector<8x32xf32>
    %c0_13 = arith.constant 0 : index
    %c0_14 = arith.constant 0 : index
    %27 = vector.load %arg7[%c0_13, %c0_14] : memref<1x32xf32, #tpu.memory_space<vmem>>, vector<1x32xf32>
    %28 = vector.broadcast %27 : vector<1x32xf32> to vector<8x32xf32>
    %29 = arith.addf %26, %28 : vector<8x32xf32>
    %30 = arith.truncf %29 : vector<8x32xf32> to vector<8x32xbf16>
    %31 = vector.shape_cast %30 : vector<8x32xbf16> to vector<8x4x8xbf16>
    %32 = tpu.transpose %31, [1, 0, 2] : vector<8x4x8xbf16> -> vector<4x8x8xbf16>
    %c0_15 = arith.constant 0 : index
    %c0_16 = arith.constant 0 : index
    %33 = vector.load %arg5[%c0_15, %c0_16] : memref<32x32xbf16, #tpu.memory_space<vmem>>, vector<32x32xbf16>
    %cst_17 = arith.constant dense<0.000000e+00> : vector<8x32xf32>
    %34 = tpu.matmul %24, %33, %cst_17 {dimension_numbers = #tpu.dot_dimension_numbers<[1], [0], [0], [1], [0, 0, 1, 1], [], []>} : vector<8x32xbf16>, vector<32x32xbf16>, vector<8x32xf32> -> vector<8x32xf32>
    %c0_18 = arith.constant 0 : index
    %c0_19 = arith.constant 0 : index
    %35 = vector.load %arg8[%c0_18, %c0_19] : memref<1x32xf32, #tpu.memory_space<vmem>>, vector<1x32xf32>
    %36 = vector.broadcast %35 : vector<1x32xf32> to vector<8x32xf32>
    %37 = arith.addf %34, %36 : vector<8x32xf32>
    %38 = arith.truncf %37 : vector<8x32xf32> to vector<8x32xbf16>
    %39 = vector.shape_cast %38 : vector<8x32xbf16> to vector<8x4x8xbf16>
    %40 = tpu.transpose %39, [1, 0, 2] : vector<8x4x8xbf16> -> vector<4x8x8xbf16>
    %c0_20 = arith.constant 0 : index
    %c0_21 = arith.constant 0 : index
    %41 = vector.load %arg6[%c0_20, %c0_21] : memref<32x32xbf16, #tpu.memory_space<vmem>>, vector<32x32xbf16>
    %cst_22 = arith.constant dense<0.000000e+00> : vector<8x32xf32>
    %42 = tpu.matmul %24, %41, %cst_22 {dimension_numbers = #tpu.dot_dimension_numbers<[1], [0], [0], [1], [0, 0, 1, 1], [], []>} : vector<8x32xbf16>, vector<32x32xbf16>, vector<8x32xf32> -> vector<8x32xf32>
    %c0_23 = arith.constant 0 : index
    %c0_24 = arith.constant 0 : index
    %43 = vector.load %arg9[%c0_23, %c0_24] : memref<1x32xf32, #tpu.memory_space<vmem>>, vector<1x32xf32>
    %44 = vector.broadcast %43 : vector<1x32xf32> to vector<8x32xf32>
    %45 = arith.addf %42, %44 : vector<8x32xf32>
    %46 = arith.truncf %45 : vector<8x32xf32> to vector<8x32xbf16>
    %47 = vector.shape_cast %46 : vector<8x32xbf16> to vector<8x4x8xbf16>
    %48 = tpu.transpose %47, [1, 0, 2] : vector<8x4x8xbf16> -> vector<4x8x8xbf16>
    %49 = tpu.iota {dimensions = array<i32: 1>} : vector<4x8x8xi32>
    %cst_25 = arith.constant -1.000000e+30 : f32
    %50 = vector.broadcast %cst_25 : f32 to vector<4x8x1xf32>
    %cst_26 = arith.constant 0.000000e+00 : f32
    %51 = vector.broadcast %cst_26 : f32 to vector<4x8x1xf32>
    %cst_27 = arith.constant 0.000000e+00 : f32
    %52 = vector.broadcast %cst_27 : f32 to vector<4x8x8xf32>
    "tpu.trace_start"() <{level = 10 : i32, message = "hqd,hkd->hqk"}> : () -> ()
    %cst_28 = arith.constant dense<0.000000e+00> : vector<4x8x8xf32>
    %53 = tpu.matmul %32, %40, %cst_28 {dimension_numbers = #tpu.dot_dimension_numbers<[2], [2], [1], [1], [0, 0, 0, 1, 1, 1], [0], [0]>} : vector<4x8x8xbf16>, vector<4x8x8xbf16>, vector<4x8x8xf32> -> vector<4x8x8xf32>
    "tpu.trace_stop"() : () -> ()
    %cst_29 = arith.constant 0.353553385 : f32
    %54 = vector.broadcast %cst_29 : f32 to vector<4x8x8xf32>
    %55 = arith.mulf %53, %54 : vector<4x8x8xf32>
    %56 = tpu.iota {dimensions = array<i32: 2>} : vector<4x8x8xi32>
    %c0_i32 = arith.constant 0 : i32
    %57 = vector.broadcast %c0_i32 : i32 to vector<4x8x8xi32>
    %58 = arith.addi %57, %56 : vector<4x8x8xi32>
    %59 = arith.cmpi sle, %58, %49 : vector<4x8x8xi32>
    %cst_30 = arith.constant -1.000000e+10 : f32
    %60 = vector.broadcast %cst_30 : f32 to vector<4x8x8xf32>
    %61 = arith.select %59, %55, %60 : vector<4x8x8xi1>, vector<4x8x8xf32>
    %cst_31 = arith.constant dense<0xFF800000> : vector<4x8xf32>
    %62 = vector.multi_reduction <maximumf>, %61, %cst_31 [2] : vector<4x8x8xf32> to vector<4x8xf32>
    %63 = vector.shape_cast %62 : vector<4x8xf32> to vector<4x8x1xf32>
    %64 = arith.maximumf %50, %63 : vector<4x8x1xf32>
    %65 = arith.subf %50, %64 : vector<4x8x1xf32>
    %66 = math.exp %65 : vector<4x8x1xf32>
    %67 = vector.broadcast %64 : vector<4x8x1xf32> to vector<4x8x8xf32>
    %68 = arith.subf %61, %67 : vector<4x8x8xf32>
    %69 = math.exp %68 : vector<4x8x8xf32>
    %70 = arith.mulf %66, %51 : vector<4x8x1xf32>
    %cst_32 = arith.constant dense<0.000000e+00> : vector<4x8xf32>
    %71 = vector.multi_reduction <add>, %69, %cst_32 [2] : vector<4x8x8xf32> to vector<4x8xf32>
    %72 = vector.shape_cast %71 : vector<4x8xf32> to vector<4x8x1xf32>
    %73 = arith.addf %70, %72 : vector<4x8x1xf32>
    %74 = vector.broadcast %66 : vector<4x8x1xf32> to vector<4x8x8xf32>
    %75 = arith.mulf %74, %52 : vector<4x8x8xf32>
    %76 = arith.truncf %69 : vector<4x8x8xf32> to vector<4x8x8xbf16>
    "tpu.trace_start"() <{level = 10 : i32, message = "hqk,hkd->hqd"}> : () -> ()
    %cst_33 = arith.constant dense<0.000000e+00> : vector<4x8x8xf32>
    %77 = tpu.matmul %76, %48, %cst_33 {dimension_numbers = #tpu.dot_dimension_numbers<[2], [1], [1], [2], [0, 0, 0, 1, 1, 2], [0], [0]>} : vector<4x8x8xbf16>, vector<4x8x8xbf16>, vector<4x8x8xf32> -> vector<4x8x8xf32>
    "tpu.trace_stop"() : () -> ()
    %78 = arith.addf %75, %77 : vector<4x8x8xf32>
    %79 = vector.broadcast %73 : vector<4x8x1xf32> to vector<4x8x8xf32>
    %80 = arith.divf %78, %79 : vector<4x8x8xf32>
    %81 = tpu.transpose %80, [1, 0, 2] : vector<4x8x8xf32> -> vector<8x4x8xf32>
    %82 = vector.shape_cast %81 : vector<8x4x8xf32> to vector<8x32xf32>
    %83 = arith.truncf %82 : vector<8x32xf32> to vector<8x32xbf16>
    %c0_34 = arith.constant 0 : index
    %c0_35 = arith.constant 0 : index
    %84 = vector.load %arg10[%c0_34, %c0_35] : memref<32x32xbf16, #tpu.memory_space<vmem>>, vector<32x32xbf16>
    %cst_36 = arith.constant dense<0.000000e+00> : vector<8x32xf32>
    %85 = tpu.matmul %83, %84, %cst_36 {dimension_numbers = #tpu.dot_dimension_numbers<[1], [0], [0], [1], [0, 0, 1, 1], [], []>} : vector<8x32xbf16>, vector<32x32xbf16>, vector<8x32xf32> -> vector<8x32xf32>
    %c0_37 = arith.constant 0 : index
    %c0_38 = arith.constant 0 : index
    %86 = vector.load %arg11[%c0_37, %c0_38] : memref<1x32xf32, #tpu.memory_space<vmem>>, vector<1x32xf32>
    %87 = vector.broadcast %86 : vector<1x32xf32> to vector<8x32xf32>
    %88 = arith.addf %85, %87 : vector<8x32xf32>
    %89 = arith.addf %1, %88 : vector<8x32xf32>
    %c0_39 = arith.constant 0 : index
    %c0_40 = arith.constant 0 : index
    %c0_41 = arith.constant 0 : index
    %90 = vector.load %arg12[%c0_39, %c0_40, %c0_41] : memref<1x8x32xf32, #tpu.memory_space<vmem>>, vector<1x8x32xf32>
    %91 = vector.shape_cast %90 : vector<1x8x32xf32> to vector<8x32xf32>
    %92 = vector.shape_cast %89 : vector<8x32xf32> to vector<1x8x32xf32>
    tpu.vector_store %arg12[%c0_39, %c0_40, %c0_41], %92 {strides = array<i32>} : memref<1x8x32xf32, #tpu.memory_space<vmem>>, vector<1x8x32xf32>,
    return
  }
  func.func @transform_0(%arg0: i32) -> (i32, i32, i32) {
    %c0_i32 = arith.constant 0 : i32
    %c0_i32_0 = arith.constant 0 : i32
    %c0_i32_1 = arith.constant 0 : i32
    return %arg0, %c0_i32, %c0_i32_0 : i32, i32, i32
  }
  func.func @transform_1(%arg0: i32) -> (i32, i32) {
    %c0_i32 = arith.constant 0 : i32
    %c0_i32_0 = arith.constant 0 : i32
    %c0_i32_1 = arith.constant 0 : i32
    return %c0_i32, %c0_i32_0 : i32, i32
  }
  func.func @transform_2(%arg0: i32) -> (i32, i32) {
    %c0_i32 = arith.constant 0 : i32
    %c0_i32_0 = arith.constant 0 : i32
    %c0_i32_1 = arith.constant 0 : i32
    return %c0_i32, %c0_i32_0 : i32, i32
  }
  func.func @transform_3(%arg0: i32) -> (i32, i32) {
    %c0_i32 = arith.constant 0 : i32
    %c0_i32_0 = arith.constant 0 : i32
    %c0_i32_1 = arith.constant 0 : i32
    return %c0_i32, %c0_i32_0 : i32, i32
  }
  func.func @transform_4(%arg0: i32) -> (i32, i32) {
    %c0_i32 = arith.constant 0 : i32
    %c0_i32_0 = arith.constant 0 : i32
    %c0_i32_1 = arith.constant 0 : i32
    return %c0_i32, %c0_i32_0 : i32, i32
  }
  func.func @transform_5(%arg0: i32) -> (i32, i32) {
    %c0_i32 = arith.constant 0 : i32
    %c0_i32_0 = arith.constant 0 : i32
    %c0_i32_1 = arith.constant 0 : i32
    return %c0_i32, %c0_i32_0 : i32, i32
  }
  func.func @transform_6(%arg0: i32) -> (i32, i32) {
    %c0_i32 = arith.constant 0 : i32
    %c0_i32_0 = arith.constant 0 : i32
    %c0_i32_1 = arith.constant 0 : i32
    return %c0_i32, %c0_i32_0 : i32, i32
  }
  func.func @transform_7(%arg0: i32) -> (i32, i32) {
    %c0_i32 = arith.constant 0 : i32
    %c0_i32_0 = arith.constant 0 : i32
    %c0_i32_1 = arith.constant 0 : i32
    return %c0_i32, %c0_i32_0 : i32, i32
  }
  func.func @transform_8(%arg0: i32) -> (i32, i32) {
    %c0_i32 = arith.constant 0 : i32
    %c0_i32_0 = arith.constant 0 : i32
    %c0_i32_1 = arith.constant 0 : i32
    return %c0_i32, %c0_i32_0 : i32, i32
  }
  func.func @transform_9(%arg0: i32) -> (i32, i32) {
    %c0_i32 = arith.constant 0 : i32
    %c0_i32_0 = arith.constant 0 : i32
    %c0_i32_1 = arith.constant 0 : i32
    return %c0_i32, %c0_i32_0 : i32, i32
  }
  func.func @transform_10(%arg0: i32) -> (i32, i32) {
    %c0_i32 = arith.constant 0 : i32
    %c0_i32_0 = arith.constant 0 : i32
    %c0_i32_1 = arith.constant 0 : i32
    return %c0_i32, %c0_i32_0 : i32, i32
  }
  func.func @transform_11(%arg0: i32) -> (i32, i32, i32) {
    %c0_i32 = arith.constant 0 : i32
    %c0_i32_0 = arith.constant 0 : i32
    %c0_i32_1 = arith.constant 0 : i32
    return %arg0, %c0_i32, %c0_i32_0 : i32, i32, i32
  }
}

</mosaic_0001>

<llo_original>
// kernel: tpu_custom_call.1
$region0: #{tpu_custom_call.1}
  #allocation0 [shape = 'u32[]', space=smem, size = 0x4, offset = 0x4, fixed_abs, tag = 'smem constant byte address 0x4 - core index']
  #allocation1 [shape = 'u32[144,128]{1,0:T(1,128)}', space=vmem, size = 0x12000, scoped, tag = 'internal scratch']
  %s0 = inlined_call_operand.hbm [shape: f32[2,8,32], index: 0, kind: input, shape index: {}]
  %s1 = inlined_call_operand.hbm [shape: f32[1,32], index: 1, kind: input, shape index: {}]
  %s2 = inlined_call_operand.hbm [shape: f32[1,32], index: 2, kind: input, shape index: {}]
  %s3 = inlined_call_operand.hbm [shape: bf16[32,32], index: 3, kind: input, shape index: {}]
  %s4 = inlined_call_operand.hbm [shape: bf16[32,32], index: 4, kind: input, shape index: {}]
  %s5 = inlined_call_operand.hbm [shape: bf16[32,32], index: 5, kind: input, shape index: {}]
  %s6 = inlined_call_operand.hbm [shape: f32[1,32], index: 6, kind: input, shape index: {}]
  %s7 = inlined_call_operand.hbm [shape: f32[1,32], index: 7, kind: input, shape index: {}]
  %s8 = inlined_call_operand.hbm [shape: f32[1,32], index: 8, kind: input, shape index: {}]
  %s9 = inlined_call_operand.hbm [shape: bf16[32,32], index: 9, kind: input, shape index: {}]
  %s10 = inlined_call_operand.hbm [shape: f32[1,32], index: 10, kind: input, shape index: {}]
  %s11 = inlined_call_operand.hbm [shape: f32[2,8,32], index: 11, kind: output, shape index: {}]
  %s12 = sld [smem:[#allocation0]]
  $region121: #{tpu_custom_call.1} parent=0
    _
  %s14 = ssub.s32 1, %s12
  %s15 = scalar_select 0, %s14, %s12
  $region1: #{tpu_custom_call.1} parent=0
    #allocation2 [shape = 'u8[8192]{0}', space=vmem, size = 0x2000, scoped, tag = 'input window, operand 0']
    #allocation3 [shape = 's32[2]{0}', space=sflag, size = 0x8, scoped, tag = 'scoped memory for tpu_custom_call.1']
    #allocation4 [shape = 's32[2]{0}', space=sflag, size = 0x8, scoped, tag = 'scoped memory for tpu_custom_call.1']
    #allocation5 [shape = 'u8[512]{0}', space=vmem, size = 0x400, scoped, tag = 'input window, operand 1, single buffered']
    #allocation6 [shape = 's32[1]{0}', space=sflag, size = 0x4, scoped, tag = 'scoped memory for tpu_custom_call.1']
    #allocation7 [shape = 'u8[512]{0}', space=vmem, size = 0x400, scoped, tag = 'input window, operand 2, single buffered']
    #allocation8 [shape = 'u8[8192]{0}', space=vmem, size = 0x2000, scoped, tag = 'input window, operand 3, single buffered']
    #allocation9 [shape = 's32[1]{0}', space=sflag, size = 0x4, scoped, tag = 'scoped memory for tpu_custom_call.1']
    #allocation10 [shape = 'u8[8192]{0}', space=vmem, size = 0x2000, scoped, tag = 'input window, operand 4, single buffered']
    #allocation11 [shape = 'u8[8192]{0}', space=vmem, size = 0x2000, scoped, tag = 'input window, operand 5, single buffered']
    #allocation12 [shape = 's32[1]{0}', space=sflag, size = 0x4, scoped, tag = 'scoped memory for tpu_custom_call.1']
    #allocation13 [shape = 'u8[512]{0}', space=vmem, size = 0x400, scoped, tag = 'input window, operand 6, single buffered']
    #allocation14 [shape = 'u8[512]{0}', space=vmem, size = 0x400, scoped, tag = 'input window, operand 7, single buffered']
    #allocation15 [shape = 's32[1]{0}', space=sflag, size = 0x4, scoped, tag = 'scoped memory for tpu_custom_call.1']
    #allocation16 [shape = 'u8[512]{0}', space=vmem, size = 0x400, scoped, tag = 'input window, operand 8, single buffered']
    #allocation17 [shape = 'u8[8192]{0}', space=vmem, size = 0x2000, scoped, tag = 'input window, operand 9, single buffered']
    #allocation18 [shape = 's32[1]{0}', space=sflag, size = 0x4, scoped, tag = 'scoped memory for tpu_custom_call.1']
    #allocation19 [shape = 'u8[512]{0}', space=vmem, size = 0x400, scoped, tag = 'input window, operand 10, single buffered']
    #allocation20 [shape = 'u8[8192]{0}', space=vmem, size = 0x2000, scoped, tag = 'output window, operand 0']
    %16 = vsyncpa [#allocation3], 0
    %s17 = scalar_lea.sflag [#allocation3], 1
    %18 = vsyncpa %s17, 0
    %19 = vsyncpa [#allocation6], 0
    %20 = vsyncpa [#allocation9], 0
    %21 = vsyncpa [#allocation12], 0
    %22 = vsyncpa [#allocation15], 0
    %23 = vsyncpa [#allocation18], 0
    %24 = vsyncpa [#allocation4], 0
    %s25 = scalar_lea.sflag [#allocation4], 1
    %26 = vsyncpa %s25, 0
    loop: start=0, step=1, limit=4
    $region2: #{tpu_custom_call.1} parent=1 // loop_pre_header
      _
    $region3: #{tpu_custom_call.1} parent=1 // loop_header
      %s28 = sphi 0, %s32
      %p29 = scmp.ge.s32.totalorder %s28, 4
      %s38 = sphi 0, %s40
      %s41 = sphi 0, %s38
      %s42 = sphi 0, %s41
      %s58 = sphi 0, %s42
      %s62 = sphi 0, %s62
      %s64 = sphi 0, %s62
      %s65 = sphi 0, %s64
      %s79 = sphi 0, %s65
      %s83 = sphi 0, %s83
      %s85 = sphi 0, %s83
      %s86 = sphi 0, %s85
      %s100 = sphi 0, %s86
      %s104 = sphi 0, %s104
      %s106 = sphi 0, %s104
      %s107 = sphi 0, %s106
      %s121 = sphi 0, %s107
      %s125 = sphi 0, %s125
      %s127 = sphi 0, %s125
      %s128 = sphi 0, %s127
      %s142 = sphi 0, %s128
      %s146 = sphi 0, %s146
      %s148 = sphi 0, %s146
      %s149 = sphi 0, %s148
      %s163 = sphi 0, %s149
      %s167 = sphi 0, %s167
      %s169 = sphi 0, %s167
      %s170 = sphi 0, %s169
      %s184 = sphi 0, %s170
      %s188 = sphi 0, %s188
      %s190 = sphi 0, %s188
      %s191 = sphi 0, %s190
      %s205 = sphi 0, %s191
      %s209 = sphi 0, %s209
      %s211 = sphi 0, %s209
      %s212 = sphi 0, %s211
      %s226 = sphi 0, %s212
      %s230 = sphi 0, %s230
      %s232 = sphi 0, %s230
      %s233 = sphi 0, %s232
      %s247 = sphi 0, %s233
      %s251 = sphi 0, %s251
      %s253 = sphi 0, %s251
      %s254 = sphi 0, %s253
      %s268 = sphi 0, %s254
      %s274 = sphi 0, %s276
      %s277 = sphi 0, %s274
      %s278 = sphi 0, %s277
      %s294 = sphi 0, %s278
    $region4: #{tpu_custom_call.1} parent=1 // loop_header_branch
      %31 = sbr.rel (%p29) target = $region8
    $region5: #{tpu_custom_call.1} parent=1 // loop_body
      %s33 = ssub.s32 %s28, 1
      %s34 = ssub.s32 %s28, 2
      %s35 = sadd.s32 %s28, 1
      %s36 = ssub.s32 %s28, %s35
      %p37 = scmp.eq.s32.totalorder %s36, 0
      %s39 = sadd.s32 %s38, 1
      %s40 = scalar_select %p37, %s38, %s39
      %p43 = pneg %p37
      %p44 = scmp.eq.s32.totalorder %s28, 1
      %p45 = por %p43, %p44
      %p46 = scmp.ne.s32.totalorder %s38, %s41
      %p47 = scmp.eq.s32.totalorder %s28, 0
      %p48 = por %p46, %p47
      %p49 = scmp.ne.s32.totalorder %s38, %s41
      %p50 = scmp.eq.s32.totalorder %s33, 1
      %p51 = por %p49, %p50
      %p52 = scmp.ne.s32.totalorder %s41, %s42
      %p53 = scmp.eq.s32.totalorder %s33, 0
      %p54 = por %p52, %p53
      %p55 = scmp.ne.s32.totalorder %s41, %s42
      %p56 = scmp.eq.s32.totalorder %s34, 1
      %p57 = por %p55, %p56
      %p59 = scmp.ne.s32.totalorder %s42, %s58
      %p60 = scmp.eq.s32.totalorder %s34, 0
      %p61 = por %p59, %p60
      %s63 = sadd.s32 %s62, 1
      %p66 = scmp.eq.s32.totalorder %s28, 1
      %p67 = scmp.ne.s32.totalorder %s62, %s64
      %p68 = scmp.eq.s32.totalorder %s28, 0
      %p69 = por %p67, %p68
      %p70 = scmp.ne.s32.totalorder %s62, %s64
      %p71 = scmp.eq.s32.totalorder %s33, 1
      %p72 = por %p70, %p71
      %p73 = scmp.ne.s32.totalorder %s64, %s65
      %p74 = scmp.eq.s32.totalorder %s33, 0
      %p75 = por %p73, %p74
      %p76 = scmp.ne.s32.totalorder %s64, %s65
      %p77 = scmp.eq.s32.totalorder %s34, 1
      %p78 = por %p76, %p77
      %p80 = scmp.ne.s32.totalorder %s65, %s79
      %p81 = scmp.eq.s32.totalorder %s34, 0
      %p82 = por %p80, %p81
      %s84 = sadd.s32 %s83, 1
      %p87 = scmp.eq.s32.totalorder %s28, 1
      %p88 = scmp.ne.s32.totalorder %s83, %s85
      %p89 = scmp.eq.s32.totalorder %s28, 0
      %p90 = por %p88, %p89
      %p91 = scmp.ne.s32.totalorder %s83, %s85
      %p92 = scmp.eq.s32.totalorder %s33, 1
      %p93 = por %p91, %p92
      %p94 = scmp.ne.s32.totalorder %s85, %s86
      %p95 = scmp.eq.s32.totalorder %s33, 0
      %p96 = por %p94, %p95
      %p97 = scmp.ne.s32.totalorder %s85, %s86
      %p98 = scmp.eq.s32.totalorder %s34, 1
      %p99 = por %p97, %p98
      %p101 = scmp.ne.s32.totalorder %s86, %s100
      %p102 = scmp.eq.s32.totalorder %s34, 0
      %p103 = por %p101, %p102
      %s105 = sadd.s32 %s104, 1
      %p108 = scmp.eq.s32.totalorder %s28, 1
      %p109 = scmp.ne.s32.totalorder %s104, %s106
      %p110 = scmp.eq.s32.totalorder %s28, 0
      %p111 = por %p109, %p110
      %p112 = scmp.ne.s32.totalorder %s104, %s106
      %p113 = scmp.eq.s32.totalorder %s33, 1
      %p114 = por %p112, %p113
      %p115 = scmp.ne.s32.totalorder %s106, %s107
      %p116 = scmp.eq.s32.totalorder %s33, 0
      %p117 = por %p115, %p116
      %p118 = scmp.ne.s32.totalorder %s106, %s107
      %p119 = scmp.eq.s32.totalorder %s34, 1
      %p120 = por %p118, %p119
      %p122 = scmp.ne.s32.totalorder %s107, %s121
      %p123 = scmp.eq.s32.totalorder %s34, 0
      %p124 = por %p122, %p123
      %s126 = sadd.s32 %s125, 1
      %p129 = scmp.eq.s32.totalorder %s28, 1
      %p130 = scmp.ne.s32.totalorder %s125, %s127
      %p131 = scmp.eq.s32.totalorder %s28, 0
      %p132 = por %p130, %p131
      %p133 = scmp.ne.s32.totalorder %s125, %s127
      %p134 = scmp.eq.s32.totalorder %s33, 1
      %p135 = por %p133, %p134
      %p136 = scmp.ne.s32.totalorder %s127, %s128
      %p137 = scmp.eq.s32.totalorder %s33, 0
      %p138 = por %p136, %p137
      %p139 = scmp.ne.s32.totalorder %s127, %s128
      %p140 = scmp.eq.s32.totalorder %s34, 1
      %p141 = por %p139, %p140
      %p143 = scmp.ne.s32.totalorder %s128, %s142
      %p144 = scmp.eq.s32.totalorder %s34, 0
      %p145 = por %p143, %p144
      %s147 = sadd.s32 %s146, 1
      %p150 = scmp.eq.s32.totalorder %s28, 1
      %p151 = scmp.ne.s32.totalorder %s146, %s148
      %p152 = scmp.eq.s32.totalorder %s28, 0
      %p153 = por %p151, %p152
      %p154 = scmp.ne.s32.totalorder %s146, %s148
      %p155 = scmp.eq.s32.totalorder %s33, 1
      %p156 = por %p154, %p155
      %p157 = scmp.ne.s32.totalorder %s148, %s149
      %p158 = scmp.eq.s32.totalorder %s33, 0
      %p159 = por %p157, %p158
      %p160 = scmp.ne.s32.totalorder %s148, %s149
      %p161 = scmp.eq.s32.totalorder %s34, 1
      %p162 = por %p160, %p161
      %p164 = scmp.ne.s32.totalorder %s149, %s163
      %p165 = scmp.eq.s32.totalorder %s34, 0
      %p166 = por %p164, %p165
      %s168 = sadd.s32 %s167, 1
      %p171 = scmp.eq.s32.totalorder %s28, 1
      %p172 = scmp.ne.s32.totalorder %s167, %s169
      %p173 = scmp.eq.s32.totalorder %s28, 0
      %p174 = por %p172, %p173
      %p175 = scmp.ne.s32.totalorder %s167, %s169
      %p176 = scmp.eq.s32.totalorder %s33, 1
      %p177 = por %p175, %p176
      %p178 = scmp.ne.s32.totalorder %s169, %s170
      %p179 = scmp.eq.s32.totalorder %s33, 0
      %p180 = por %p178, %p179
      %p181 = scmp.ne.s32.totalorder %s169, %s170
      %p182 = scmp.eq.s32.totalorder %s34, 1
      %p183 = por %p181, %p182
      %p185 = scmp.ne.s32.totalorder %s170, %s184
      %p186 = scmp.eq.s32.totalorder %s34, 0
      %p187 = por %p185, %p186
      %s189 = sadd.s32 %s188, 1
      %p192 = scmp.eq.s32.totalorder %s28, 1
      %p193 = scmp.ne.s32.totalorder %s188, %s190
      %p194 = scmp.eq.s32.totalorder %s28, 0
      %p195 = por %p193, %p194
      %p196 = scmp.ne.s32.totalorder %s188, %s190
      %p197 = scmp.eq.s32.totalorder %s33, 1
      %p198 = por %p196, %p197
      %p199 = scmp.ne.s32.totalorder %s190, %s191
      %p200 = scmp.eq.s32.totalorder %s33, 0
      %p201 = por %p199, %p200
      %p202 = scmp.ne.s32.totalorder %s190, %s191
      %p203 = scmp.eq.s32.totalorder %s34, 1
      %p204 = por %p202, %p203
      %p206 = scmp.ne.s32.totalorder %s191, %s205
      %p207 = scmp.eq.s32.totalorder %s34, 0
      %p208 = por %p206, %p207
      %s210 = sadd.s32 %s209, 1
      %p213 = scmp.eq.s32.totalorder %s28, 1
      %p214 = scmp.ne.s32.totalorder %s209, %s211
      %p215 = scmp.eq.s32.totalorder %s28, 0
      %p216 = por %p214, %p215
      %p217 = scmp.ne.s32.totalorder %s209, %s211
      %p218 = scmp.eq.s32.totalorder %s33, 1
      %p219 = por %p217, %p218
      %p220 = scmp.ne.s32.totalorder %s211, %s212
      %p221 = scmp.eq.s32.totalorder %s33, 0
      %p222 = por %p220, %p221
      %p223 = scmp.ne.s32.totalorder %s211, %s212
      %p224 = scmp.eq.s32.totalorder %s34, 1
      %p225 = por %p223, %p224
      %p227 = scmp.ne.s32.totalorder %s212, %s226
      %p228 = scmp.eq.s32.totalorder %s34, 0
      %p229 = por %p227, %p228
      %s231 = sadd.s32 %s230, 1
      %p234 = scmp.eq.s32.totalorder %s28, 1
      %p235 = scmp.ne.s32.totalorder %s230, %s232
      %p236 = scmp.eq.s32.totalorder %s28, 0
      %p237 = por %p235, %p236
      %p238 = scmp.ne.s32.totalorder %s230, %s232
      %p239 = scmp.eq.s32.totalorder %s33, 1
      %p240 = por %p238, %p239
      %p241 = scmp.ne.s32.totalorder %s232, %s233
      %p242 = scmp.eq.s32.totalorder %s33, 0
      %p243 = por %p241, %p242
      %p244 = scmp.ne.s32.totalorder %s232, %s233
      %p245 = scmp.eq.s32.totalorder %s34, 1
      %p246 = por %p244, %p245
      %p248 = scmp.ne.s32.totalorder %s233, %s247
      %p249 = scmp.eq.s32.totalorder %s34, 0
      %p250 = por %p248, %p249
      %s252 = sadd.s32 %s251, 1
      %p255 = scmp.eq.s32.totalorder %s28, 1
      %p256 = scmp.ne.s32.totalorder %s251, %s253
      %p257 = scmp.eq.s32.totalorder %s28, 0
      %p258 = por %p256, %p257
      %p259 = scmp.ne.s32.totalorder %s251, %s253
      %p260 = scmp.eq.s32.totalorder %s33, 1
      %p261 = por %p259, %p260
      %p262 = scmp.ne.s32.totalorder %s253, %s254
      %p263 = scmp.eq.s32.totalorder %s33, 0
      %p264 = por %p262, %p263
      %p265 = scmp.ne.s32.totalorder %s253, %s254
      %p266 = scmp.eq.s32.totalorder %s34, 1
      %p267 = por %p265, %p266
      %p269 = scmp.ne.s32.totalorder %s254, %s268
      %p270 = scmp.eq.s32.totalorder %s34, 0
      %p271 = por %p269, %p270
      %s272 = ssub.s32 %s28, %s35
      %p273 = scmp.eq.s32.totalorder %s272, 0
      %s275 = sadd.s32 %s274, 1
      %s276 = scalar_select %p273, %s274, %s275
      %p279 = pneg %p273
      %p280 = scmp.eq.s32.totalorder %s28, 1
      %p281 = por %p279, %p280
      %p282 = scmp.ne.s32.totalorder %s274, %s277
      %p283 = scmp.eq.s32.totalorder %s28, 0
      %p284 = por %p282, %p283
      %p285 = scmp.ne.s32.totalorder %s274, %s277
      %p286 = scmp.eq.s32.totalorder %s33, 1
      %p287 = por %p285, %p286
      %p288 = scmp.ne.s32.totalorder %s277, %s278
      %p289 = scmp.eq.s32.totalorder %s33, 0
      %p290 = por %p288, %p289
      %p291 = scmp.ne.s32.totalorder %s277, %s278
      %p292 = scmp.eq.s32.totalorder %s34, 1
      %p293 = por %p291, %p292
      %p295 = scmp.ne.s32.totalorder %s278, %s294
      %p296 = scmp.eq.s32.totalorder %s34, 0
      %p297 = por %p295, %p296
      %p298 = scmp.le.s32.totalorder 1, %s28
      %p299 = scmp.lt.s32.totalorder %s28, 3
      %p300 = pnand %p298, %p299
      %p301 = pneg %p300
      // Predicated region
      $region9: #{tpu_custom_call.1} parent=5 // pred_check
        _
      $region10: #{tpu_custom_call.1} parent=5 // pred_check_branch
        %303 = sbr.rel (%p300) target = $region12
      $region11: #{tpu_custom_call.1} parent=5 // pred_region
        %s304 = ssub.s32 %s28, 1
        // Predicated region
        $region13: #{tpu_custom_call.1} parent=11 // pred_check
          %p305 = pneg %p75
        $region14: #{tpu_custom_call.1} parent=11 // pred_check_branch
          %307 = sbr.rel (%p305) target = $region16
        $region15: #{tpu_custom_call.1} parent=11 // pred_region
          %s309 = ssub.s32 16, 16
          %310 = vsyncadd [#allocation6], %s309
          %s312 = sshll.u32 [#allocation5], 4
          %s313 = int_to_ptr.vmem [resolvable:$true] %s312
          %315 = dma.hbm_to_vmem [thread:$0]  %s1, 16, %s313, [#allocation6]
        $region16: #{tpu_custom_call.1} parent=11 // pred_fallthru
          _
        // Predicated region
        $region17: #{tpu_custom_call.1} parent=11 // pred_check
          %p316 = pneg %p96
        $region18: #{tpu_custom_call.1} parent=11 // pred_check_branch
          %318 = sbr.rel (%p316) target = $region20
        $region19: #{tpu_custom_call.1} parent=11 // pred_region
          %s320 = ssub.s32 16, 16
          %321 = vsyncadd [#allocation6], %s320
          %s323 = sshll.u32 [#allocation7], 4
          %s324 = int_to_ptr.vmem [resolvable:$true] %s323
          %326 = dma.hbm_to_vmem [thread:$0]  %s2, 16, %s324, [#allocation6]
        $region20: #{tpu_custom_call.1} parent=11 // pred_fallthru
          _
        // Predicated region
        $region21: #{tpu_custom_call.1} parent=11 // pred_check
          %p327 = pneg %p117
        $region22: #{tpu_custom_call.1} parent=11 // pred_check_branch
          %329 = sbr.rel (%p327) target = $region24
        $region23: #{tpu_custom_call.1} parent=11 // pred_region
          %s331 = ssub.s32 256, 256
          %332 = vsyncadd [#allocation9], %s331
          %s333 = sshll.u32 [#allocation8], 4
          %s334 = int_to_ptr.vmem [resolvable:$true] %s333
          %339 = dma.hbm_to_vmem [thread:$0]  %s3, 256, %s334, [#allocation9], 64, 64, 4
        $region24: #{tpu_custom_call.1} parent=11 // pred_fallthru
          _
        // Predicated region
        $region25: #{tpu_custom_call.1} parent=11 // pred_check
          %p340 = pneg %p138
        $region26: #{tpu_custom_call.1} parent=11 // pred_check_branch
          %342 = sbr.rel (%p340) target = $region28
        $region27: #{tpu_custom_call.1} parent=11 // pred_region
          %s344 = ssub.s32 256, 256
          %345 = vsyncadd [#allocation9], %s344
          %s346 = sshll.u32 [#allocation10], 4
          %s347 = int_to_ptr.vmem [resolvable:$true] %s346
          %352 = dma.hbm_to_vmem [thread:$0]  %s4, 256, %s347, [#allocation9], 64, 64, 4
        $region28: #{tpu_custom_call.1} parent=11 // pred_fallthru
          _
        // Predicated region
        $region29: #{tpu_custom_call.1} parent=11 // pred_check
          %p353 = pneg %p159
        $region30: #{tpu_custom_call.1} parent=11 // pred_check_branch
          %355 = sbr.rel (%p353) target = $region32
        $region31: #{tpu_custom_call.1} parent=11 // pred_region
          %s357 = ssub.s32 256, 256
          %358 = vsyncadd [#allocation12], %s357
          %s359 = sshll.u32 [#allocation11], 4
          %s360 = int_to_ptr.vmem [resolvable:$true] %s359
          %365 = dma.hbm_to_vmem [thread:$0]  %s5, 256, %s360, [#allocation12], 64, 64, 4
        $region32: #{tpu_custom_call.1} parent=11 // pred_fallthru
          _
        // Predicated region
        $region33: #{tpu_custom_call.1} parent=11 // pred_check
          %p366 = pneg %p180
        $region34: #{tpu_custom_call.1} parent=11 // pred_check_branch
          %368 = sbr.rel (%p366) target = $region36
        $region35: #{tpu_custom_call.1} parent=11 // pred_region
          %s370 = ssub.s32 16, 16
          %371 = vsyncadd [#allocation12], %s370
          %s373 = sshll.u32 [#allocation13], 4
          %s374 = int_to_ptr.vmem [resolvable:$true] %s373
          %376 = dma.hbm_to_vmem [thread:$0]  %s6, 16, %s374, [#allocation12]
        $region36: #{tpu_custom_call.1} parent=11 // pred_fallthru
          _
        // Predicated region
        $region37: #{tpu_custom_call.1} parent=11 // pred_check
          %p377 = pneg %p201
        $region38: #{tpu_custom_call.1} parent=11 // pred_check_branch
          %379 = sbr.rel (%p377) target = $region40
        $region39: #{tpu_custom_call.1} parent=11 // pred_region
          %s381 = ssub.s32 16, 16
          %382 = vsyncadd [#allocation15], %s381
          %s384 = sshll.u32 [#allocation14], 4
          %s385 = int_to_ptr.vmem [resolvable:$true] %s384
          %387 = dma.hbm_to_vmem [thread:$0]  %s7, 16, %s385, [#allocation15]
        $region40: #{tpu_custom_call.1} parent=11 // pred_fallthru
          _
        // Predicated region
        $region41: #{tpu_custom_call.1} parent=11 // pred_check
          %p388 = pneg %p222
        $region42: #{tpu_custom_call.1} parent=11 // pred_check_branch
          %390 = sbr.rel (%p388) target = $region44
        $region43: #{tpu_custom_call.1} parent=11 // pred_region
          %s392 = ssub.s32 16, 16
          %393 = vsyncadd [#allocation15], %s392
          %s395 = sshll.u32 [#allocation16], 4
          %s396 = int_to_ptr.vmem [resolvable:$true] %s395
          %398 = dma.hbm_to_vmem [thread:$0]  %s8, 16, %s396, [#allocation15]
        $region44: #{tpu_custom_call.1} parent=11 // pred_fallthru
          _
        // Predicated region
        $region45: #{tpu_custom_call.1} parent=11 // pred_check
          %p399 = pneg %p243
        $region46: #{tpu_custom_call.1} parent=11 // pred_check_branch
          %401 = sbr.rel (%p399) target = $region48
        $region47: #{tpu_custom_call.1} parent=11 // pred_region
          %s403 = ssub.s32 256, 256
          %404 = vsyncadd [#allocation18], %s403
          %s405 = sshll.u32 [#allocation17], 4
          %s406 = int_to_ptr.vmem [resolvable:$true] %s405
          %411 = dma.hbm_to_vmem [thread:$0]  %s9, 256, %s406, [#allocation18], 64, 64, 4
        $region48: #{tpu_custom_call.1} parent=11 // pred_fallthru
          _
        // Predicated region
        $region49: #{tpu_custom_call.1} parent=11 // pred_check
          %p412 = pneg %p264
        $region50: #{tpu_custom_call.1} parent=11 // pred_check_branch
          %414 = sbr.rel (%p412) target = $region52
        $region51: #{tpu_custom_call.1} parent=11 // pred_region
          %s416 = ssub.s32 16, 16
          %417 = vsyncadd [#allocation18], %s416
          %s419 = sshll.u32 [#allocation19], 4
          %s420 = int_to_ptr.vmem [resolvable:$true] %s419
          %422 = dma.hbm_to_vmem [thread:$0]  %s10, 16, %s420, [#allocation18]
        $region52: #{tpu_custom_call.1} parent=11 // pred_fallthru
          _
      $region12: #{tpu_custom_call.1} parent=5 // pred_fallthru
        _
      %p423 = scmp.lt.s32.totalorder %s28, 2
      // Predicated region
      $region53: #{tpu_custom_call.1} parent=5 // pred_check
        %p424 = pneg %p423
      $region54: #{tpu_custom_call.1} parent=5 // pred_check_branch
        %426 = sbr.rel (%p424) target = $region56
      $region55: #{tpu_custom_call.1} parent=5 // pred_region
        // Predicated region
        $region57: #{tpu_custom_call.1} parent=55 // pred_check
          %p427 = pneg %p48
        $region58: #{tpu_custom_call.1} parent=55 // pred_check_branch
          %429 = sbr.rel (%p427) target = $region60
        $region59: #{tpu_custom_call.1} parent=55 // pred_region
          %s430 = sand.u32 %s38, 1
          %s431 = scalar_lea.sflag [#allocation3], %s430
          %s432 = sand.u32 %s38, 1
          %s433 = smul.addr %s432, 8
          %s434 = scalar_lea.vmem [#allocation2], %s433
          %s436 = ssub.s32 128, 128
          %437 = vsyncadd %s431, %s436
          %s438 = smul.addr %s28, 128
          %s439 = scalar_lea.hbm %s0, %s438
          %s441 = sshll.u32 %s434, 4
          %s442 = int_to_ptr.vmem [resolvable:$true] %s441
          %444 = dma.hbm_to_vmem [thread:$0]  %s439, 128, %s442, %s431
        $region60: #{tpu_custom_call.1} parent=55 // pred_fallthru
          _
      $region56: #{tpu_custom_call.1} parent=5 // pred_fallthru
        _
      %p445 = scmp.le.s32.totalorder 1, %s28
      %p446 = scmp.lt.s32.totalorder %s28, 3
      %p447 = pnand %p445, %p446
      %p448 = pneg %p447
      // Predicated region
      $region61: #{tpu_custom_call.1} parent=5 // pred_check
        _
      $region62: #{tpu_custom_call.1} parent=5 // pred_check_branch
        %450 = sbr.rel (%p447) target = $region64
      $region63: #{tpu_custom_call.1} parent=5 // pred_region
        %s451 = ssub.s32 %s28, 1
        %s452 = sand.u32 %s41, 1
        %s453 = scalar_lea.sflag [#allocation3], %s452
        %s454 = sand.u32 %s41, 1
        %s455 = smul.addr %s454, 8
        %s456 = scalar_lea.vmem [#allocation2], %s455
        // Predicated region
        $region65: #{tpu_custom_call.1} parent=63 // pred_check
          %p457 = pneg %p54
        $region66: #{tpu_custom_call.1} parent=63 // pred_check_branch
          %459 = sbr.rel (%p457) target = $region68
        $region67: #{tpu_custom_call.1} parent=63 // pred_region
          %460 = dma.done %s453, 128
        $region68: #{tpu_custom_call.1} parent=63 // pred_fallthru
          _
        // Predicated region
        $region69: #{tpu_custom_call.1} parent=63 // pred_check
          %p461 = pneg %p75
        $region70: #{tpu_custom_call.1} parent=63 // pred_check_branch
          %463 = sbr.rel (%p461) target = $region72
        $region71: #{tpu_custom_call.1} parent=63 // pred_region
          %464 = dma.done [#allocation6], 16
        $region72: #{tpu_custom_call.1} parent=63 // pred_fallthru
          _
        // Predicated region
        $region73: #{tpu_custom_call.1} parent=63 // pred_check
          %p465 = pneg %p96
        $region74: #{tpu_custom_call.1} parent=63 // pred_check_branch
          %467 = sbr.rel (%p465) target = $region76
        $region75: #{tpu_custom_call.1} parent=63 // pred_region
          %468 = dma.done [#allocation6], 16
        $region76: #{tpu_custom_call.1} parent=63 // pred_fallthru
          _
        // Predicated region
        $region77: #{tpu_custom_call.1} parent=63 // pred_check
          %p469 = pneg %p117
        $region78: #{tpu_custom_call.1} parent=63 // pred_check_branch
          %471 = sbr.rel (%p469) target = $region80
        $region79: #{tpu_custom_call.1} parent=63 // pred_region
          %472 = dma.done [#allocation9], 256
        $region80: #{tpu_custom_call.1} parent=63 // pred_fallthru
          _
        // Predicated region
        $region81: #{tpu_custom_call.1} parent=63 // pred_check
          %p473 = pneg %p138
        $region82: #{tpu_custom_call.1} parent=63 // pred_check_branch
          %475 = sbr.rel (%p473) target = $region84
        $region83: #{tpu_custom_call.1} parent=63 // pred_region
          %476 = dma.done [#allocation9], 256
        $region84: #{tpu_custom_call.1} parent=63 // pred_fallthru
          _
        // Predicated region
        $region85: #{tpu_custom_call.1} parent=63 // pred_check
          %p477 = pneg %p159
        $region86: #{tpu_custom_call.1} parent=63 // pred_check_branch
          %479 = sbr.rel (%p477) target = $region88
        $region87: #{tpu_custom_call.1} parent=63 // pred_region
          %480 = dma.done [#allocation12], 256
        $region88: #{tpu_custom_call.1} parent=63 // pred_fallthru
          _
        // Predicated region
        $region89: #{tpu_custom_call.1} parent=63 // pred_check
          %p481 = pneg %p180
        $region90: #{tpu_custom_call.1} parent=63 // pred_check_branch
          %483 = sbr.rel (%p481) target = $region92
        $region91: #{tpu_custom_call.1} parent=63 // pred_region
          %484 = dma.done [#allocation12], 16
        $region92: #{tpu_custom_call.1} parent=63 // pred_fallthru
          _
        // Predicated region
        $region93: #{tpu_custom_call.1} parent=63 // pred_check
          %p485 = pneg %p201
        $region94: #{tpu_custom_call.1} parent=63 // pred_check_branch
          %487 = sbr.rel (%p485) target = $region96
        $region95: #{tpu_custom_call.1} parent=63 // pred_region
          %488 = dma.done [#allocation15], 16
        $region96: #{tpu_custom_call.1} parent=63 // pred_fallthru
          _
        // Predicated region
        $region97: #{tpu_custom_call.1} parent=63 // pred_check
          %p489 = pneg %p222
        $region98: #{tpu_custom_call.1} parent=63 // pred_check_branch
          %491 = sbr.rel (%p489) target = $region100
        $region99: #{tpu_custom_call.1} parent=63 // pred_region
          %492 = dma.done [#allocation15], 16
        $region100: #{tpu_custom_call.1} parent=63 // pred_fallthru
          _
        // Predicated region
        $region101: #{tpu_custom_call.1} parent=63 // pred_check
          %p493 = pneg %p243
        $region102: #{tpu_custom_call.1} parent=63 // pred_check_branch
          %495 = sbr.rel (%p493) target = $region104
        $region103: #{tpu_custom_call.1} parent=63 // pred_region
          %496 = dma.done [#allocation18], 256
        $region104: #{tpu_custom_call.1} parent=63 // pred_fallthru
          _
        // Predicated region
        $region105: #{tpu_custom_call.1} parent=63 // pred_check
          %p497 = pneg %p264
        $region106: #{tpu_custom_call.1} parent=63 // pred_check_branch
          %499 = sbr.rel (%p497) target = $region108
        $region107: #{tpu_custom_call.1} parent=63 // pred_region
          %500 = dma.done [#allocation18], 16
        $region108: #{tpu_custom_call.1} parent=63 // pred_fallthru
          _
        %s501 = sand.u32 %s41, 1
        %s502 = scalar_lea.sflag [#allocation3], %s501
        %s503 = sand.u32 %s41, 1
        %s504 = smul.addr %s503, 8
        %s505 = scalar_lea.vmem [#allocation2], %s504
        %p506 = pneg %p54
        %p507 = pneg %p51
        %p508 = pneg %p75
        %p509 = pneg %p72
        %p510 = pneg %p96
        %p511 = pneg %p93
        %p512 = pneg %p117
        %p513 = pneg %p114
        %p514 = pneg %p138
        %p515 = pneg %p135
        %p516 = pneg %p159
        %p517 = pneg %p156
        %p518 = pneg %p180
        %p519 = pneg %p177
        %p520 = pneg %p201
        %p521 = pneg %p198
        %p522 = pneg %p222
        %p523 = pneg %p219
        %p524 = pneg %p243
        %p525 = pneg %p240
        %p526 = pneg %p264
        %p527 = pneg %p261
        %p528 = pneg %p290
        %p529 = pneg %p287
        %s530 = sand.u32 %s277, 1
        %s531 = scalar_lea.sflag [#allocation4], %s530
        %s532 = sand.u32 %s277, 1
        %s533 = smul.addr %s532, 8
        %s534 = scalar_lea.vmem [#allocation20], %s533
        %v536 = vld [vmem:[%s456] sm:$0xff]
        %v537 = vld [vmem:[#allocation5] sm:$0x1]
        %v538 = vld [vmem:[#allocation7] sm:$0x1]
        %vm539 = vcmask 261120
        %v540 = vsel %vm539, %v536, 0.0
        %541 = vadd.xlane.f32.xlu0 %v540
        %v542 = vpop.xlane.xlu0 %541
        %v543 = vrcp.pop 32.0
        %v544 = vmul.f32 %v542, %v543
        %v545 = vsub.f32 %v536, %v544
        %v546 = vmul.f32 %v545, %v545
        %v547 = vsel %vm539, %v546, 0.0
        %548 = vadd.xlane.f32.xlu0 %v547
        %v549 = vpop.xlane.xlu0 %548
        %v550 = vmul.f32 %v549, %v543
        %v551 = vadd.f32 %v550, 1e-05
        %v552 = vrsqrt.pop %v551
        %v553 = vmul.f32 %v545, %v552
        %v555 = vlaneseq
        %v556 = vshrl.u32 %v555, 7
        %v557 = vsub.s32 0, %v556
        %v558 = vrot.slane %v537, %v557
        %v560 = vmul.f32 %v553, %v558
        %v562 = vlaneseq
        %v563 = vshrl.u32 %v562, 7
        %v564 = vsub.s32 0, %v563
        %v565 = vrot.slane %v538, %v564
        %v567 = vadd.f32 %v560, %v565
        %v568 = vpack.c.bf16 %v567, %v567
        %v569 = vld [vmem:[#allocation8] sm:$0xf]
        %v570 = vld [vmem:[#allocation8 + $0x4] sm:$0xf]
        %v571 = vld [vmem:[#allocation8 + $0x8] sm:$0xf]
        %v572 = vld [vmem:[#allocation8 + $0xc] sm:$0xf]
        %v573 = vld [vmem:[#allocation13] sm:$0x1]
        %v575 = vlaneseq
        %v576 = vshrl.u32 %v575, 7
        %v577 = vsub.s32 0, %v576
        %v578 = vrot.slane %v573, %v577
        %v584 = vunpack.c.l.b16 %v569
        %v585 = vunpack.c.l.b16 %v570
        %v586 = vunpack.c.l.b16 %v571
        %v587 = vunpack.c.l.b16 %v572
        %v588 = vpack.c.b16 %v585, %v584
        %v589 = vpack.c.b16 %v587, %v586
        %v593 = vsel %vm539, %v568, 0
        %595 = vmatprep.subr.bf16.mxu0 0
        %596 = vmatpush1.bf16.msra.mxu0 %v588
        %597 = vmatprep.subr.bf16.mxu0 0
        %598 = vmatpush1.bf16.msra.mxu0 %v589
        %599 = vmatprep.subr.bf16.mxu0 0
        %600 = vmatpush1.bf16.msra.mxu0 0
        %601 = vmatprep.subr.bf16.mxu0 0
        %602 = vmatpush1.bf16.msra.mxu0 0
        %603 = vmatprep.subr.bf16.mxu0 0
        %604 = vmatpush1.bf16.msra.mxu0 0
        %605 = vmatprep.subr.bf16.mxu0 0
        %606 = vmatpush1.bf16.msra.mxu0 0
        %607 = vmatprep.subr.bf16.mxu0 0
        %608 = vmatpush1.bf16.msra.mxu0 0
        %609 = vmatprep.subr.bf16.mxu0 0
        %610 = vmatpush1.bf16.msra.mxu0 0
        %611 = vmatprep.subr.bf16.mxu0 0
        %612 = vmatpush1.bf16.msra.mxu0 0
        %613 = vmatprep.subr.bf16.mxu0 0
        %614 = vmatpush1.bf16.msra.mxu0 0
        %615 = vmatprep.subr.bf16.mxu0 0
        %616 = vmatpush1.bf16.msra.mxu0 0
        %617 = vmatprep.subr.bf16.mxu0 0
        %618 = vmatpush1.bf16.msra.mxu0 0
        %619 = vmatprep.subr.bf16.mxu0 0
        %620 = vmatpush1.bf16.msra.mxu0 0
        %621 = vmatprep.subr.bf16.mxu0 0
        %622 = vmatpush1.bf16.msra.mxu0 0
        %623 = vmatprep.subr.bf16.mxu0 0
        %624 = vmatpush1.bf16.msra.mxu0 0
        %625 = vmatprep.subr.bf16.mxu0 0
        %626 = vmatpush1.bf16.msra.mxu0 0
        %627 = vmatprep.mubr.bf16.mxu0 0
        %628 = vmatmul.mubr.bf16.gmra.mrb[0].mxu0 %v593
        %v629 = vpop.f32.mrb[0].mxu0
        %v630 = vadd.f32 %v578, %v629
        %v631 = vpop.f32.mrb[0].mxu0
        %v632 = vpop.f32.mrb[0].mxu0
        %v633 = vpop.f32.mrb[0].mxu0
        %634 = vdwg.mxu0
        %v635 = vpack.c.bf16 %v630, %v630
        %637 = vrot.lane.b32.xlu0 %v635, 120
        %v638 = vpop.permute.xlu0 %637
        %639 = vrot.lane.b32.xlu0 %v635, 112
        %v640 = vpop.permute.xlu0 %639
        %641 = vrot.lane.b32.xlu0 %v635, 104
        %v642 = vpop.permute.xlu0 %641
        %v644 = vunpack.c.l.s4 1983009808
        %v645 = vunpack.c.0.s8 %v644
        %v646 = vlaneseq
        %v647 = vshrl.u32 %v646, 7
        %v648 = vsub.s32 %v645, %v647
        %v649 = vrot.slane %v635, %v648
        %v652 = vunpack.c.l.s4 1983009808
        %v653 = vunpack.c.0.s8 %v652
        %v654 = vlaneseq
        %v655 = vshrl.u32 %v654, 7
        %v656 = vsub.s32 %v653, %v655
        %v657 = vrot.slane %v640, %v656
        %v658 = vcombine.low %v649, %v657
        %v659 = vcombine.high %v649, %v657
        %v661 = vunpack.c.l.s4 1934713408
        %v662 = vunpack.c.0.s8 %v661
        %v663 = vlaneseq
        %v664 = vshrl.u32 %v663, 7
        %v665 = vsub.s32 %v662, %v664
        %v666 = vrot.slane %v658, %v665
        %v668 = vunpack.c.l.s4 1934713408
        %v669 = vunpack.c.0.s8 %v668
        %v670 = vlaneseq
        %v671 = vshrl.u32 %v670, 7
        %v672 = vsub.s32 %v669, %v671
        %v673 = vrot.slane %v659, %v672
        %v674 = vcombine.high %v666, 0
        %v675 = vcombine.high %v673, 0
        %v678 = vunpack.c.l.s4 1983009808
        %v679 = vunpack.c.0.s8 %v678
        %v680 = vlaneseq
        %v681 = vshrl.u32 %v680, 7
        %v682 = vsub.s32 %v679, %v681
        %v683 = vrot.slane %v638, %v682
        %v686 = vunpack.c.l.s4 1983009808
        %v687 = vunpack.c.0.s8 %v686
        %v688 = vlaneseq
        %v689 = vshrl.u32 %v688, 7
        %v690 = vsub.s32 %v687, %v689
        %v691 = vrot.slane %v642, %v690
        %v692 = vcombine.low %v683, %v691
        %v693 = vcombine.high %v683, %v691
        %v695 = vunpack.c.l.s4 1934713408
        %v696 = vunpack.c.0.s8 %v695
        %v697 = vlaneseq
        %v698 = vshrl.u32 %v697, 7
        %v699 = vsub.s32 %v696, %v698
        %v700 = vrot.slane %v692, %v699
        %v702 = vunpack.c.l.s4 1934713408
        %v703 = vunpack.c.0.s8 %v702
        %v704 = vlaneseq
        %v705 = vshrl.u32 %v704, 7
        %v706 = vsub.s32 %v703, %v705
        %v707 = vrot.slane %v693, %v706
        %v708 = vcombine.high %v700, 0
        %v709 = vcombine.high %v707, 0
        %v712 = vpack.i.b16 %v700, %v666
        %v714 = vshrl.u32 %v666, 16
        %v715 = vshrl.u32 %v700, 16
        %v716 = vpack.i.b16 %v715, %v714
        %v720 = vpack.i.b16 %v708, %v674
        %v722 = vshrl.u32 %v674, 16
        %v723 = vshrl.u32 %v708, 16
        %v724 = vpack.i.b16 %v723, %v722
        %v728 = vpack.i.b16 %v707, %v673
        %v730 = vshrl.u32 %v673, 16
        %v731 = vshrl.u32 %v707, 16
        %v732 = vpack.i.b16 %v731, %v730
        %v736 = vpack.i.b16 %v709, %v675
        %v738 = vshrl.u32 %v675, 16
        %v739 = vshrl.u32 %v709, 16
        %v740 = vpack.i.b16 %v739, %v738
        %v742 = vcombine.low %v712, %v728
        %v744 = vunpack.c.l.s4 1983009808
        %v745 = vunpack.c.0.s8 %v744
        %v746 = vlaneseq
        %v747 = vshrl.u32 %v746, 7
        %v748 = vsub.s32 %v745, %v747
        %v749 = vrot.slane %v742, %v748
        %v750 = vcombine.low %v720, %v736
        %v752 = vunpack.c.l.s4 1983009808
        %v753 = vunpack.c.0.s8 %v752
        %v754 = vlaneseq
        %v755 = vshrl.u32 %v754, 7
        %v756 = vsub.s32 %v753, %v755
        %v757 = vrot.slane %v750, %v756
        %v758 = vcombine.low %v749, %v757
        %v760 = vunpack.c.l.s4 1934713408
        %v761 = vunpack.c.0.s8 %v760
        %v762 = vlaneseq
        %v763 = vshrl.u32 %v762, 7
        %v764 = vsub.s32 %v761, %v763
        %v765 = vrot.slane %v758, %v764
        %v766 = vcombine.high %v765, 0
        %v767 = vcombine.low %v716, %v732
        %v769 = vunpack.c.l.s4 1983009808
        %v770 = vunpack.c.0.s8 %v769
        %v771 = vlaneseq
        %v772 = vshrl.u32 %v771, 7
        %v773 = vsub.s32 %v770, %v772
        %v774 = vrot.slane %v767, %v773
        %v775 = vcombine.low %v724, %v740
        %v777 = vunpack.c.l.s4 1983009808
        %v778 = vunpack.c.0.s8 %v777
        %v779 = vlaneseq
        %v780 = vshrl.u32 %v779, 7
        %v781 = vsub.s32 %v778, %v780
        %v782 = vrot.slane %v775, %v781
        %v783 = vcombine.low %v774, %v782
        %v785 = vunpack.c.l.s4 1934713408
        %v786 = vunpack.c.0.s8 %v785
        %v787 = vlaneseq
        %v788 = vshrl.u32 %v787, 7
        %v789 = vsub.s32 %v786, %v788
        %v790 = vrot.slane %v783, %v789
        %v791 = vcombine.high %v790, 0
        %v794 = vpack.i.b16 %v790, %v765
        %v795 = vshrl.u32 %v765, 16
        %v796 = vshrl.u32 %v790, 16
        %v797 = vpack.i.b16 %v796, %v795
        %v800 = vpack.i.b16 %v791, %v766
        %v801 = vshrl.u32 %v766, 16
        %v802 = vshrl.u32 %v791, 16
        %v803 = vpack.i.b16 %v802, %v801
        %v804 = vld [vmem:[#allocation10] sm:$0xf]
        %v805 = vld [vmem:[#allocation10 + $0x4] sm:$0xf]
        %v806 = vld [vmem:[#allocation10 + $0x8] sm:$0xf]
        %v807 = vld [vmem:[#allocation10 + $0xc] sm:$0xf]
        %v808 = vld [vmem:[#allocation14] sm:$0x1]
        %v810 = vlaneseq
        %v811 = vshrl.u32 %v810, 7
        %v812 = vsub.s32 0, %v811
        %v813 = vrot.slane %v808, %v812
        %v819 = vunpack.c.l.b16 %v804
        %v820 = vunpack.c.l.b16 %v805
        %v821 = vunpack.c.l.b16 %v806
        %v822 = vunpack.c.l.b16 %v807
        %v823 = vpack.c.b16 %v820, %v819
        %v824 = vpack.c.b16 %v822, %v821
        %827 = vmatprep.subr.bf16.mxu0 0
        %828 = vmatpush1.bf16.msra.mxu0 %v823
        %829 = vmatprep.subr.bf16.mxu0 0
        %830 = vmatpush1.bf16.msra.mxu0 %v824
        %831 = vmatprep.subr.bf16.mxu0 0
        %832 = vmatpush1.bf16.msra.mxu0 0
        %833 = vmatprep.subr.bf16.mxu0 0
        %834 = vmatpush1.bf16.msra.mxu0 0
        %835 = vmatprep.subr.bf16.mxu0 0
        %836 = vmatpush1.bf16.msra.mxu0 0
        %837 = vmatprep.subr.bf16.mxu0 0
        %838 = vmatpush1.bf16.msra.mxu0 0
        %839 = vmatprep.subr.bf16.mxu0 0
        %840 = vmatpush1.bf16.msra.mxu0 0
        %841 = vmatprep.subr.bf16.mxu0 0
        %842 = vmatpush1.bf16.msra.mxu0 0
        %843 = vmatprep.subr.bf16.mxu0 0
        %844 = vmatpush1.bf16.msra.mxu0 0
        %845 = vmatprep.subr.bf16.mxu0 0
        %846 = vmatpush1.bf16.msra.mxu0 0
        %847 = vmatprep.subr.bf16.mxu0 0
        %848 = vmatpush1.bf16.msra.mxu0 0
        %849 = vmatprep.subr.bf16.mxu0 0
        %850 = vmatpush1.bf16.msra.mxu0 0
        %851 = vmatprep.subr.bf16.mxu0 0
        %852 = vmatpush1.bf16.msra.mxu0 0
        %853 = vmatprep.subr.bf16.mxu0 0
        %854 = vmatpush1.bf16.msra.mxu0 0
        %855 = vmatprep.subr.bf16.mxu0 0
        %856 = vmatpush1.bf16.msra.mxu0 0
        %857 = vmatprep.subr.bf16.mxu0 0
        %858 = vmatpush1.bf16.msra.mxu0 0
        %859 = vmatprep.mubr.bf16.mxu0 0
        %860 = vmatmul.mubr.bf16.gmra.mrb[0].mxu0 %v593
        %v861 = vpop.f32.mrb[0].mxu0
        %v862 = vadd.f32 %v813, %v861
        %v863 = vpop.f32.mrb[0].mxu0
        %v864 = vpop.f32.mrb[0].mxu0
        %v865 = vpop.f32.mrb[0].mxu0
        %866 = vdwg.mxu0
        %v867 = vpack.c.bf16 %v862, %v862
        %869 = vrot.lane.b32.xlu0 %v867, 120
        %v870 = vpop.permute.xlu0 %869
        %871 = vrot.lane.b32.xlu0 %v867, 112
        %v872 = vpop.permute.xlu0 %871
        %873 = vrot.lane.b32.xlu0 %v867, 104
        %v874 = vpop.permute.xlu0 %873
        %v876 = vunpack.c.l.s4 1983009808
        %v877 = vunpack.c.0.s8 %v876
        %v878 = vlaneseq
        %v879 = vshrl.u32 %v878, 7
        %v880 = vsub.s32 %v877, %v879
        %v881 = vrot.slane %v867, %v880
        %v884 = vunpack.c.l.s4 1983009808
        %v885 = vunpack.c.0.s8 %v884
        %v886 = vlaneseq
        %v887 = vshrl.u32 %v886, 7
        %v888 = vsub.s32 %v885, %v887
        %v889 = vrot.slane %v872, %v888
        %v890 = vcombine.low %v881, %v889
        %v891 = vcombine.high %v881, %v889
        %v893 = vunpack.c.l.s4 1934713408
        %v894 = vunpack.c.0.s8 %v893
        %v895 = vlaneseq
        %v896 = vshrl.u32 %v895, 7
        %v897 = vsub.s32 %v894, %v896
        %v898 = vrot.slane %v890, %v897
        %v900 = vunpack.c.l.s4 1934713408
        %v901 = vunpack.c.0.s8 %v900
        %v902 = vlaneseq
        %v903 = vshrl.u32 %v902, 7
        %v904 = vsub.s32 %v901, %v903
        %v905 = vrot.slane %v891, %v904
        %v906 = vcombine.high %v898, 0
        %v907 = vcombine.high %v905, 0
        %v910 = vunpack.c.l.s4 1983009808
        %v911 = vunpack.c.0.s8 %v910
        %v912 = vlaneseq
        %v913 = vshrl.u32 %v912, 7
        %v914 = vsub.s32 %v911, %v913
        %v915 = vrot.slane %v870, %v914
        %v918 = vunpack.c.l.s4 1983009808
        %v919 = vunpack.c.0.s8 %v918
        %v920 = vlaneseq
        %v921 = vshrl.u32 %v920, 7
        %v922 = vsub.s32 %v919, %v921
        %v923 = vrot.slane %v874, %v922
        %v924 = vcombine.low %v915, %v923
        %v925 = vcombine.high %v915, %v923
        %v927 = vunpack.c.l.s4 1934713408
        %v928 = vunpack.c.0.s8 %v927
        %v929 = vlaneseq
        %v930 = vshrl.u32 %v929, 7
        %v931 = vsub.s32 %v928, %v930
        %v932 = vrot.slane %v924, %v931
        %v934 = vunpack.c.l.s4 1934713408
        %v935 = vunpack.c.0.s8 %v934
        %v936 = vlaneseq
        %v937 = vshrl.u32 %v936, 7
        %v938 = vsub.s32 %v935, %v937
        %v939 = vrot.slane %v925, %v938
        %v940 = vcombine.high %v932, 0
        %v941 = vcombine.high %v939, 0
        %v944 = vpack.i.b16 %v932, %v898
        %v946 = vshrl.u32 %v898, 16
        %v947 = vshrl.u32 %v932, 16
        %v948 = vpack.i.b16 %v947, %v946
        %v952 = vpack.i.b16 %v940, %v906
        %v954 = vshrl.u32 %v906, 16
        %v955 = vshrl.u32 %v940, 16
        %v956 = vpack.i.b16 %v955, %v954
        %v960 = vpack.i.b16 %v939, %v905
        %v962 = vshrl.u32 %v905, 16
        %v963 = vshrl.u32 %v939, 16
        %v964 = vpack.i.b16 %v963, %v962
        %v968 = vpack.i.b16 %v941, %v907
        %v970 = vshrl.u32 %v907, 16
        %v971 = vshrl.u32 %v941, 16
        %v972 = vpack.i.b16 %v971, %v970
        %v974 = vcombine.low %v944, %v960
        %v976 = vunpack.c.l.s4 1983009808
        %v977 = vunpack.c.0.s8 %v976
        %v978 = vlaneseq
        %v979 = vshrl.u32 %v978, 7
        %v980 = vsub.s32 %v977, %v979
        %v981 = vrot.slane %v974, %v980
        %v982 = vcombine.low %v952, %v968
        %v984 = vunpack.c.l.s4 1983009808
        %v985 = vunpack.c.0.s8 %v984
        %v986 = vlaneseq
        %v987 = vshrl.u32 %v986, 7
        %v988 = vsub.s32 %v985, %v987
        %v989 = vrot.slane %v982, %v988
        %v990 = vcombine.low %v981, %v989
        %v992 = vunpack.c.l.s4 1934713408
        %v993 = vunpack.c.0.s8 %v992
        %v994 = vlaneseq
        %v995 = vshrl.u32 %v994, 7
        %v996 = vsub.s32 %v993, %v995
        %v997 = vrot.slane %v990, %v996
        %v998 = vcombine.high %v997, 0
        %v999 = vcombine.low %v948, %v964
        %v1001 = vunpack.c.l.s4 1983009808
        %v1002 = vunpack.c.0.s8 %v1001
        %v1003 = vlaneseq
        %v1004 = vshrl.u32 %v1003, 7
        %v1005 = vsub.s32 %v1002, %v1004
        %v1006 = vrot.slane %v999, %v1005
        %v1007 = vcombine.low %v956, %v972
        %v1009 = vunpack.c.l.s4 1983009808
        %v1010 = vunpack.c.0.s8 %v1009
        %v1011 = vlaneseq
        %v1012 = vshrl.u32 %v1011, 7
        %v1013 = vsub.s32 %v1010, %v1012
        %v1014 = vrot.slane %v1007, %v1013
        %v1015 = vcombine.low %v1006, %v1014
        %v1017 = vunpack.c.l.s4 1934713408
        %v1018 = vunpack.c.0.s8 %v1017
        %v1019 = vlaneseq
        %v1020 = vshrl.u32 %v1019, 7
        %v1021 = vsub.s32 %v1018, %v1020
        %v1022 = vrot.slane %v1015, %v1021
        %v1023 = vcombine.high %v1022, 0
        %v1026 = vpack.i.b16 %v1022, %v997
        %v1027 = vshrl.u32 %v997, 16
        %v1028 = vshrl.u32 %v1022, 16
        %v1029 = vpack.i.b16 %v1028, %v1027
        %v1032 = vpack.i.b16 %v1023, %v998
        %v1033 = vshrl.u32 %v998, 16
        %v1034 = vshrl.u32 %v1023, 16
        %v1035 = vpack.i.b16 %v1034, %v1033
        %v1036 = vld [vmem:[#allocation11] sm:$0xf]
        %v1037 = vld [vmem:[#allocation11 + $0x4] sm:$0xf]
        %v1038 = vld [vmem:[#allocation11 + $0x8] sm:$0xf]
        %v1039 = vld [vmem:[#allocation11 + $0xc] sm:$0xf]
        %v1040 = vld [vmem:[#allocation16] sm:$0x1]
        %v1042 = vlaneseq
        %v1043 = vshrl.u32 %v1042, 7
        %v1044 = vsub.s32 0, %v1043
        %v1045 = vrot.slane %v1040, %v1044
        %v1051 = vunpack.c.l.b16 %v1036
        %v1052 = vunpack.c.l.b16 %v1037
        %v1053 = vunpack.c.l.b16 %v1038
        %v1054 = vunpack.c.l.b16 %v1039
        %v1055 = vpack.c.b16 %v1052, %v1051
        %v1056 = vpack.c.b16 %v1054, %v1053
        %1059 = vmatprep.subr.bf16.mxu0 0
        %1060 = vmatpush1.bf16.msra.mxu0 %v1055
        %1061 = vmatprep.subr.bf16.mxu0 0
        %1062 = vmatpush1.bf16.msra.mxu0 %v1056
        %1063 = vmatprep.subr.bf16.mxu0 0
        %1064 = vmatpush1.bf16.msra.mxu0 0
        %1065 = vmatprep.subr.bf16.mxu0 0
        %1066 = vmatpush1.bf16.msra.mxu0 0
        %1067 = vmatprep.subr.bf16.mxu0 0
        %1068 = vmatpush1.bf16.msra.mxu0 0
        %1069 = vmatprep.subr.bf16.mxu0 0
        %1070 = vmatpush1.bf16.msra.mxu0 0
        %1071 = vmatprep.subr.bf16.mxu0 0
        %1072 = vmatpush1.bf16.msra.mxu0 0
        %1073 = vmatprep.subr.bf16.mxu0 0
        %1074 = vmatpush1.bf16.msra.mxu0 0
        %1075 = vmatprep.subr.bf16.mxu0 0
        %1076 = vmatpush1.bf16.msra.mxu0 0
        %1077 = vmatprep.subr.bf16.mxu0 0
        %1078 = vmatpush1.bf16.msra.mxu0 0
        %1079 = vmatprep.subr.bf16.mxu0 0
        %1080 = vmatpush1.bf16.msra.mxu0 0
        %1081 = vmatprep.subr.bf16.mxu0 0
        %1082 = vmatpush1.bf16.msra.mxu0 0
        %1083 = vmatprep.subr.bf16.mxu0 0
        %1084 = vmatpush1.bf16.msra.mxu0 0
        %1085 = vmatprep.subr.bf16.mxu0 0
        %1086 = vmatpush1.bf16.msra.mxu0 0
        %1087 = vmatprep.subr.bf16.mxu0 0
        %1088 = vmatpush1.bf16.msra.mxu0 0
        %1089 = vmatprep.subr.bf16.mxu0 0
        %1090 = vmatpush1.bf16.msra.mxu0 0
        %1091 = vmatprep.mubr.bf16.mxu0 0
        %1092 = vmatmul.mubr.bf16.gmra.mrb[0].mxu0 %v593
        %v1093 = vpop.f32.mrb[0].mxu0
        %v1094 = vadd.f32 %v1045, %v1093
        %v1095 = vpop.f32.mrb[0].mxu0
        %v1096 = vpop.f32.mrb[0].mxu0
        %v1097 = vpop.f32.mrb[0].mxu0
        %1098 = vdwg.mxu0
        %v1099 = vpack.c.bf16 %v1094, %v1094
        %1101 = vrot.lane.b32.xlu0 %v1099, 120
        %v1102 = vpop.permute.xlu0 %1101
        %1103 = vrot.lane.b32.xlu0 %v1099, 112
        %v1104 = vpop.permute.xlu0 %1103
        %1105 = vrot.lane.b32.xlu0 %v1099, 104
        %v1106 = vpop.permute.xlu0 %1105
        %v1108 = vunpack.c.l.s4 1983009808
        %v1109 = vunpack.c.0.s8 %v1108
        %v1110 = vlaneseq
        %v1111 = vshrl.u32 %v1110, 7
        %v1112 = vsub.s32 %v1109, %v1111
        %v1113 = vrot.slane %v1099, %v1112
        %v1116 = vunpack.c.l.s4 1983009808
        %v1117 = vunpack.c.0.s8 %v1116
        %v1118 = vlaneseq
        %v1119 = vshrl.u32 %v1118, 7
        %v1120 = vsub.s32 %v1117, %v1119
        %v1121 = vrot.slane %v1104, %v1120
        %v1122 = vcombine.low %v1113, %v1121
        %v1123 = vcombine.high %v1113, %v1121
        %v1125 = vunpack.c.l.s4 1934713408
        %v1126 = vunpack.c.0.s8 %v1125
        %v1127 = vlaneseq
        %v1128 = vshrl.u32 %v1127, 7
        %v1129 = vsub.s32 %v1126, %v1128
        %v1130 = vrot.slane %v1122, %v1129
        %v1132 = vunpack.c.l.s4 1934713408
        %v1133 = vunpack.c.0.s8 %v1132
        %v1134 = vlaneseq
        %v1135 = vshrl.u32 %v1134, 7
        %v1136 = vsub.s32 %v1133, %v1135
        %v1137 = vrot.slane %v1123, %v1136
        %v1138 = vcombine.high %v1130, 0
        %v1139 = vcombine.high %v1137, 0
        %v1142 = vunpack.c.l.s4 1983009808
        %v1143 = vunpack.c.0.s8 %v1142
        %v1144 = vlaneseq
        %v1145 = vshrl.u32 %v1144, 7
        %v1146 = vsub.s32 %v1143, %v1145
        %v1147 = vrot.slane %v1102, %v1146
        %v1150 = vunpack.c.l.s4 1983009808
        %v1151 = vunpack.c.0.s8 %v1150
        %v1152 = vlaneseq
        %v1153 = vshrl.u32 %v1152, 7
        %v1154 = vsub.s32 %v1151, %v1153
        %v1155 = vrot.slane %v1106, %v1154
        %v1156 = vcombine.low %v1147, %v1155
        %v1157 = vcombine.high %v1147, %v1155
        %v1159 = vunpack.c.l.s4 1934713408
        %v1160 = vunpack.c.0.s8 %v1159
        %v1161 = vlaneseq
        %v1162 = vshrl.u32 %v1161, 7
        %v1163 = vsub.s32 %v1160, %v1162
        %v1164 = vrot.slane %v1156, %v1163
        %v1166 = vunpack.c.l.s4 1934713408
        %v1167 = vunpack.c.0.s8 %v1166
        %v1168 = vlaneseq
        %v1169 = vshrl.u32 %v1168, 7
        %v1170 = vsub.s32 %v1167, %v1169
        %v1171 = vrot.slane %v1157, %v1170
        %v1172 = vcombine.high %v1164, 0
        %v1173 = vcombine.high %v1171, 0
        %v1176 = vpack.i.b16 %v1164, %v1130
        %v1178 = vshrl.u32 %v1130, 16
        %v1179 = vshrl.u32 %v1164, 16
        %v1180 = vpack.i.b16 %v1179, %v1178
        %v1184 = vpack.i.b16 %v1172, %v1138
        %v1186 = vshrl.u32 %v1138, 16
        %v1187 = vshrl.u32 %v1172, 16
        %v1188 = vpack.i.b16 %v1187, %v1186
        %v1192 = vpack.i.b16 %v1171, %v1137
        %v1194 = vshrl.u32 %v1137, 16
        %v1195 = vshrl.u32 %v1171, 16
        %v1196 = vpack.i.b16 %v1195, %v1194
        %v1200 = vpack.i.b16 %v1173, %v1139
        %v1202 = vshrl.u32 %v1139, 16
        %v1203 = vshrl.u32 %v1173, 16
        %v1204 = vpack.i.b16 %v1203, %v1202
        %v1206 = vcombine.low %v1176, %v1192
        %v1208 = vunpack.c.l.s4 1983009808
        %v1209 = vunpack.c.0.s8 %v1208
        %v1210 = vlaneseq
        %v1211 = vshrl.u32 %v1210, 7
        %v1212 = vsub.s32 %v1209, %v1211
        %v1213 = vrot.slane %v1206, %v1212
        %v1214 = vcombine.low %v1184, %v1200
        %v1216 = vunpack.c.l.s4 1983009808
        %v1217 = vunpack.c.0.s8 %v1216
        %v1218 = vlaneseq
        %v1219 = vshrl.u32 %v1218, 7
        %v1220 = vsub.s32 %v1217, %v1219
        %v1221 = vrot.slane %v1214, %v1220
        %v1222 = vcombine.low %v1213, %v1221
        %v1224 = vunpack.c.l.s4 1934713408
        %v1225 = vunpack.c.0.s8 %v1224
        %v1226 = vlaneseq
        %v1227 = vshrl.u32 %v1226, 7
        %v1228 = vsub.s32 %v1225, %v1227
        %v1229 = vrot.slane %v1222, %v1228
        %v1230 = vcombine.high %v1229, 0
        %v1231 = vcombine.low %v1180, %v1196
        %v1233 = vunpack.c.l.s4 1983009808
        %v1234 = vunpack.c.0.s8 %v1233
        %v1235 = vlaneseq
        %v1236 = vshrl.u32 %v1235, 7
        %v1237 = vsub.s32 %v1234, %v1236
        %v1238 = vrot.slane %v1231, %v1237
        %v1239 = vcombine.low %v1188, %v1204
        %v1241 = vunpack.c.l.s4 1983009808
        %v1242 = vunpack.c.0.s8 %v1241
        %v1243 = vlaneseq
        %v1244 = vshrl.u32 %v1243, 7
        %v1245 = vsub.s32 %v1242, %v1244
        %v1246 = vrot.slane %v1239, %v1245
        %v1247 = vcombine.low %v1238, %v1246
        %v1249 = vunpack.c.l.s4 1934713408
        %v1250 = vunpack.c.0.s8 %v1249
        %v1251 = vlaneseq
        %v1252 = vshrl.u32 %v1251, 7
        %v1253 = vsub.s32 %v1250, %v1252
        %v1254 = vrot.slane %v1247, %v1253
        %v1255 = vcombine.high %v1254, 0
        %v1258 = vpack.i.b16 %v1254, %v1229
        %v1259 = vshrl.u32 %v1229, 16
        %v1260 = vshrl.u32 %v1254, 16
        %v1261 = vpack.i.b16 %v1260, %v1259
        %v1264 = vpack.i.b16 %v1255, %v1230
        %v1265 = vshrl.u32 %v1230, 16
        %v1266 = vshrl.u32 %v1255, 16
        %v1267 = vpack.i.b16 %v1266, %v1265
        %v1268 = vlaneseq
        %v1269 = vshrl.u32 %v1268, 7
        %vm1270 = vcmask 64512
        %v1272 = vsel %vm1270, %v794, 0
        %v1275 = vsel %vm1270, %v1026, 0
        %1277 = vmatprep.subr.bf16.mxu0 0
        %1278 = vmatpush1.bf16.xpose.msra.mxu0 %v1275
        %1279 = vmatprep.subr.bf16.mxu0 0
        %1280 = vmatpush1.bf16.xpose.msra.mxu0 0
        %1281 = vmatprep.subr.bf16.mxu0 0
        %1282 = vmatpush1.bf16.xpose.msra.mxu0 0
        %1283 = vmatprep.subr.bf16.mxu0 0
        %1284 = vmatpush1.bf16.xpose.msra.mxu0 0
        %1285 = vmatprep.subr.bf16.mxu0 0
        %1286 = vmatpush1.bf16.xpose.msra.mxu0 0
        %1287 = vmatprep.subr.bf16.mxu0 0
        %1288 = vmatpush1.bf16.xpose.msra.mxu0 0
        %1289 = vmatprep.subr.bf16.mxu0 0
        %1290 = vmatpush1.bf16.xpose.msra.mxu0 0
        %1291 = vmatprep.subr.bf16.mxu0 0
        %1292 = vmatpush1.bf16.xpose.msra.mxu0 0
        %1293 = vmatprep.subr.bf16.mxu0 0
        %1294 = vmatpush1.bf16.xpose.msra.mxu0 0
        %1295 = vmatprep.subr.bf16.mxu0 0
        %1296 = vmatpush1.bf16.xpose.msra.mxu0 0
        %1297 = vmatprep.subr.bf16.mxu0 0
        %1298 = vmatpush1.bf16.xpose.msra.mxu0 0
        %1299 = vmatprep.subr.bf16.mxu0 0
        %1300 = vmatpush1.bf16.xpose.msra.mxu0 0
        %1301 = vmatprep.subr.bf16.mxu0 0
        %1302 = vmatpush1.bf16.xpose.msra.mxu0 0
        %1303 = vmatprep.subr.bf16.mxu0 0
        %1304 = vmatpush1.bf16.xpose.msra.mxu0 0
        %1305 = vmatprep.subr.bf16.mxu0 0
        %1306 = vmatpush1.bf16.xpose.msra.mxu0 0
        %1307 = vmatprep.subr.bf16.mxu0 0
        %1308 = vmatpush1.bf16.xpose.msra.mxu0 0
        %1309 = vmatprep.mubr.bf16.mxu0 0
        %1310 = vmatmul.mubr.bf16.gmra.mrb[0].mxu0 %v1272
        %v1311 = vpop.f32.mrb[0].mxu0
        %v1312 = vadd.f32 0.0, %v1311
        %v1313 = vpop.f32.mrb[0].mxu0
        %v1314 = vpop.f32.mrb[0].mxu0
        %v1315 = vpop.f32.mrb[0].mxu0
        %1316 = vdwg.mxu0
        %v1318 = vsel %vm1270, %v797, 0
        %v1321 = vsel %vm1270, %v1029, 0
        %1323 = vmatprep.subr.bf16.mxu0 0
        %1324 = vmatpush1.bf16.xpose.msra.mxu0 %v1321
        %1325 = vmatprep.subr.bf16.mxu0 0
        %1326 = vmatpush1.bf16.xpose.msra.mxu0 0
        %1327 = vmatprep.subr.bf16.mxu0 0
        %1328 = vmatpush1.bf16.xpose.msra.mxu0 0
        %1329 = vmatprep.subr.bf16.mxu0 0
        %1330 = vmatpush1.bf16.xpose.msra.mxu0 0
        %1331 = vmatprep.subr.bf16.mxu0 0
        %1332 = vmatpush1.bf16.xpose.msra.mxu0 0
        %1333 = vmatprep.subr.bf16.mxu0 0
        %1334 = vmatpush1.bf16.xpose.msra.mxu0 0
        %1335 = vmatprep.subr.bf16.mxu0 0
        %1336 = vmatpush1.bf16.xpose.msra.mxu0 0
        %1337 = vmatprep.subr.bf16.mxu0 0
        %1338 = vmatpush1.bf16.xpose.msra.mxu0 0
        %1339 = vmatprep.subr.bf16.mxu0 0
        %1340 = vmatpush1.bf16.xpose.msra.mxu0 0
        %1341 = vmatprep.subr.bf16.mxu0 0
        %1342 = vmatpush1.bf16.xpose.msra.mxu0 0
        %1343 = vmatprep.subr.bf16.mxu0 0
        %1344 = vmatpush1.bf16.xpose.msra.mxu0 0
        %1345 = vmatprep.subr.bf16.mxu0 0
        %1346 = vmatpush1.bf16.xpose.msra.mxu0 0
        %1347 = vmatprep.subr.bf16.mxu0 0
        %1348 = vmatpush1.bf16.xpose.msra.mxu0 0
        %1349 = vmatprep.subr.bf16.mxu0 0
        %1350 = vmatpush1.bf16.xpose.msra.mxu0 0
        %1351 = vmatprep.subr.bf16.mxu0 0
        %1352 = vmatpush1.bf16.xpose.msra.mxu0 0
        %1353 = vmatprep.subr.bf16.mxu0 0
        %1354 = vmatpush1.bf16.xpose.msra.mxu0 0
        %1355 = vmatprep.mubr.bf16.mxu0 0
        %1356 = vmatmul.mubr.bf16.gmra.mrb[0].mxu0 %v1318
        %v1357 = vpop.f32.mrb[0].mxu0
        %v1358 = vadd.f32 0.0, %v1357
        %v1359 = vpop.f32.mrb[0].mxu0
        %v1360 = vpop.f32.mrb[0].mxu0
        %v1361 = vpop.f32.mrb[0].mxu0
        %1362 = vdwg.mxu0
        %v1364 = vsel %vm1270, %v800, 0
        %v1367 = vsel %vm1270, %v1032, 0
        %1369 = vmatprep.subr.bf16.mxu0 0
        %1370 = vmatpush1.bf16.xpose.msra.mxu0 %v1367
        %1371 = vmatprep.subr.bf16.mxu0 0
        %1372 = vmatpush1.bf16.xpose.msra.mxu0 0
        %1373 = vmatprep.subr.bf16.mxu0 0
        %1374 = vmatpush1.bf16.xpose.msra.mxu0 0
        %1375 = vmatprep.subr.bf16.mxu0 0
        %1376 = vmatpush1.bf16.xpose.msra.mxu0 0
        %1377 = vmatprep.subr.bf16.mxu0 0
        %1378 = vmatpush1.bf16.xpose.msra.mxu0 0
        %1379 = vmatprep.subr.bf16.mxu0 0
        %1380 = vmatpush1.bf16.xpose.msra.mxu0 0
        %1381 = vmatprep.subr.bf16.mxu0 0
        %1382 = vmatpush1.bf16.xpose.msra.mxu0 0
        %1383 = vmatprep.subr.bf16.mxu0 0
        %1384 = vmatpush1.bf16.xpose.msra.mxu0 0
        %1385 = vmatprep.subr.bf16.mxu0 0
        %1386 = vmatpush1.bf16.xpose.msra.mxu0 0
        %1387 = vmatprep.subr.bf16.mxu0 0
        %1388 = vmatpush1.bf16.xpose.msra.mxu0 0
        %1389 = vmatprep.subr.bf16.mxu0 0
        %1390 = vmatpush1.bf16.xpose.msra.mxu0 0
        %1391 = vmatprep.subr.bf16.mxu0 0
        %1392 = vmatpush1.bf16.xpose.msra.mxu0 0
        %1393 = vmatprep.subr.bf16.mxu0 0
        %1394 = vmatpush1.bf16.xpose.msra.mxu0 0
        %1395 = vmatprep.subr.bf16.mxu0 0
        %1396 = vmatpush1.bf16.xpose.msra.mxu0 0
        %1397 = vmatprep.subr.bf16.mxu0 0
        %1398 = vmatpush1.bf16.xpose.msra.mxu0 0
        %1399 = vmatprep.subr.bf16.mxu0 0
        %1400 = vmatpush1.bf16.xpose.msra.mxu0 0
        %1401 = vmatprep.mubr.bf16.mxu0 0
        %1402 = vmatmul.mubr.bf16.gmra.mrb[0].mxu0 %v1364
        %v1403 = vpop.f32.mrb[0].mxu0
        %v1404 = vadd.f32 0.0, %v1403
        %v1405 = vpop.f32.mrb[0].mxu0
        %v1406 = vpop.f32.mrb[0].mxu0
        %v1407 = vpop.f32.mrb[0].mxu0
        %1408 = vdwg.mxu0
        %v1410 = vsel %vm1270, %v803, 0
        %v1413 = vsel %vm1270, %v1035, 0
        %1415 = vmatprep.subr.bf16.mxu0 0
        %1416 = vmatpush1.bf16.xpose.msra.mxu0 %v1413
        %1417 = vmatprep.subr.bf16.mxu0 0
        %1418 = vmatpush1.bf16.xpose.msra.mxu0 0
        %1419 = vmatprep.subr.bf16.mxu0 0
        %1420 = vmatpush1.bf16.xpose.msra.mxu0 0
        %1421 = vmatprep.subr.bf16.mxu0 0
        %1422 = vmatpush1.bf16.xpose.msra.mxu0 0
        %1423 = vmatprep.subr.bf16.mxu0 0
        %1424 = vmatpush1.bf16.xpose.msra.mxu0 0
        %1425 = vmatprep.subr.bf16.mxu0 0
        %1426 = vmatpush1.bf16.xpose.msra.mxu0 0
        %1427 = vmatprep.subr.bf16.mxu0 0
        %1428 = vmatpush1.bf16.xpose.msra.mxu0 0
        %1429 = vmatprep.subr.bf16.mxu0 0
        %1430 = vmatpush1.bf16.xpose.msra.mxu0 0
        %1431 = vmatprep.subr.bf16.mxu0 0
        %1432 = vmatpush1.bf16.xpose.msra.mxu0 0
        %1433 = vmatprep.subr.bf16.mxu0 0
        %1434 = vmatpush1.bf16.xpose.msra.mxu0 0
        %1435 = vmatprep.subr.bf16.mxu0 0
        %1436 = vmatpush1.bf16.xpose.msra.mxu0 0
        %1437 = vmatprep.subr.bf16.mxu0 0
        %1438 = vmatpush1.bf16.xpose.msra.mxu0 0
        %1439 = vmatprep.subr.bf16.mxu0 0
        %1440 = vmatpush1.bf16.xpose.msra.mxu0 0
        %1441 = vmatprep.subr.bf16.mxu0 0
        %1442 = vmatpush1.bf16.xpose.msra.mxu0 0
        %1443 = vmatprep.subr.bf16.mxu0 0
        %1444 = vmatpush1.bf16.xpose.msra.mxu0 0
        %1445 = vmatprep.subr.bf16.mxu0 0
        %1446 = vmatpush1.bf16.xpose.msra.mxu0 0
        %1447 = vmatprep.mubr.bf16.mxu0 0
        %1448 = vmatmul.mubr.bf16.gmra.mrb[0].mxu0 %v1410
        %v1449 = vpop.f32.mrb[0].mxu0
        %v1450 = vadd.f32 0.0, %v1449
        %v1451 = vpop.f32.mrb[0].mxu0
        %v1452 = vpop.f32.mrb[0].mxu0
        %v1453 = vpop.f32.mrb[0].mxu0
        %1454 = vdwg.mxu0
        %v1455 = vmul.f32 %v1312, 0.35355338
        %v1456 = vmul.f32 %v1358, 0.35355338
        %v1457 = vmul.f32 %v1404, 0.35355338
        %v1458 = vmul.f32 %v1450, 0.35355338
        %v1459 = vlaneseq
        %v1460 = vand.u32 %v1459, 127
        %vm1461 = vcmp.le.s32.totalorder %v1460, %v1269
        %v1462 = vsel %vm1461, %v1455, -1e+10
        %v1463 = vsel %vm1461, %v1456, -1e+10
        %v1464 = vsel %vm1461, %v1457, -1e+10
        %v1465 = vsel %vm1461, %v1458, -1e+10
        %v1466 = vsel %vm1270, %v1462, -inf
        %1467 = vmax.xlane.f32.xlu0 %v1466
        %v1468 = vpop.xlane.xlu0 %1467
        %v1469 = vsel %vm1270, %v1463, -inf
        %1470 = vmax.xlane.f32.xlu0 %v1469
        %v1471 = vpop.xlane.xlu0 %1470
        %v1472 = vsel %vm1270, %v1464, -inf
        %1473 = vmax.xlane.f32.xlu0 %v1472
        %v1474 = vpop.xlane.xlu0 %1473
        %v1475 = vsel %vm1270, %v1465, -inf
        %1476 = vmax.xlane.f32.xlu0 %v1475
        %v1477 = vpop.xlane.xlu0 %1476
        %v1478 = vmax.f32 %v1468, -1e+30
        %v1479 = vmax.f32 %v1471, -1e+30
        %v1480 = vmax.f32 %v1474, -1e+30
        %v1481 = vmax.f32 %v1477, -1e+30
        %v1482 = vsub.f32 -1e+30, %v1478
        %v1483 = vsub.f32 -1e+30, %v1479
        %v1484 = vsub.f32 -1e+30, %v1480
        %v1485 = vsub.f32 -1e+30, %v1481
        %v1486 = vmul.f32 %v1482, 1.442695
        %v1487 = vpow.pop %v1486
        %v1488 = vmul.f32 %v1483, 1.442695
        %v1489 = vpow.pop %v1488
        %v1490 = vmul.f32 %v1484, 1.442695
        %v1491 = vpow.pop %v1490
        %v1492 = vmul.f32 %v1485, 1.442695
        %v1493 = vpow.pop %v1492
        %v1494 = vsub.f32 %v1462, %v1478
        %v1495 = vsub.f32 %v1463, %v1479
        %v1496 = vsub.f32 %v1464, %v1480
        %v1497 = vsub.f32 %v1465, %v1481
        %v1498 = vmul.f32 %v1494, 1.442695
        %v1499 = vpow.pop %v1498
        %v1500 = vmul.f32 %v1495, 1.442695
        %v1501 = vpow.pop %v1500
        %v1502 = vmul.f32 %v1496, 1.442695
        %v1503 = vpow.pop %v1502
        %v1504 = vmul.f32 %v1497, 1.442695
        %v1505 = vpow.pop %v1504
        %v1506 = vmul.f32 %v1487, 0.0
        %v1507 = vmul.f32 %v1489, 0.0
        %v1508 = vmul.f32 %v1491, 0.0
        %v1509 = vmul.f32 %v1493, 0.0
        %v1510 = vsel %vm1270, %v1499, 0.0
        %1511 = vadd.xlane.f32.xlu0 %v1510
        %v1512 = vpop.xlane.xlu0 %1511
        %v1513 = vsel %vm1270, %v1501, 0.0
        %1514 = vadd.xlane.f32.xlu0 %v1513
        %v1515 = vpop.xlane.xlu0 %1514
        %v1516 = vsel %vm1270, %v1503, 0.0
        %1517 = vadd.xlane.f32.xlu0 %v1516
        %v1518 = vpop.xlane.xlu0 %1517
        %v1519 = vsel %vm1270, %v1505, 0.0
        %1520 = vadd.xlane.f32.xlu0 %v1519
        %v1521 = vpop.xlane.xlu0 %1520
        %v1522 = vadd.f32 %v1506, %v1512
        %v1523 = vadd.f32 %v1507, %v1515
        %v1524 = vadd.f32 %v1508, %v1518
        %v1525 = vadd.f32 %v1509, %v1521
        %v1526 = vpack.c.bf16 %v1499, %v1499
        %v1527 = vpack.c.bf16 %v1501, %v1501
        %v1528 = vpack.c.bf16 %v1503, %v1503
        %v1529 = vpack.c.bf16 %v1505, %v1505
        %v1531 = vsel %vm1270, %v1526, 0
        %vm1533 = vcmask 1043456
        %v1535 = vsel %vm1533, %v1258, 0
        %1537 = vmatprep.subr.bf16.mxu0 0
        %1538 = vmatpush1.bf16.msra.mxu0 %v1535
        %1539 = vmatprep.subr.bf16.mxu0 0
        %1540 = vmatpush1.bf16.msra.mxu0 0
        %1541 = vmatprep.subr.bf16.mxu0 0
        %1542 = vmatpush1.bf16.msra.mxu0 0
        %1543 = vmatprep.subr.bf16.mxu0 0
        %1544 = vmatpush1.bf16.msra.mxu0 0
        %1545 = vmatprep.subr.bf16.mxu0 0
        %1546 = vmatpush1.bf16.msra.mxu0 0
        %1547 = vmatprep.subr.bf16.mxu0 0
        %1548 = vmatpush1.bf16.msra.mxu0 0
        %1549 = vmatprep.subr.bf16.mxu0 0
        %1550 = vmatpush1.bf16.msra.mxu0 0
        %1551 = vmatprep.subr.bf16.mxu0 0
        %1552 = vmatpush1.bf16.msra.mxu0 0
        %1553 = vmatprep.subr.bf16.mxu0 0
        %1554 = vmatpush1.bf16.msra.mxu0 0
        %1555 = vmatprep.subr.bf16.mxu0 0
        %1556 = vmatpush1.bf16.msra.mxu0 0
        %1557 = vmatprep.subr.bf16.mxu0 0
        %1558 = vmatpush1.bf16.msra.mxu0 0
        %1559 = vmatprep.subr.bf16.mxu0 0
        %1560 = vmatpush1.bf16.msra.mxu0 0
        %1561 = vmatprep.subr.bf16.mxu0 0
        %1562 = vmatpush1.bf16.msra.mxu0 0
        %1563 = vmatprep.subr.bf16.mxu0 0
        %1564 = vmatpush1.bf16.msra.mxu0 0
        %1565 = vmatprep.subr.bf16.mxu0 0
        %1566 = vmatpush1.bf16.msra.mxu0 0
        %1567 = vmatprep.subr.bf16.mxu0 0
        %1568 = vmatpush1.bf16.msra.mxu0 0
        %1569 = vmatprep.mubr.bf16.mxu0 0
        %1570 = vmatmul.mubr.bf16.gmra.mrb[0].mxu0 %v1531
        %v1571 = vpop.f32.mrb[0].mxu0
        %v1572 = vadd.f32 0.0, %v1571
        %v1573 = vpop.f32.mrb[0].mxu0
        %v1574 = vpop.f32.mrb[0].mxu0
        %v1575 = vpop.f32.mrb[0].mxu0
        %1576 = vdwg.mxu0
        %v1578 = vsel %vm1270, %v1527, 0
        %v1581 = vsel %vm1533, %v1261, 0
        %1583 = vmatprep.subr.bf16.mxu0 0
        %1584 = vmatpush1.bf16.msra.mxu0 %v1581
        %1585 = vmatprep.subr.bf16.mxu0 0
        %1586 = vmatpush1.bf16.msra.mxu0 0
        %1587 = vmatprep.subr.bf16.mxu0 0
        %1588 = vmatpush1.bf16.msra.mxu0 0
        %1589 = vmatprep.subr.bf16.mxu0 0
        %1590 = vmatpush1.bf16.msra.mxu0 0
        %1591 = vmatprep.subr.bf16.mxu0 0
        %1592 = vmatpush1.bf16.msra.mxu0 0
        %1593 = vmatprep.subr.bf16.mxu0 0
        %1594 = vmatpush1.bf16.msra.mxu0 0
        %1595 = vmatprep.subr.bf16.mxu0 0
        %1596 = vmatpush1.bf16.msra.mxu0 0
        %1597 = vmatprep.subr.bf16.mxu0 0
        %1598 = vmatpush1.bf16.msra.mxu0 0
        %1599 = vmatprep.subr.bf16.mxu0 0
        %1600 = vmatpush1.bf16.msra.mxu0 0
        %1601 = vmatprep.subr.bf16.mxu0 0
        %1602 = vmatpush1.bf16.msra.mxu0 0
        %1603 = vmatprep.subr.bf16.mxu0 0
        %1604 = vmatpush1.bf16.msra.mxu0 0
        %1605 = vmatprep.subr.bf16.mxu0 0
        %1606 = vmatpush1.bf16.msra.mxu0 0
        %1607 = vmatprep.subr.bf16.mxu0 0
        %1608 = vmatpush1.bf16.msra.mxu0 0
        %1609 = vmatprep.subr.bf16.mxu0 0
        %1610 = vmatpush1.bf16.msra.mxu0 0
        %1611 = vmatprep.subr.bf16.mxu0 0
        %1612 = vmatpush1.bf16.msra.mxu0 0
        %1613 = vmatprep.subr.bf16.mxu0 0
        %1614 = vmatpush1.bf16.msra.mxu0 0
        %1615 = vmatprep.mubr.bf16.mxu0 0
        %1616 = vmatmul.mubr.bf16.gmra.mrb[0].mxu0 %v1578
        %v1617 = vpop.f32.mrb[0].mxu0
        %v1618 = vadd.f32 0.0, %v1617
        %v1619 = vpop.f32.mrb[0].mxu0
        %v1620 = vpop.f32.mrb[0].mxu0
        %v1621 = vpop.f32.mrb[0].mxu0
        %1622 = vdwg.mxu0
        %v1624 = vsel %vm1270, %v1528, 0
        %v1627 = vsel %vm1533, %v1264, 0
        %1629 = vmatprep.subr.bf16.mxu0 0
        %1630 = vmatpush1.bf16.msra.mxu0 %v1627
        %1631 = vmatprep.subr.bf16.mxu0 0
        %1632 = vmatpush1.bf16.msra.mxu0 0
        %1633 = vmatprep.subr.bf16.mxu0 0
        %1634 = vmatpush1.bf16.msra.mxu0 0
        %1635 = vmatprep.subr.bf16.mxu0 0
        %1636 = vmatpush1.bf16.msra.mxu0 0
        %1637 = vmatprep.subr.bf16.mxu0 0
        %1638 = vmatpush1.bf16.msra.mxu0 0
        %1639 = vmatprep.subr.bf16.mxu0 0
        %1640 = vmatpush1.bf16.msra.mxu0 0
        %1641 = vmatprep.subr.bf16.mxu0 0
        %1642 = vmatpush1.bf16.msra.mxu0 0
        %1643 = vmatprep.subr.bf16.mxu0 0
        %1644 = vmatpush1.bf16.msra.mxu0 0
        %1645 = vmatprep.subr.bf16.mxu0 0
        %1646 = vmatpush1.bf16.msra.mxu0 0
        %1647 = vmatprep.subr.bf16.mxu0 0
        %1648 = vmatpush1.bf16.msra.mxu0 0
        %1649 = vmatprep.subr.bf16.mxu0 0
        %1650 = vmatpush1.bf16.msra.mxu0 0
        %1651 = vmatprep.subr.bf16.mxu0 0
        %1652 = vmatpush1.bf16.msra.mxu0 0
        %1653 = vmatprep.subr.bf16.mxu0 0
        %1654 = vmatpush1.bf16.msra.mxu0 0
        %1655 = vmatprep.subr.bf16.mxu0 0
        %1656 = vmatpush1.bf16.msra.mxu0 0
        %1657 = vmatprep.subr.bf16.mxu0 0
        %1658 = vmatpush1.bf16.msra.mxu0 0
        %1659 = vmatprep.subr.bf16.mxu0 0
        %1660 = vmatpush1.bf16.msra.mxu0 0
        %1661 = vmatprep.mubr.bf16.mxu0 0
        %1662 = vmatmul.mubr.bf16.gmra.mrb[0].mxu0 %v1624
        %v1663 = vpop.f32.mrb[0].mxu0
        %v1664 = vadd.f32 0.0, %v1663
        %v1665 = vpop.f32.mrb[0].mxu0
        %v1666 = vpop.f32.mrb[0].mxu0
        %v1667 = vpop.f32.mrb[0].mxu0
        %1668 = vdwg.mxu0
        %v1670 = vsel %vm1270, %v1529, 0
        %v1673 = vsel %vm1533, %v1267, 0
        %1675 = vmatprep.subr.bf16.mxu0 0
        %1676 = vmatpush1.bf16.msra.mxu0 %v1673
        %1677 = vmatprep.subr.bf16.mxu0 0
        %1678 = vmatpush1.bf16.msra.mxu0 0
        %1679 = vmatprep.subr.bf16.mxu0 0
        %1680 = vmatpush1.bf16.msra.mxu0 0
        %1681 = vmatprep.subr.bf16.mxu0 0
        %1682 = vmatpush1.bf16.msra.mxu0 0
        %1683 = vmatprep.subr.bf16.mxu0 0
        %1684 = vmatpush1.bf16.msra.mxu0 0
        %1685 = vmatprep.subr.bf16.mxu0 0
        %1686 = vmatpush1.bf16.msra.mxu0 0
        %1687 = vmatprep.subr.bf16.mxu0 0
        %1688 = vmatpush1.bf16.msra.mxu0 0
        %1689 = vmatprep.subr.bf16.mxu0 0
        %1690 = vmatpush1.bf16.msra.mxu0 0
        %1691 = vmatprep.subr.bf16.mxu0 0
        %1692 = vmatpush1.bf16.msra.mxu0 0
        %1693 = vmatprep.subr.bf16.mxu0 0
        %1694 = vmatpush1.bf16.msra.mxu0 0
        %1695 = vmatprep.subr.bf16.mxu0 0
        %1696 = vmatpush1.bf16.msra.mxu0 0
        %1697 = vmatprep.subr.bf16.mxu0 0
        %1698 = vmatpush1.bf16.msra.mxu0 0
        %1699 = vmatprep.subr.bf16.mxu0 0
        %1700 = vmatpush1.bf16.msra.mxu0 0
        %1701 = vmatprep.subr.bf16.mxu0 0
        %1702 = vmatpush1.bf16.msra.mxu0 0
        %1703 = vmatprep.subr.bf16.mxu0 0
        %1704 = vmatpush1.bf16.msra.mxu0 0
        %1705 = vmatprep.subr.bf16.mxu0 0
        %1706 = vmatpush1.bf16.msra.mxu0 0
        %1707 = vmatprep.mubr.bf16.mxu0 0
        %1708 = vmatmul.mubr.bf16.gmra.mrb[0].mxu0 %v1670
        %v1709 = vpop.f32.mrb[0].mxu0
        %v1710 = vadd.f32 0.0, %v1709
        %v1711 = vpop.f32.mrb[0].mxu0
        %v1712 = vpop.f32.mrb[0].mxu0
        %v1713 = vpop.f32.mrb[0].mxu0
        %1714 = vdwg.mxu0
        %v1715 = vadd.f32 %v1506, %v1572
        %v1716 = vadd.f32 %v1507, %v1618
        %v1717 = vadd.f32 %v1508, %v1664
        %v1718 = vadd.f32 %v1509, %v1710
        %v1719 = vrcp.pop %v1522
        %v1720 = vmul.f32 %v1715, %v1719
        %v1721 = vrcp.pop %v1523
        %v1722 = vmul.f32 %v1716, %v1721
        %v1723 = vrcp.pop %v1524
        %v1724 = vmul.f32 %v1717, %v1723
        %v1725 = vrcp.pop %v1525
        %v1726 = vmul.f32 %v1718, %v1725
        %v1727 = vcombine.low %v1720, %v1724
        %v1728 = vcombine.high %v1720, %v1724
        %v1730 = vunpack.c.l.s4 1983009808
        %v1731 = vunpack.c.0.s8 %v1730
        %v1732 = vlaneseq
        %v1733 = vshrl.u32 %v1732, 7
        %v1734 = vsub.s32 %v1731, %v1733
        %v1735 = vrot.slane %v1727, %v1734
        %v1737 = vunpack.c.l.s4 1983009808
        %v1738 = vunpack.c.0.s8 %v1737
        %v1739 = vlaneseq
        %v1740 = vshrl.u32 %v1739, 7
        %v1741 = vsub.s32 %v1738, %v1740
        %v1742 = vrot.slane %v1728, %v1741
        %v1743 = vcombine.low %v1722, %v1726
        %v1744 = vcombine.high %v1722, %v1726
        %v1746 = vunpack.c.l.s4 1983009808
        %v1747 = vunpack.c.0.s8 %v1746
        %v1748 = vlaneseq
        %v1749 = vshrl.u32 %v1748, 7
        %v1750 = vsub.s32 %v1747, %v1749
        %v1751 = vrot.slane %v1743, %v1750
        %v1753 = vunpack.c.l.s4 1983009808
        %v1754 = vunpack.c.0.s8 %v1753
        %v1755 = vlaneseq
        %v1756 = vshrl.u32 %v1755, 7
        %v1757 = vsub.s32 %v1754, %v1756
        %v1758 = vrot.slane %v1744, %v1757
        %v1759 = vcombine.low %v1735, %v1751
        %v1760 = vcombine.high %v1735, %v1751
        %v1762 = vunpack.c.l.s4 1934713408
        %v1763 = vunpack.c.0.s8 %v1762
        %v1764 = vlaneseq
        %v1765 = vshrl.u32 %v1764, 7
        %v1766 = vsub.s32 %v1763, %v1765
        %v1767 = vrot.slane %v1759, %v1766
        %v1769 = vunpack.c.l.s4 1934713408
        %v1770 = vunpack.c.0.s8 %v1769
        %v1771 = vlaneseq
        %v1772 = vshrl.u32 %v1771, 7
        %v1773 = vsub.s32 %v1770, %v1772
        %v1774 = vrot.slane %v1760, %v1773
        %v1775 = vcombine.low %v1742, %v1758
        %v1776 = vcombine.high %v1742, %v1758
        %v1778 = vunpack.c.l.s4 1934713408
        %v1779 = vunpack.c.0.s8 %v1778
        %v1780 = vlaneseq
        %v1781 = vshrl.u32 %v1780, 7
        %v1782 = vsub.s32 %v1779, %v1781
        %v1783 = vrot.slane %v1775, %v1782
        %v1785 = vunpack.c.l.s4 1934713408
        %v1786 = vunpack.c.0.s8 %v1785
        %v1787 = vlaneseq
        %v1788 = vshrl.u32 %v1787, 7
        %v1789 = vsub.s32 %v1786, %v1788
        %v1790 = vrot.slane %v1776, %v1789
        %v1791 = vcombine.high %v1767, 0.0
        %v1792 = vcombine.high %v1774, 0.0
        %v1793 = vcombine.high %v1783, 0.0
        %v1794 = vcombine.high %v1790, 0.0
        %v1795 = vcombine.low %v1767, %v1774
        %v1797 = vunpack.c.l.s4 1983009808
        %v1798 = vunpack.c.0.s8 %v1797
        %v1799 = vlaneseq
        %v1800 = vshrl.u32 %v1799, 7
        %v1801 = vsub.s32 %v1798, %v1800
        %v1802 = vrot.slane %v1795, %v1801
        %v1803 = vcombine.low %v1791, %v1792
        %v1805 = vunpack.c.l.s4 1983009808
        %v1806 = vunpack.c.0.s8 %v1805
        %v1807 = vlaneseq
        %v1808 = vshrl.u32 %v1807, 7
        %v1809 = vsub.s32 %v1806, %v1808
        %v1810 = vrot.slane %v1803, %v1809
        %v1811 = vcombine.low %v1783, %v1790
        %v1813 = vunpack.c.l.s4 1983009808
        %v1814 = vunpack.c.0.s8 %v1813
        %v1815 = vlaneseq
        %v1816 = vshrl.u32 %v1815, 7
        %v1817 = vsub.s32 %v1814, %v1816
        %v1818 = vrot.slane %v1811, %v1817
        %v1819 = vcombine.low %v1793, %v1794
        %v1821 = vunpack.c.l.s4 1983009808
        %v1822 = vunpack.c.0.s8 %v1821
        %v1823 = vlaneseq
        %v1824 = vshrl.u32 %v1823, 7
        %v1825 = vsub.s32 %v1822, %v1824
        %v1826 = vrot.slane %v1819, %v1825
        %v1827 = vcombine.low %v1802, %v1810
        %v1828 = vcombine.high %v1802, %v1810
        %v1830 = vunpack.c.l.s4 1934713408
        %v1831 = vunpack.c.0.s8 %v1830
        %v1832 = vlaneseq
        %v1833 = vshrl.u32 %v1832, 7
        %v1834 = vsub.s32 %v1831, %v1833
        %v1835 = vrot.slane %v1827, %v1834
        %v1837 = vunpack.c.l.s4 1934713408
        %v1838 = vunpack.c.0.s8 %v1837
        %v1839 = vlaneseq
        %v1840 = vshrl.u32 %v1839, 7
        %v1841 = vsub.s32 %v1838, %v1840
        %v1842 = vrot.slane %v1828, %v1841
        %v1843 = vcombine.low %v1818, %v1826
        %v1844 = vcombine.high %v1818, %v1826
        %v1846 = vunpack.c.l.s4 1934713408
        %v1847 = vunpack.c.0.s8 %v1846
        %v1848 = vlaneseq
        %v1849 = vshrl.u32 %v1848, 7
        %v1850 = vsub.s32 %v1847, %v1849
        %v1851 = vrot.slane %v1843, %v1850
        %v1853 = vunpack.c.l.s4 1934713408
        %v1854 = vunpack.c.0.s8 %v1853
        %v1855 = vlaneseq
        %v1856 = vshrl.u32 %v1855, 7
        %v1857 = vsub.s32 %v1854, %v1856
        %v1858 = vrot.slane %v1844, %v1857
        %v1859 = vcombine.low %v1835, %v1851
        %v1860 = vcombine.high %v1835, %v1851
        %v1861 = vcombine.low %v1842, %v1858
        %v1862 = vcombine.high %v1842, %v1858
        %1864 = vrot.lane.b32.xlu0 %v1860, 8
        %v1865 = vpop.permute.xlu0 %1864
        %1868 = vrot.lane.b32.xlu0 %v1861, 16
        %v1869 = vpop.permute.xlu0 %1868
        %1872 = vrot.lane.b32.xlu0 %v1862, 24
        %v1873 = vpop.permute.xlu0 %1872
        %v1875 = vsel %vm1270, %v1859, %v1865
        %vm1876 = vcmask 130048
        %v1877 = vsel %vm1876, %v1875, %v1869
        %vm1878 = vcmask 195584
        %v1879 = vsel %vm1878, %v1877, %v1873
        %v1880 = vpack.c.bf16 %v1879, %v1879
        %v1881 = vld [vmem:[#allocation17] sm:$0xf]
        %v1882 = vld [vmem:[#allocation17 + $0x4] sm:$0xf]
        %v1883 = vld [vmem:[#allocation17 + $0x8] sm:$0xf]
        %v1884 = vld [vmem:[#allocation17 + $0xc] sm:$0xf]
        %v1885 = vld [vmem:[#allocation19] sm:$0x1]
        %v1887 = vlaneseq
        %v1888 = vshrl.u32 %v1887, 7
        %v1889 = vsub.s32 0, %v1888
        %v1890 = vrot.slane %v1885, %v1889
        %v1896 = vunpack.c.l.b16 %v1881
        %v1897 = vunpack.c.l.b16 %v1882
        %v1898 = vunpack.c.l.b16 %v1883
        %v1899 = vunpack.c.l.b16 %v1884
        %v1900 = vpack.c.b16 %v1897, %v1896
        %v1901 = vpack.c.b16 %v1899, %v1898
        %v1905 = vsel %vm539, %v1880, 0
        %1907 = vmatprep.subr.bf16.mxu0 0
        %1908 = vmatpush1.bf16.msra.mxu0 %v1900
        %1909 = vmatprep.subr.bf16.mxu0 0
        %1910 = vmatpush1.bf16.msra.mxu0 %v1901
        %1911 = vmatprep.subr.bf16.mxu0 0
        %1912 = vmatpush1.bf16.msra.mxu0 0
        %1913 = vmatprep.subr.bf16.mxu0 0
        %1914 = vmatpush1.bf16.msra.mxu0 0
        %1915 = vmatprep.subr.bf16.mxu0 0
        %1916 = vmatpush1.bf16.msra.mxu0 0
        %1917 = vmatprep.subr.bf16.mxu0 0
        %1918 = vmatpush1.bf16.msra.mxu0 0
        %1919 = vmatprep.subr.bf16.mxu0 0
        %1920 = vmatpush1.bf16.msra.mxu0 0
        %1921 = vmatprep.subr.bf16.mxu0 0
        %1922 = vmatpush1.bf16.msra.mxu0 0
        %1923 = vmatprep.subr.bf16.mxu0 0
        %1924 = vmatpush1.bf16.msra.mxu0 0
        %1925 = vmatprep.subr.bf16.mxu0 0
        %1926 = vmatpush1.bf16.msra.mxu0 0
        %1927 = vmatprep.subr.bf16.mxu0 0
        %1928 = vmatpush1.bf16.msra.mxu0 0
        %1929 = vmatprep.subr.bf16.mxu0 0
        %1930 = vmatpush1.bf16.msra.mxu0 0
        %1931 = vmatprep.subr.bf16.mxu0 0
        %1932 = vmatpush1.bf16.msra.mxu0 0
        %1933 = vmatprep.subr.bf16.mxu0 0
        %1934 = vmatpush1.bf16.msra.mxu0 0
        %1935 = vmatprep.subr.bf16.mxu0 0
        %1936 = vmatpush1.bf16.msra.mxu0 0
        %1937 = vmatprep.subr.bf16.mxu0 0
        %1938 = vmatpush1.bf16.msra.mxu0 0
        %1939 = vmatprep.mubr.bf16.mxu0 0
        %1940 = vmatmul.mubr.bf16.gmra.mrb[0].mxu0 %v1905
        %v1941 = vpop.f32.mrb[0].mxu0
        %v1942 = vadd.f32 %v1890, %v1941
        %v1943 = vpop.f32.mrb[0].mxu0
        %v1944 = vpop.f32.mrb[0].mxu0
        %v1945 = vpop.f32.mrb[0].mxu0
        %1946 = vdwg.mxu0
        %v1947 = vadd.f32 %v536, %v1942
        %1948 = vst.msk [vmem:[%s534] sm:$0xff] %vm539, %v1947
        %s1949 = sand.u32 %s277, 1
        %s1950 = scalar_lea.sflag [#allocation4], %s1949
        %s1951 = sand.u32 %s277, 1
        %s1952 = smul.addr %s1951, 8
        %s1953 = scalar_lea.vmem [#allocation20], %s1952
        // Predicated region
        $region109: #{tpu_custom_call.1} parent=63 // pred_check
          %p1954 = pneg %p287
        $region110: #{tpu_custom_call.1} parent=63 // pred_check_branch
          %1956 = sbr.rel (%p1954) target = $region112
        $region111: #{tpu_custom_call.1} parent=63 // pred_region
          %s1958 = ssub.s32 128, 128
          %1959 = vsyncadd %s1950, %s1958
          %s1960 = smul.addr %s33, 128
          %s1961 = scalar_lea.hbm %s11, %s1960
          %s1963 = sshll.u32 %s1953, 4
          %s1964 = int_to_ptr.vmem [resolvable:$true] %s1963
          %1966 = dma.vmem_to_hbm [thread:$0]  %s1964, 128, %s1961, %s1950
        $region112: #{tpu_custom_call.1} parent=63 // pred_fallthru
          _
      $region64: #{tpu_custom_call.1} parent=5 // pred_fallthru
        _
      %p1967 = scmp.le.s32.totalorder 2, %s28
      // Predicated region
      $region113: #{tpu_custom_call.1} parent=5 // pred_check
        %p1968 = pneg %p1967
      $region114: #{tpu_custom_call.1} parent=5 // pred_check_branch
        %1970 = sbr.rel (%p1968) target = $region116
      $region115: #{tpu_custom_call.1} parent=5 // pred_region
        %s1971 = ssub.s32 %s28, 2
        // Predicated region
        $region117: #{tpu_custom_call.1} parent=115 // pred_check
          %p1972 = pneg %p293
        $region118: #{tpu_custom_call.1} parent=115 // pred_check_branch
          %1974 = sbr.rel (%p1972) target = $region120
        $region119: #{tpu_custom_call.1} parent=115 // pred_region
          %s1975 = sand.u32 %s278, 1
          %s1976 = scalar_lea.sflag [#allocation4], %s1975
          %s1977 = sand.u32 %s278, 1
          %s1978 = smul.addr %s1977, 8
          %s1979 = scalar_lea.vmem [#allocation20], %s1978
          %1980 = dma.done %s1976, 128
        $region120: #{tpu_custom_call.1} parent=115 // pred_fallthru
          _
      $region116: #{tpu_custom_call.1} parent=5 // pred_fallthru
        _
    $region6: #{tpu_custom_call.1} parent=1 // loop_footer
      %s32 = sadd.s32 1, %s28
    $region7: #{tpu_custom_call.1} parent=1 // loop_footer_branch
      %27 = sbr.rel target = $region3
    $region8: #{tpu_custom_call.1} parent=1 // loop_exit
      _
    %1981 = vsyncpa [#allocation3], 1
    %s1982 = scalar_lea.sflag [#allocation3], 1
    %1983 = vsyncpa %s1982, 1
    %1984 = vsyncpa [#allocation6], 1
    %1985 = vsyncpa [#allocation9], 1
    %1986 = vsyncpa [#allocation12], 1
    %1987 = vsyncpa [#allocation15], 1
    %1988 = vsyncpa [#allocation18], 1
    %1989 = vsyncpa [#allocation4], 1
    %s1990 = scalar_lea.sflag [#allocation4], 1
    %1991 = vsyncpa %s1990, 1

// kernel: tpu_custom_call.1
$region0: #{tpu_custom_call.1}
  #allocation0 [shape = 'u32[]', space=smem, size = 0x4, offset = 0x4, fixed_abs, tag = 'smem constant byte address 0x4 - core index']
  #allocation1 [shape = 'u32[144,128]{1,0:T(1,128)}', space=vmem, size = 0x12000, scoped, tag = 'internal scratch']
  %s0 = inlined_call_operand.hbm [shape: f32[2,8,32], index: 0, kind: input, shape index: {}]
  %s1 = inlined_call_operand.hbm [shape: f32[1,32], index: 1, kind: input, shape index: {}]
  %s2 = inlined_call_operand.hbm [shape: f32[1,32], index: 2, kind: input, shape index: {}]
  %s3 = inlined_call_operand.hbm [shape: bf16[32,32], index: 3, kind: input, shape index: {}]
  %s4 = inlined_call_operand.hbm [shape: bf16[32,32], index: 4, kind: input, shape index: {}]
  %s5 = inlined_call_operand.hbm [shape: bf16[32,32], index: 5, kind: input, shape index: {}]
  %s6 = inlined_call_operand.hbm [shape: f32[1,32], index: 6, kind: input, shape index: {}]
  %s7 = inlined_call_operand.hbm [shape: f32[1,32], index: 7, kind: input, shape index: {}]
  %s8 = inlined_call_operand.hbm [shape: f32[1,32], index: 8, kind: input, shape index: {}]
  %s9 = inlined_call_operand.hbm [shape: bf16[32,32], index: 9, kind: input, shape index: {}]
  %s10 = inlined_call_operand.hbm [shape: f32[1,32], index: 10, kind: input, shape index: {}]
  %s11 = inlined_call_operand.hbm [shape: f32[2,8,32], index: 11, kind: output, shape index: {}]
  %s12 = sld [smem:[#allocation0]]
  $region121: #{tpu_custom_call.1} parent=0
    _
  %s14 = ssub.s32 1, %s12
  %s15 = scalar_select 0, %s14, %s12
  $region1: #{tpu_custom_call.1} parent=0
    #allocation2 [shape = 'u8[8192]{0}', space=vmem, size = 0x2000, scoped, tag = 'input window, operand 0']
    #allocation3 [shape = 's32[2]{0}', space=sflag, size = 0x8, scoped, tag = 'scoped memory for tpu_custom_call.1']
    #allocation4 [shape = 's32[2]{0}', space=sflag, size = 0x8, scoped, tag = 'scoped memory for tpu_custom_call.1']
    #allocation5 [shape = 'u8[512]{0}', space=vmem, size = 0x400, scoped, tag = 'input window, operand 1, single buffered']
    #allocation6 [shape = 's32[1]{0}', space=sflag, size = 0x4, scoped, tag = 'scoped memory for tpu_custom_call.1']
    #allocation7 [shape = 'u8[512]{0}', space=vmem, size = 0x400, scoped, tag = 'input window, operand 2, single buffered']
    #allocation8 [shape = 'u8[8192]{0}', space=vmem, size = 0x2000, scoped, tag = 'input window, operand 3, single buffered']
    #allocation9 [shape = 's32[1]{0}', space=sflag, size = 0x4, scoped, tag = 'scoped memory for tpu_custom_call.1']
    #allocation10 [shape = 'u8[8192]{0}', space=vmem, size = 0x2000, scoped, tag = 'input window, operand 4, single buffered']
    #allocation11 [shape = 'u8[8192]{0}', space=vmem, size = 0x2000, scoped, tag = 'input window, operand 5, single buffered']
    #allocation12 [shape = 's32[1]{0}', space=sflag, size = 0x4, scoped, tag = 'scoped memory for tpu_custom_call.1']
    #allocation13 [shape = 'u8[512]{0}', space=vmem, size = 0x400, scoped, tag = 'input window, operand 6, single buffered']
    #allocation14 [shape = 'u8[512]{0}', space=vmem, size = 0x400, scoped, tag = 'input window, operand 7, single buffered']
    #allocation15 [shape = 's32[1]{0}', space=sflag, size = 0x4, scoped, tag = 'scoped memory for tpu_custom_call.1']
    #allocation16 [shape = 'u8[512]{0}', space=vmem, size = 0x400, scoped, tag = 'input window, operand 8, single buffered']
    #allocation17 [shape = 'u8[8192]{0}', space=vmem, size = 0x2000, scoped, tag = 'input window, operand 9, single buffered']
    #allocation18 [shape = 's32[1]{0}', space=sflag, size = 0x4, scoped, tag = 'scoped memory for tpu_custom_call.1']
    #allocation19 [shape = 'u8[512]{0}', space=vmem, size = 0x400, scoped, tag = 'input window, operand 10, single buffered']
    #allocation20 [shape = 'u8[8192]{0}', space=vmem, size = 0x2000, scoped, tag = 'output window, operand 0']
    %16 = vsyncpa [#allocation3], 0
    %s17 = scalar_lea.sflag [#allocation3], 1
    %18 = vsyncpa %s17, 0
    %19 = vsyncpa [#allocation6], 0
    %20 = vsyncpa [#allocation9], 0
    %21 = vsyncpa [#allocation12], 0
    %22 = vsyncpa [#allocation15], 0
    %23 = vsyncpa [#allocation18], 0
    %24 = vsyncpa [#allocation4], 0
    %s25 = scalar_lea.sflag [#allocation4], 1
    %26 = vsyncpa %s25, 0
    loop: start=0, step=1, limit=4
    $region2: #{tpu_custom_call.1} parent=1 // loop_pre_header
      _
    $region3: #{tpu_custom_call.1} parent=1 // loop_header
      %s28 = sphi 0, %s32
      %p29 = scmp.ge.s32.totalorder %s28, 4
      %s38 = sphi 0, %s40
      %s41 = sphi 0, %s38
      %s42 = sphi 0, %s41
      %s58 = sphi 0, %s42
      %s62 = sphi 0, %s62
      %s64 = sphi 0, %s62
      %s65 = sphi 0, %s64
      %s79 = sphi 0, %s65
      %s83 = sphi 0, %s83
      %s85 = sphi 0, %s83
      %s86 = sphi 0, %s85
      %s100 = sphi 0, %s86
      %s104 = sphi 0, %s104
      %s106 = sphi 0, %s104
      %s107 = sphi 0, %s106
      %s121 = sphi 0, %s107
      %s125 = sphi 0, %s125
      %s127 = sphi 0, %s125
      %s128 = sphi 0, %s127
      %s142 = sphi 0, %s128
      %s146 = sphi 0, %s146
      %s148 = sphi 0, %s146
      %s149 = sphi 0, %s148
      %s163 = sphi 0, %s149
      %s167 = sphi 0, %s167
      %s169 = sphi 0, %s167
      %s170 = sphi 0, %s169
      %s184 = sphi 0, %s170
      %s188 = sphi 0, %s188
      %s190 = sphi 0, %s188
      %s191 = sphi 0, %s190
      %s205 = sphi 0, %s191
      %s209 = sphi 0, %s209
      %s211 = sphi 0, %s209
      %s212 = sphi 0, %s211
      %s226 = sphi 0, %s212
      %s230 = sphi 0, %s230
      %s232 = sphi 0, %s230
      %s233 = sphi 0, %s232
      %s247 = sphi 0, %s233
      %s251 = sphi 0, %s251
      %s253 = sphi 0, %s251
      %s254 = sphi 0, %s253
      %s268 = sphi 0, %s254
      %s274 = sphi 0, %s276
      %s277 = sphi 0, %s274
      %s278 = sphi 0, %s277
      %s294 = sphi 0, %s278
    $region4: #{tpu_custom_call.1} parent=1 // loop_header_branch
      %31 = sbr.rel (%p29) target = $region8
    $region5: #{tpu_custom_call.1} parent=1 // loop_body
      %s33 = ssub.s32 %s28, 1
      %s34 = ssub.s32 %s28, 2
      %s35 = sadd.s32 %s28, 1
      %s36 = ssub.s32 %s28, %s35
      %p37 = scmp.eq.s32.totalorder %s36, 0
      %s39 = sadd.s32 %s38, 1
      %s40 = scalar_select %p37, %s38, %s39
      %p43 = pneg %p37
      %p44 = scmp.eq.s32.totalorder %s28, 1
      %p45 = por %p43, %p44
      %p46 = scmp.ne.s32.totalorder %s38, %s41
      %p47 = scmp.eq.s32.totalorder %s28, 0
      %p48 = por %p46, %p47
      %p49 = scmp.ne.s32.totalorder %s38, %s41
      %p50 = scmp.eq.s32.totalorder %s33, 1
      %p51 = por %p49, %p50
      %p52 = scmp.ne.s32.totalorder %s41, %s42
      %p53 = scmp.eq.s32.totalorder %s33, 0
      %p54 = por %p52, %p53
      %p55 = scmp.ne.s32.totalorder %s41, %s42
      %p56 = scmp.eq.s32.totalorder %s34, 1
      %p57 = por %p55, %p56
      %p59 = scmp.ne.s32.totalorder %s42, %s58
      %p60 = scmp.eq.s32.totalorder %s34, 0
      %p61 = por %p59, %p60
      %s63 = sadd.s32 %s62, 1
      %p66 = scmp.eq.s32.totalorder %s28, 1
      %p67 = scmp.ne.s32.totalorder %s62, %s64
      %p68 = scmp.eq.s32.totalorder %s28, 0
      %p69 = por %p67, %p68
      %p70 = scmp.ne.s32.totalorder %s62, %s64
      %p71 = scmp.eq.s32.totalorder %s33, 1
      %p72 = por %p70, %p71
      %p73 = scmp.ne.s32.totalorder %s64, %s65
      %p74 = scmp.eq.s32.totalorder %s33, 0
      %p75 = por %p73, %p74
      %p76 = scmp.ne.s32.totalorder %s64, %s65
      %p77 = scmp.eq.s32.totalorder %s34, 1
      %p78 = por %p76, %p77
      %p80 = scmp.ne.s32.totalorder %s65, %s79
      %p81 = scmp.eq.s32.totalorder %s34, 0
      %p82 = por %p80, %p81
      %s84 = sadd.s32 %s83, 1
      %p87 = scmp.eq.s32.totalorder %s28, 1
      %p88 = scmp.ne.s32.totalorder %s83, %s85
      %p89 = scmp.eq.s32.totalorder %s28, 0
      %p90 = por %p88, %p89
      %p91 = scmp.ne.s32.totalorder %s83, %s85
      %p92 = scmp.eq.s32.totalorder %s33, 1
      %p93 = por %p91, %p92
      %p94 = scmp.ne.s32.totalorder %s85, %s86
      %p95 = scmp.eq.s32.totalorder %s33, 0
      %p96 = por %p94, %p95
      %p97 = scmp.ne.s32.totalorder %s85, %s86
      %p98 = scmp.eq.s32.totalorder %s34, 1
      %p99 = por %p97, %p98
      %p101 = scmp.ne.s32.totalorder %s86, %s100
      %p102 = scmp.eq.s32.totalorder %s34, 0
      %p103 = por %p101, %p102
      %s105 = sadd.s32 %s104, 1
      %p108 = scmp.eq.s32.totalorder %s28, 1
      %p109 = scmp.ne.s32.totalorder %s104, %s106
      %p110 = scmp.eq.s32.totalorder %s28, 0
      %p111 = por %p109, %p110
      %p112 = scmp.ne.s32.totalorder %s104, %s106
      %p113 = scmp.eq.s32.totalorder %s33, 1
      %p114 = por %p112, %p113
      %p115 = scmp.ne.s32.totalorder %s106, %s107
      %p116 = scmp.eq.s32.totalorder %s33, 0
      %p117 = por %p115, %p116
      %p118 = scmp.ne.s32.totalorder %s106, %s107
      %p119 = scmp.eq.s32.totalorder %s34, 1
      %p120 = por %p118, %p119
      %p122 = scmp.ne.s32.totalorder %s107, %s121
      %p123 = scmp.eq.s32.totalorder %s34, 0
      %p124 = por %p122, %p123
      %s126 = sadd.s32 %s125, 1
      %p129 = scmp.eq.s32.totalorder %s28, 1
      %p130 = scmp.ne.s32.totalorder %s125, %s127
      %p131 = scmp.eq.s32.totalorder %s28, 0
      %p132 = por %p130, %p131
      %p133 = scmp.ne.s32.totalorder %s125, %s127
      %p134 = scmp.eq.s32.totalorder %s33, 1
      %p135 = por %p133, %p134
      %p136 = scmp.ne.s32.totalorder %s127, %s128
      %p137 = scmp.eq.s32.totalorder %s33, 0
      %p138 = por %p136, %p137
      %p139 = scmp.ne.s32.totalorder %s127, %s128
      %p140 = scmp.eq.s32.totalorder %s34, 1
      %p141 = por %p139, %p140
      %p143 = scmp.ne.s32.totalorder %s128, %s142
      %p144 = scmp.eq.s32.totalorder %s34, 0
      %p145 = por %p143, %p144
      %s147 = sadd.s32 %s146, 1
      %p150 = scmp.eq.s32.totalorder %s28, 1
      %p151 = scmp.ne.s32.totalorder %s146, %s148
      %p152 = scmp.eq.s32.totalorder %s28, 0
      %p153 = por %p151, %p152
      %p154 = scmp.ne.s32.totalorder %s146, %s148
      %p155 = scmp.eq.s32.totalorder %s33, 1
      %p156 = por %p154, %p155
      %p157 = scmp.ne.s32.totalorder %s148, %s149
      %p158 = scmp.eq.s32.totalorder %s33, 0
      %p159 = por %p157, %p158
      %p160 = scmp.ne.s32.totalorder %s148, %s149
      %p161 = scmp.eq.s32.totalorder %s34, 1
      %p162 = por %p160, %p161
      %p164 = scmp.ne.s32.totalorder %s149, %s163
      %p165 = scmp.eq.s32.totalorder %s34, 0
      %p166 = por %p164, %p165
      %s168 = sadd.s32 %s167, 1
      %p171 = scmp.eq.s32.totalorder %s28, 1
      %p172 = scmp.ne.s32.totalorder %s167, %s169
      %p173 = scmp.eq.s32.totalorder %s28, 0
      %p174 = por %p172, %p173
      %p175 = scmp.ne.s32.totalorder %s167, %s169
      %p176 = scmp.eq.s32.totalorder %s33, 1
      %p177 = por %p175, %p176
      %p178 = scmp.ne.s32.totalorder %s169, %s170
      %p179 = scmp.eq.s32.totalorder %s33, 0
      %p180 = por %p178, %p179
      %p181 = scmp.ne.s32.totalorder %s169, %s170
      %p182 = scmp.eq.s32.totalorder %s34, 1
      %p183 = por %p181, %p182
      %p185 = scmp.ne.s32.totalorder %s170, %s184
      %p186 = scmp.eq.s32.totalorder %s34, 0
      %p187 = por %p185, %p186
      %s189 = sadd.s32 %s188, 1
      %p192 = scmp.eq.s32.totalorder %s28, 1
      %p193 = scmp.ne.s32.totalorder %s188, %s190
      %p194 = scmp.eq.s32.totalorder %s28, 0
      %p195 = por %p193, %p194
      %p196 = scmp.ne.s32.totalorder %s188, %s190
      %p197 = scmp.eq.s32.totalorder %s33, 1
      %p198 = por %p196, %p197
      %p199 = scmp.ne.s32.totalorder %s190, %s191
      %p200 = scmp.eq.s32.totalorder %s33, 0
      %p201 = por %p199, %p200
      %p202 = scmp.ne.s32.totalorder %s190, %s191
      %p203 = scmp.eq.s32.totalorder %s34, 1
      %p204 = por %p202, %p203
      %p206 = scmp.ne.s32.totalorder %s191, %s205
      %p207 = scmp.eq.s32.totalorder %s34, 0
      %p208 = por %p206, %p207
      %s210 = sadd.s32 %s209, 1
      %p213 = scmp.eq.s32.totalorder %s28, 1
      %p214 = scmp.ne.s32.totalorder %s209, %s211
      %p215 = scmp.eq.s32.totalorder %s28, 0
      %p216 = por %p214, %p215
      %p217 = scmp.ne.s32.totalorder %s209, %s211
      %p218 = scmp.eq.s32.totalorder %s33, 1
      %p219 = por %p217, %p218
      %p220 = scmp.ne.s32.totalorder %s211, %s212
      %p221 = scmp.eq.s32.totalorder %s33, 0
      %p222 = por %p220, %p221
      %p223 = scmp.ne.s32.totalorder %s211, %s212
      %p224 = scmp.eq.s32.totalorder %s34, 1
      %p225 = por %p223, %p224
      %p227 = scmp.ne.s32.totalorder %s212, %s226
      %p228 = scmp.eq.s32.totalorder %s34, 0
      %p229 = por %p227, %p228
      %s231 = sadd.s32 %s230, 1
      %p234 = scmp.eq.s32.totalorder %s28, 1
      %p235 = scmp.ne.s32.totalorder %s230, %s232
      %p236 = scmp.eq.s32.totalorder %s28, 0
      %p237 = por %p235, %p236
      %p238 = scmp.ne.s32.totalorder %s230, %s232
      %p239 = scmp.eq.s32.totalorder %s33, 1
      %p240 = por %p238, %p239
      %p241 = scmp.ne.s32.totalorder %s232, %s233
      %p242 = scmp.eq.s32.totalorder %s33, 0
      %p243 = por %p241, %p242
      %p244 = scmp.ne.s32.totalorder %s232, %s233
      %p245 = scmp.eq.s32.totalorder %s34, 1
      %p246 = por %p244, %p245
      %p248 = scmp.ne.s32.totalorder %s233, %s247
      %p249 = scmp.eq.s32.totalorder %s34, 0
      %p250 = por %p248, %p249
      %s252 = sadd.s32 %s251, 1
      %p255 = scmp.eq.s32.totalorder %s28, 1
      %p256 = scmp.ne.s32.totalorder %s251, %s253
      %p257 = scmp.eq.s32.totalorder %s28, 0
      %p258 = por %p256, %p257
      %p259 = scmp.ne.s32.totalorder %s251, %s253
      %p260 = scmp.eq.s32.totalorder %s33, 1
      %p261 = por %p259, %p260
      %p262 = scmp.ne.s32.totalorder %s253, %s254
      %p263 = scmp.eq.s32.totalorder %s33, 0
      %p264 = por %p262, %p263
      %p265 = scmp.ne.s32.totalorder %s253, %s254
      %p266 = scmp.eq.s32.totalorder %s34, 1
      %p267 = por %p265, %p266
      %p269 = scmp.ne.s32.totalorder %s254, %s268
      %p270 = scmp.eq.s32.totalorder %s34, 0
      %p271 = por %p269, %p270
      %s272 = ssub.s32 %s28, %s35
      %p273 = scmp.eq.s32.totalorder %s272, 0
      %s275 = sadd.s32 %s274, 1
      %s276 = scalar_select %p273, %s274, %s275
      %p279 = pneg %p273
      %p280 = scmp.eq.s32.totalorder %s28, 1
      %p281 = por %p279, %p280
      %p282 = scmp.ne.s32.totalorder %s274, %s277
      %p283 = scmp.eq.s32.totalorder %s28, 0
      %p284 = por %p282, %p283
      %p285 = scmp.ne.s32.totalorder %s274, %s277
      %p286 = scmp.eq.s32.totalorder %s33, 1
      %p287 = por %p285, %p286
      %p288 = scmp.ne.s32.totalorder %s277, %s278
      %p289 = scmp.eq.s32.totalorder %s33, 0
      %p290 = por %p288, %p289
      %p291 = scmp.ne.s32.totalorder %s277, %s278
      %p292 = scmp.eq.s32.totalorder %s34, 1
      %p293 = por %p291, %p292
      %p295 = scmp.ne.s32.totalorder %s278, %s294
      %p296 = scmp.eq.s32.totalorder %s34, 0
      %p297 = por %p295, %p296
      %p298 = scmp.le.s32.totalorder 1, %s28
      %p299 = scmp.lt.s32.totalorder %s28, 3
      %p300 = pnand %p298, %p299
      %p301 = pneg %p300
      // Predicated region
      $region9: #{tpu_custom_call.1} parent=5 // pred_check
        _
      $region10: #{tpu_custom_call.1} parent=5 // pred_check_branch
        %303 = sbr.rel (%p300) target = $region12
      $region11: #{tpu_custom_call.1} parent=5 // pred_region
        %s304 = ssub.s32 %s28, 1
        // Predicated region
        $region13: #{tpu_custom_call.1} parent=11 // pred_check
          %p305 = pneg %p75
        $region14: #{tpu_custom_call.1} parent=11 // pred_check_branch
          %307 = sbr.rel (%p305) target = $region16
        $region15: #{tpu_custom_call.1} parent=11 // pred_region
          %s309 = ssub.s32 16, 16
          %310 = vsyncadd [#allocation6], %s309
          %s312 = sshll.u32 [#allocation5], 4
          %s313 = int_to_ptr.vmem [resolvable:$true] %s312
          %315 = dma.hbm_to_vmem [thread:$0]  %s1, 16, %s313, [#allocation6]
        $region16: #{tpu_custom_call.1} parent=11 // pred_fallthru
          _
        // Predicated region
        $region17: #{tpu_custom_call.1} parent=11 // pred_check
          %p316 = pneg %p96
        $region18: #{tpu_custom_call.1} parent=11 // pred_check_branch
          %318 = sbr.rel (%p316) target = $region20
        $region19: #{tpu_custom_call.1} parent=11 // pred_region
          %s320 = ssub.s32 16, 16
          %321 = vsyncadd [#allocation6], %s320
          %s323 = sshll.u32 [#allocation7], 4
          %s324 = int_to_ptr.vmem [resolvable:$true] %s323
          %326 = dma.hbm_to_vmem [thread:$0]  %s2, 16, %s324, [#allocation6]
        $region20: #{tpu_custom_call.1} parent=11 // pred_fallthru
          _
        // Predicated region
        $region21: #{tpu_custom_call.1} parent=11 // pred_check
          %p327 = pneg %p117
        $region22: #{tpu_custom_call.1} parent=11 // pred_check_branch
          %329 = sbr.rel (%p327) target = $region24
        $region23: #{tpu_custom_call.1} parent=11 // pred_region
          %s331 = ssub.s32 256, 256
          %332 = vsyncadd [#allocation9], %s331
          %s333 = sshll.u32 [#allocation8], 4
          %s334 = int_to_ptr.vmem [resolvable:$true] %s333
          %339 = dma.hbm_to_vmem [thread:$0]  %s3, 256, %s334, [#allocation9], 64, 64, 4
        $region24: #{tpu_custom_call.1} parent=11 // pred_fallthru
          _
        // Predicated region
        $region25: #{tpu_custom_call.1} parent=11 // pred_check
          %p340 = pneg %p138
        $region26: #{tpu_custom_call.1} parent=11 // pred_check_branch
          %342 = sbr.rel (%p340) target = $region28
        $region27: #{tpu_custom_call.1} parent=11 // pred_region
          %s344 = ssub.s32 256, 256
          %345 = vsyncadd [#allocation9], %s344
          %s346 = sshll.u32 [#allocation10], 4
          %s347 = int_to_ptr.vmem [resolvable:$true] %s346
          %352 = dma.hbm_to_vmem [thread:$0]  %s4, 256, %s347, [#allocation9], 64, 64, 4
        $region28: #{tpu_custom_call.1} parent=11 // pred_fallthru
          _
        // Predicated region
        $region29: #{tpu_custom_call.1} parent=11 // pred_check
          %p353 = pneg %p159
        $region30: #{tpu_custom_call.1} parent=11 // pred_check_branch
          %355 = sbr.rel (%p353) target = $region32
        $region31: #{tpu_custom_call.1} parent=11 // pred_region
          %s357 = ssub.s32 256, 256
          %358 = vsyncadd [#allocation12], %s357
          %s359 = sshll.u32 [#allocation11], 4
          %s360 = int_to_ptr.vmem [resolvable:$true] %s359
          %365 = dma.hbm_to_vmem [thread:$0]  %s5, 256, %s360, [#allocation12], 64, 64, 4
        $region32: #{tpu_custom_call.1} parent=11 // pred_fallthru
          _
        // Predicated region
        $region33: #{tpu_custom_call.1} parent=11 // pred_check
          %p366 = pneg %p180
        $region34: #{tpu_custom_call.1} parent=11 // pred_check_branch
          %368 = sbr.rel (%p366) target = $region36
        $region35: #{tpu_custom_call.1} parent=11 // pred_region
          %s370 = ssub.s32 16, 16
          %371 = vsyncadd [#allocation12], %s370
          %s373 = sshll.u32 [#allocation13], 4
          %s374 = int_to_ptr.vmem [resolvable:$true] %s373
          %376 = dma.hbm_to_vmem [thread:$0]  %s6, 16, %s374, [#allocation12]
        $region36: #{tpu_custom_call.1} parent=11 // pred_fallthru
          _
        // Predicated region
        $region37: #{tpu_custom_call.1} parent=11 // pred_check
          %p377 = pneg %p201
        $region38: #{tpu_custom_call.1} parent=11 // pred_check_branch
          %379 = sbr.rel (%p377) target = $region40
        $region39: #{tpu_custom_call.1} parent=11 // pred_region
          %s381 = ssub.s32 16, 16
          %382 = vsyncadd [#allocation15], %s381
          %s384 = sshll.u32 [#allocation14], 4
          %s385 = int_to_ptr.vmem [resolvable:$true] %s384
          %387 = dma.hbm_to_vmem [thread:$0]  %s7, 16, %s385, [#allocation15]
        $region40: #{tpu_custom_call.1} parent=11 // pred_fallthru
          _
        // Predicated region
        $region41: #{tpu_custom_call.1} parent=11 // pred_check
          %p388 = pneg %p222
        $region42: #{tpu_custom_call.1} parent=11 // pred_check_branch
          %390 = sbr.rel (%p388) target = $region44
        $region43: #{tpu_custom_call.1} parent=11 // pred_region
          %s392 = ssub.s32 16, 16
          %393 = vsyncadd [#allocation15], %s392
          %s395 = sshll.u32 [#allocation16], 4
          %s396 = int_to_ptr.vmem [resolvable:$true] %s395
          %398 = dma.hbm_to_vmem [thread:$0]  %s8, 16, %s396, [#allocation15]
        $region44: #{tpu_custom_call.1} parent=11 // pred_fallthru
          _
        // Predicated region
        $region45: #{tpu_custom_call.1} parent=11 // pred_check
          %p399 = pneg %p243
        $region46: #{tpu_custom_call.1} parent=11 // pred_check_branch
          %401 = sbr.rel (%p399) target = $region48
        $region47: #{tpu_custom_call.1} parent=11 // pred_region
          %s403 = ssub.s32 256, 256
          %404 = vsyncadd [#allocation18], %s403
          %s405 = sshll.u32 [#allocation17], 4
          %s406 = int_to_ptr.vmem [resolvable:$true] %s405
          %411 = dma.hbm_to_vmem [thread:$0]  %s9, 256, %s406, [#allocation18], 64, 64, 4
        $region48: #{tpu_custom_call.1} parent=11 // pred_fallthru
          _
        // Predicated region
        $region49: #{tpu_custom_call.1} parent=11 // pred_check
          %p412 = pneg %p264
        $region50: #{tpu_custom_call.1} parent=11 // pred_check_branch
          %414 = sbr.rel (%p412) target = $region52
        $region51: #{tpu_custom_call.1} parent=11 // pred_region
          %s416 = ssub.s32 16, 16
          %417 = vsyncadd [#allocation18], %s416
          %s419 = sshll.u32 [#allocation19], 4
          %s420 = int_to_ptr.vmem [resolvable:$true] %s419
          %422 = dma.hbm_to_vmem [thread:$0]  %s10, 16, %s420, [#allocation18]
        $region52: #{tpu_custom_call.1} parent=11 // pred_fallthru
          _
      $region12: #{tpu_custom_call.1} parent=5 // pred_fallthru
        _
      %p423 = scmp.lt.s32.totalorder %s28, 2
      // Predicated region
      $region53: #{tpu_custom_call.1} parent=5 // pred_check
        %p424 = pneg %p423
      $region54: #{tpu_custom_call.1} parent=5 // pred_check_branch
        %426 = sbr.rel (%p424) target = $region56
      $region55: #{tpu_custom_call.1} parent=5 // pred_region
        // Predicated region
        $region57: #{tpu_custom_call.1} parent=55 // pred_check
          %p427 = pneg %p48
        $region58: #{tpu_custom_call.1} parent=55 // pred_check_branch
          %429 = sbr.rel (%p427) target = $region60
        $region59: #{tpu_custom_call.1} parent=55 // pred_region
          %s430 = sand.u32 %s38, 1
          %s431 = scalar_lea.sflag [#allocation3], %s430
          %s432 = sand.u32 %s38, 1
          %s433 = smul.addr %s432, 8
          %s434 = scalar_lea.vmem [#allocation2], %s433
          %s436 = ssub.s32 128, 128
          %437 = vsyncadd %s431, %s436
          %s438 = smul.addr %s28, 128
          %s439 = scalar_lea.hbm %s0, %s438
          %s441 = sshll.u32 %s434, 4
          %s442 = int_to_ptr.vmem [resolvable:$true] %s441
          %444 = dma.hbm_to_vmem [thread:$0]  %s439, 128, %s442, %s431
        $region60: #{tpu_custom_call.1} parent=55 // pred_fallthru
          _
      $region56: #{tpu_custom_call.1} parent=5 // pred_fallthru
        _
      %p445 = scmp.le.s32.totalorder 1, %s28
      %p446 = scmp.lt.s32.totalorder %s28, 3
      %p447 = pnand %p445, %p446
      %p448 = pneg %p447
      // Predicated region
      $region61: #{tpu_custom_call.1} parent=5 // pred_check
        _
      $region62: #{tpu_custom_call.1} parent=5 // pred_check_branch
        %450 = sbr.rel (%p447) target = $region64
      $region63: #{tpu_custom_call.1} parent=5 // pred_region
        %s451 = ssub.s32 %s28, 1
        %s452 = sand.u32 %s41, 1
        %s453 = scalar_lea.sflag [#allocation3], %s452
        %s454 = sand.u32 %s41, 1
        %s455 = smul.addr %s454, 8
        %s456 = scalar_lea.vmem [#allocation2], %s455
        // Predicated region
        $region65: #{tpu_custom_call.1} parent=63 // pred_check
          %p457 = pneg %p54
        $region66: #{tpu_custom_call.1} parent=63 // pred_check_branch
          %459 = sbr.rel (%p457) target = $region68
        $region67: #{tpu_custom_call.1} parent=63 // pred_region
          %460 = dma.done %s453, 128
        $region68: #{tpu_custom_call.1} parent=63 // pred_fallthru
          _
        // Predicated region
        $region69: #{tpu_custom_call.1} parent=63 // pred_check
          %p461 = pneg %p75
        $region70: #{tpu_custom_call.1} parent=63 // pred_check_branch
          %463 = sbr.rel (%p461) target = $region72
        $region71: #{tpu_custom_call.1} parent=63 // pred_region
          %464 = dma.done [#allocation6], 16
        $region72: #{tpu_custom_call.1} parent=63 // pred_fallthru
          _
        // Predicated region
        $region73: #{tpu_custom_call.1} parent=63 // pred_check
          %p465 = pneg %p96
        $region74: #{tpu_custom_call.1} parent=63 // pred_check_branch
          %467 = sbr.rel (%p465) target = $region76
        $region75: #{tpu_custom_call.1} parent=63 // pred_region
          %468 = dma.done [#allocation6], 16
        $region76: #{tpu_custom_call.1} parent=63 // pred_fallthru
          _
        // Predicated region
        $region77: #{tpu_custom_call.1} parent=63 // pred_check
          %p469 = pneg %p117
        $region78: #{tpu_custom_call.1} parent=63 // pred_check_branch
          %471 = sbr.rel (%p469) target = $region80
        $region79: #{tpu_custom_call.1} parent=63 // pred_region
          %472 = dma.done [#allocation9], 256
        $region80: #{tpu_custom_call.1} parent=63 // pred_fallthru
          _
        // Predicated region
        $region81: #{tpu_custom_call.1} parent=63 // pred_check
          %p473 = pneg %p138
        $region82: #{tpu_custom_call.1} parent=63 // pred_check_branch
          %475 = sbr.rel (%p473) target = $region84
        $region83: #{tpu_custom_call.1} parent=63 // pred_region
          %476 = dma.done [#allocation9], 256
        $region84: #{tpu_custom_call.1} parent=63 // pred_fallthru
          _
        // Predicated region
        $region85: #{tpu_custom_call.1} parent=63 // pred_check
          %p477 = pneg %p159
        $region86: #{tpu_custom_call.1} parent=63 // pred_check_branch
          %479 = sbr.rel (%p477) target = $region88
        $region87: #{tpu_custom_call.1} parent=63 // pred_region
          %480 = dma.done [#allocation12], 256
        $region88: #{tpu_custom_call.1} parent=63 // pred_fallthru
          _
        // Predicated region
        $region89: #{tpu_custom_call.1} parent=63 // pred_check
          %p481 = pneg %p180
        $region90: #{tpu_custom_call.1} parent=63 // pred_check_branch
          %483 = sbr.rel (%p481) target = $region92
        $region91: #{tpu_custom_call.1} parent=63 // pred_region
          %484 = dma.done [#allocation12], 16
        $region92: #{tpu_custom_call.1} parent=63 // pred_fallthru
          _
        // Predicated region
        $region93: #{tpu_custom_call.1} parent=63 // pred_check
          %p485 = pneg %p201
        $region94: #{tpu_custom_call.1} parent=63 // pred_check_branch
          %487 = sbr.rel (%p485) target = $region96
        $region95: #{tpu_custom_call.1} parent=63 // pred_region
          %488 = dma.done [#allocation15], 16
        $region96: #{tpu_custom_call.1} parent=63 // pred_fallthru
          _
        // Predicated region
        $region97: #{tpu_custom_call.1} parent=63 // pred_check
          %p489 = pneg %p222
        $region98: #{tpu_custom_call.1} parent=63 // pred_check_branch
          %491 = sbr.rel (%p489) target = $region100
        $region99: #{tpu_custom_call.1} parent=63 // pred_region
          %492 = dma.done [#allocation15], 16
        $region100: #{tpu_custom_call.1} parent=63 // pred_fallthru
          _
        // Predicated region
        $region101: #{tpu_custom_call.1} parent=63 // pred_check
          %p493 = pneg %p243
        $region102: #{tpu_custom_call.1} parent=63 // pred_check_branch
          %495 = sbr.rel (%p493) target = $region104
        $region103: #{tpu_custom_call.1} parent=63 // pred_region
          %496 = dma.done [#allocation18], 256
        $region104: #{tpu_custom_call.1} parent=63 // pred_fallthru
          _
        // Predicated region
        $region105: #{tpu_custom_call.1} parent=63 // pred_check
          %p497 = pneg %p264
        $region106: #{tpu_custom_call.1} parent=63 // pred_check_branch
          %499 = sbr.rel (%p497) target = $region108
        $region107: #{tpu_custom_call.1} parent=63 // pred_region
          %500 = dma.done [#allocation18], 16
        $region108: #{tpu_custom_call.1} parent=63 // pred_fallthru
          _
        %s501 = sand.u32 %s41, 1
        %s502 = scalar_lea.sflag [#allocation3], %s501
        %s503 = sand.u32 %s41, 1
        %s504 = smul.addr %s503, 8
        %s505 = scalar_lea.vmem [#allocation2], %s504
        %p506 = pneg %p54
        %p507 = pneg %p51
        %p508 = pneg %p75
        %p509 = pneg %p72
        %p510 = pneg %p96
        %p511 = pneg %p93
        %p512 = pneg %p117
        %p513 = pneg %p114
        %p514 = pneg %p138
        %p515 = pneg %p135
        %p516 = pneg %p159
        %p517 = pneg %p156
        %p518 = pneg %p180
        %p519 = pneg %p177
        %p520 = pneg %p201
        %p521 = pneg %p198
        %p522 = pneg %p222
        %p523 = pneg %p219
        %p524 = pneg %p243
        %p525 = pneg %p240
        %p526 = pneg %p264
        %p527 = pneg %p261
        %p528 = pneg %p290
        %p529 = pneg %p287
        %s530 = sand.u32 %s277, 1
        %s531 = scalar_lea.sflag [#allocation4], %s530
        %s532 = sand.u32 %s277, 1
        %s533 = smul.addr %s532, 8
        %s534 = scalar_lea.vmem [#allocation20], %s533
        %v536 = vld [vmem:[%s456] sm:$0xff]
        %v537 = vld [vmem:[#allocation5] sm:$0x1]
        %v538 = vld [vmem:[#allocation7] sm:$0x1]
        %vm539 = vcmask 261120
        %v540 = vsel %vm539, %v536, 0.0
        %541 = vadd.xlane.f32.xlu0 %v540
        %v542 = vpop.xlane.xlu0 %541
        %v543 = vrcp.pop 32.0
        %v544 = vmul.f32 %v542, %v543
        %v545 = vsub.f32 %v536, %v544
        %v546 = vmul.f32 %v545, %v545
        %v547 = vsel %vm539, %v546, 0.0
        %548 = vadd.xlane.f32.xlu0 %v547
        %v549 = vpop.xlane.xlu0 %548
        %v550 = vmul.f32 %v549, %v543
        %v551 = vadd.f32 %v550, 1e-05
        %v552 = vrsqrt.pop %v551
        %v553 = vmul.f32 %v545, %v552
        %v555 = vlaneseq
        %v556 = vshrl.u32 %v555, 7
        %v557 = vsub.s32 0, %v556
        %v558 = vrot.slane %v537, %v557
        %v560 = vmul.f32 %v553, %v558
        %v562 = vlaneseq
        %v563 = vshrl.u32 %v562, 7
        %v564 = vsub.s32 0, %v563
        %v565 = vrot.slane %v538, %v564
        %v567 = vadd.f32 %v560, %v565
        %v568 = vpack.c.bf16 %v567, %v567
        %v569 = vld [vmem:[#allocation8] sm:$0xf]
        %v570 = vld [vmem:[#allocation8 + $0x4] sm:$0xf]
        %v571 = vld [vmem:[#allocation8 + $0x8] sm:$0xf]
        %v572 = vld [vmem:[#allocation8 + $0xc] sm:$0xf]
        %v573 = vld [vmem:[#allocation13] sm:$0x1]
        %v575 = vlaneseq
        %v576 = vshrl.u32 %v575, 7
        %v577 = vsub.s32 0, %v576
        %v578 = vrot.slane %v573, %v577
        %v584 = vunpack.c.l.b16 %v569
        %v585 = vunpack.c.l.b16 %v570
        %v586 = vunpack.c.l.b16 %v571
        %v587 = vunpack.c.l.b16 %v572
        %v588 = vpack.c.b16 %v585, %v584
        %v589 = vpack.c.b16 %v587, %v586
        %v593 = vsel %vm539, %v568, 0
        %595 = vmatprep.subr.bf16.mxu0 0
        %596 = vmatpush1.bf16.msra.mxu0 %v588
        %597 = vmatprep.subr.bf16.mxu0 0
        %598 = vmatpush1.bf16.msra.mxu0 %v589
        %599 = vmatprep.subr.bf16.mxu0 0
        %600 = vmatpush1.bf16.msra.mxu0 0
        %601 = vmatprep.subr.bf16.mxu0 0
        %602 = vmatpush1.bf16.msra.mxu0 0
        %603 = vmatprep.subr.bf16.mxu0 0
        %604 = vmatpush1.bf16.msra.mxu0 0
        %605 = vmatprep.subr.bf16.mxu0 0
        %606 = vmatpush1.bf16.msra.mxu0 0
        %607 = vmatprep.subr.bf16.mxu0 0
        %608 = vmatpush1.bf16.msra.mxu0 0
        %609 = vmatprep.subr.bf16.mxu0 0
        %610 = vmatpush1.bf16.msra.mxu0 0
        %611 = vmatprep.subr.bf16.mxu0 0
        %612 = vmatpush1.bf16.msra.mxu0 0
        %613 = vmatprep.subr.bf16.mxu0 0
        %614 = vmatpush1.bf16.msra.mxu0 0
        %615 = vmatprep.subr.bf16.mxu0 0
        %616 = vmatpush1.bf16.msra.mxu0 0
        %617 = vmatprep.subr.bf16.mxu0 0
        %618 = vmatpush1.bf16.msra.mxu0 0
        %619 = vmatprep.subr.bf16.mxu0 0
        %620 = vmatpush1.bf16.msra.mxu0 0
        %621 = vmatprep.subr.bf16.mxu0 0
        %622 = vmatpush1.bf16.msra.mxu0 0
        %623 = vmatprep.subr.bf16.mxu0 0
        %624 = vmatpush1.bf16.msra.mxu0 0
        %625 = vmatprep.subr.bf16.mxu0 0
        %626 = vmatpush1.bf16.msra.mxu0 0
        %627 = vmatprep.mubr.bf16.mxu0 0
        %628 = vmatmul.mubr.bf16.gmra.mrb[0].mxu0 %v593
        %v629 = vpop.f32.mrb[0].mxu0
        %v630 = vadd.f32 %v578, %v629
        %v631 = vpop.f32.mrb[0].mxu0
        %v632 = vpop.f32.mrb[0].mxu0
        %v633 = vpop.f32.mrb[0].mxu0
        %634 = vdwg.mxu0
        %v635 = vpack.c.bf16 %v630, %v630
        %637 = vrot.lane.b32.xlu0 %v635, 120
        %v638 = vpop.permute.xlu0 %637
        %639 = vrot.lane.b32.xlu0 %v635, 112
        %v640 = vpop.permute.xlu0 %639
        %641 = vrot.lane.b32.xlu0 %v635, 104
        %v642 = vpop.permute.xlu0 %641
        %v644 = vunpack.c.l.s4 1983009808
        %v645 = vunpack.c.0.s8 %v644
        %v646 = vlaneseq
        %v647 = vshrl.u32 %v646, 7
        %v648 = vsub.s32 %v645, %v647
        %v649 = vrot.slane %v635, %v648
        %v652 = vunpack.c.l.s4 1983009808
        %v653 = vunpack.c.0.s8 %v652
        %v654 = vlaneseq
        %v655 = vshrl.u32 %v654, 7
        %v656 = vsub.s32 %v653, %v655
        %v657 = vrot.slane %v640, %v656
        %v658 = vcombine.low %v649, %v657
        %v659 = vcombine.high %v649, %v657
        %v661 = vunpack.c.l.s4 1934713408
        %v662 = vunpack.c.0.s8 %v661
        %v663 = vlaneseq
        %v664 = vshrl.u32 %v663, 7
        %v665 = vsub.s32 %v662, %v664
        %v666 = vrot.slane %v658, %v665
        %v668 = vunpack.c.l.s4 1934713408
        %v669 = vunpack.c.0.s8 %v668
        %v670 = vlaneseq
        %v671 = vshrl.u32 %v670, 7
        %v672 = vsub.s32 %v669, %v671
        %v673 = vrot.slane %v659, %v672
        %v674 = vcombine.high %v666, 0
        %v675 = vcombine.high %v673, 0
        %v678 = vunpack.c.l.s4 1983009808
        %v679 = vunpack.c.0.s8 %v678
        %v680 = vlaneseq
        %v681 = vshrl.u32 %v680, 7
        %v682 = vsub.s32 %v679, %v681
        %v683 = vrot.slane %v638, %v682
        %v686 = vunpack.c.l.s4 1983009808
        %v687 = vunpack.c.0.s8 %v686
        %v688 = vlaneseq
        %v689 = vshrl.u32 %v688, 7
        %v690 = vsub.s32 %v687, %v689
        %v691 = vrot.slane %v642, %v690
        %v692 = vcombine.low %v683, %v691
        %v693 = vcombine.high %v683, %v691
        %v695 = vunpack.c.l.s4 1934713408
        %v696 = vunpack.c.0.s8 %v695
        %v697 = vlaneseq
        %v698 = vshrl.u32 %v697, 7
        %v699 = vsub.s32 %v696, %v698
        %v700 = vrot.slane %v692, %v699
        %v702 = vunpack.c.l.s4 1934713408
        %v703 = vunpack.c.0.s8 %v702
        %v704 = vlaneseq
        %v705 = vshrl.u32 %v704, 7
        %v706 = vsub.s32 %v703, %v705
        %v707 = vrot.slane %v693, %v706
        %v708 = vcombine.high %v700, 0
        %v709 = vcombine.high %v707, 0
        %v712 = vpack.i.b16 %v700, %v666
        %v714 = vshrl.u32 %v666, 16
        %v715 = vshrl.u32 %v700, 16
        %v716 = vpack.i.b16 %v715, %v714
        %v720 = vpack.i.b16 %v708, %v674
        %v722 = vshrl.u32 %v674, 16
        %v723 = vshrl.u32 %v708, 16
        %v724 = vpack.i.b16 %v723, %v722
        %v728 = vpack.i.b16 %v707, %v673
        %v730 = vshrl.u32 %v673, 16
        %v731 = vshrl.u32 %v707, 16
        %v732 = vpack.i.b16 %v731, %v730
        %v736 = vpack.i.b16 %v709, %v675
        %v738 = vshrl.u32 %v675, 16
        %v739 = vshrl.u32 %v709, 16
        %v740 = vpack.i.b16 %v739, %v738
        %v742 = vcombine.low %v712, %v728
        %v744 = vunpack.c.l.s4 1983009808
        %v745 = vunpack.c.0.s8 %v744
        %v746 = vlaneseq
        %v747 = vshrl.u32 %v746, 7
        %v748 = vsub.s32 %v745, %v747
        %v749 = vrot.slane %v742, %v748
        %v750 = vcombine.low %v720, %v736
        %v752 = vunpack.c.l.s4 1983009808
        %v753 = vunpack.c.0.s8 %v752
        %v754 = vlaneseq
        %v755 = vshrl.u32 %v754, 7
        %v756 = vsub.s32 %v753, %v755
        %v757 = vrot.slane %v750, %v756
        %v758 = vcombine.low %v749, %v757
        %v760 = vunpack.c.l.s4 1934713408
        %v761 = vunpack.c.0.s8 %v760
        %v762 = vlaneseq
        %v763 = vshrl.u32 %v762, 7
        %v764 = vsub.s32 %v761, %v763
        %v765 = vrot.slane %v758, %v764
        %v766 = vcombine.high %v765, 0
        %v767 = vcombine.low %v716, %v732
        %v769 = vunpack.c.l.s4 1983009808
        %v770 = vunpack.c.0.s8 %v769
        %v771 = vlaneseq
        %v772 = vshrl.u32 %v771, 7
        %v773 = vsub.s32 %v770, %v772
        %v774 = vrot.slane %v767, %v773
        %v775 = vcombine.low %v724, %v740
        %v777 = vunpack.c.l.s4 1983009808
        %v778 = vunpack.c.0.s8 %v777
        %v779 = vlaneseq
        %v780 = vshrl.u32 %v779, 7
        %v781 = vsub.s32 %v778, %v780
        %v782 = vrot.slane %v775, %v781
        %v783 = vcombine.low %v774, %v782
        %v785 = vunpack.c.l.s4 1934713408
        %v786 = vunpack.c.0.s8 %v785
        %v787 = vlaneseq
        %v788 = vshrl.u32 %v787, 7
        %v789 = vsub.s32 %v786, %v788
        %v790 = vrot.slane %v783, %v789
        %v791 = vcombine.high %v790, 0
        %v794 = vpack.i.b16 %v790, %v765
        %v795 = vshrl.u32 %v765, 16
        %v796 = vshrl.u32 %v790, 16
        %v797 = vpack.i.b16 %v796, %v795
        %v800 = vpack.i.b16 %v791, %v766
        %v801 = vshrl.u32 %v766, 16
        %v802 = vshrl.u32 %v791, 16
        %v803 = vpack.i.b16 %v802, %v801
        %v804 = vld [vmem:[#allocation10] sm:$0xf]
        %v805 = vld [vmem:[#allocation10 + $0x4] sm:$0xf]
        %v806 = vld [vmem:[#allocation10 + $0x8] sm:$0xf]
        %v807 = vld [vmem:[#allocation10 + $0xc] sm:$0xf]
        %v808 = vld [vmem:[#allocation14] sm:$0x1]
        %v810 = vlaneseq
        %v811 = vshrl.u32 %v810, 7
        %v812 = vsub.s32 0, %v811
        %v813 = vrot.slane %v808, %v812
        %v819 = vunpack.c.l.b16 %v804
        %v820 = vunpack.c.l.b16 %v805
        %v821 = vunpack.c.l.b16 %v806
        %v822 = vunpack.c.l.b16 %v807
        %v823 = vpack.c.b16 %v820, %v819
        %v824 = vpack.c.b16 %v822, %v821
        %827 = vmatprep.subr.bf16.mxu0 0
        %828 = vmatpush1.bf16.msra.mxu0 %v823
        %829 = vmatprep.subr.bf16.mxu0 0
        %830 = vmatpush1.bf16.msra.mxu0 %v824
        %831 = vmatprep.subr.bf16.mxu0 0
        %832 = vmatpush1.bf16.msra.mxu0 0
        %833 = vmatprep.subr.bf16.mxu0 0
        %834 = vmatpush1.bf16.msra.mxu0 0
        %835 = vmatprep.subr.bf16.mxu0 0
        %836 = vmatpush1.bf16.msra.mxu0 0
        %837 = vmatprep.subr.bf16.mxu0 0
        %838 = vmatpush1.bf16.msra.mxu0 0
        %839 = vmatprep.subr.bf16.mxu0 0
        %840 = vmatpush1.bf16.msra.mxu0 0
        %841 = vmatprep.subr.bf16.mxu0 0
        %842 = vmatpush1.bf16.msra.mxu0 0
        %843 = vmatprep.subr.bf16.mxu0 0
        %844 = vmatpush1.bf16.msra.mxu0 0
        %845 = vmatprep.subr.bf16.mxu0 0
        %846 = vmatpush1.bf16.msra.mxu0 0
        %847 = vmatprep.subr.bf16.mxu0 0
        %848 = vmatpush1.bf16.msra.mxu0 0
        %849 = vmatprep.subr.bf16.mxu0 0
        %850 = vmatpush1.bf16.msra.mxu0 0
        %851 = vmatprep.subr.bf16.mxu0 0
        %852 = vmatpush1.bf16.msra.mxu0 0
        %853 = vmatprep.subr.bf16.mxu0 0
        %854 = vmatpush1.bf16.msra.mxu0 0
        %855 = vmatprep.subr.bf16.mxu0 0
        %856 = vmatpush1.bf16.msra.mxu0 0
        %857 = vmatprep.subr.bf16.mxu0 0
        %858 = vmatpush1.bf16.msra.mxu0 0
        %859 = vmatprep.mubr.bf16.mxu0 0
        %860 = vmatmul.mubr.bf16.gmra.mrb[0].mxu0 %v593
        %v861 = vpop.f32.mrb[0].mxu0
        %v862 = vadd.f32 %v813, %v861
        %v863 = vpop.f32.mrb[0].mxu0
        %v864 = vpop.f32.mrb[0].mxu0
        %v865 = vpop.f32.mrb[0].mxu0
        %866 = vdwg.mxu0
        %v867 = vpack.c.bf16 %v862, %v862
        %869 = vrot.lane.b32.xlu0 %v867, 120
        %v870 = vpop.permute.xlu0 %869
        %871 = vrot.lane.b32.xlu0 %v867, 112
        %v872 = vpop.permute.xlu0 %871
        %873 = vrot.lane.b32.xlu0 %v867, 104
        %v874 = vpop.permute.xlu0 %873
        %v876 = vunpack.c.l.s4 1983009808
        %v877 = vunpack.c.0.s8 %v876
        %v878 = vlaneseq
        %v879 = vshrl.u32 %v878, 7
        %v880 = vsub.s32 %v877, %v879
        %v881 = vrot.slane %v867, %v880
        %v884 = vunpack.c.l.s4 1983009808
        %v885 = vunpack.c.0.s8 %v884
        %v886 = vlaneseq
        %v887 = vshrl.u32 %v886, 7
        %v888 = vsub.s32 %v885, %v887
        %v889 = vrot.slane %v872, %v888
        %v890 = vcombine.low %v881, %v889
        %v891 = vcombine.high %v881, %v889
        %v893 = vunpack.c.l.s4 1934713408
        %v894 = vunpack.c.0.s8 %v893
        %v895 = vlaneseq
        %v896 = vshrl.u32 %v895, 7
        %v897 = vsub.s32 %v894, %v896
        %v898 = vrot.slane %v890, %v897
        %v900 = vunpack.c.l.s4 1934713408
        %v901 = vunpack.c.0.s8 %v900
        %v902 = vlaneseq
        %v903 = vshrl.u32 %v902, 7
        %v904 = vsub.s32 %v901, %v903
        %v905 = vrot.slane %v891, %v904
        %v906 = vcombine.high %v898, 0
        %v907 = vcombine.high %v905, 0
        %v910 = vunpack.c.l.s4 1983009808
        %v911 = vunpack.c.0.s8 %v910
        %v912 = vlaneseq
        %v913 = vshrl.u32 %v912, 7
        %v914 = vsub.s32 %v911, %v913
        %v915 = vrot.slane %v870, %v914
        %v918 = vunpack.c.l.s4 1983009808
        %v919 = vunpack.c.0.s8 %v918
        %v920 = vlaneseq
        %v921 = vshrl.u32 %v920, 7
        %v922 = vsub.s32 %v919, %v921
        %v923 = vrot.slane %v874, %v922
        %v924 = vcombine.low %v915, %v923
        %v925 = vcombine.high %v915, %v923
        %v927 = vunpack.c.l.s4 1934713408
        %v928 = vunpack.c.0.s8 %v927
        %v929 = vlaneseq
        %v930 = vshrl.u32 %v929, 7
        %v931 = vsub.s32 %v928, %v930
        %v932 = vrot.slane %v924, %v931
        %v934 = vunpack.c.l.s4 1934713408
        %v935 = vunpack.c.0.s8 %v934
        %v936 = vlaneseq
        %v937 = vshrl.u32 %v936, 7
        %v938 = vsub.s32 %v935, %v937
        %v939 = vrot.slane %v925, %v938
        %v940 = vcombine.high %v932, 0
        %v941 = vcombine.high %v939, 0
        %v944 = vpack.i.b16 %v932, %v898
        %v946 = vshrl.u32 %v898, 16
        %v947 = vshrl.u32 %v932, 16
        %v948 = vpack.i.b16 %v947, %v946
        %v952 = vpack.i.b16 %v940, %v906
        %v954 = vshrl.u32 %v906, 16
        %v955 = vshrl.u32 %v940, 16
        %v956 = vpack.i.b16 %v955, %v954
        %v960 = vpack.i.b16 %v939, %v905
        %v962 = vshrl.u32 %v905, 16
        %v963 = vshrl.u32 %v939, 16
        %v964 = vpack.i.b16 %v963, %v962
        %v968 = vpack.i.b16 %v941, %v907
        %v970 = vshrl.u32 %v907, 16
        %v971 = vshrl.u32 %v941, 16
        %v972 = vpack.i.b16 %v971, %v970
        %v974 = vcombine.low %v944, %v960
        %v976 = vunpack.c.l.s4 1983009808
        %v977 = vunpack.c.0.s8 %v976
        %v978 = vlaneseq
        %v979 = vshrl.u32 %v978, 7
        %v980 = vsub.s32 %v977, %v979
        %v981 = vrot.slane %v974, %v980
        %v982 = vcombine.low %v952, %v968
        %v984 = vunpack.c.l.s4 1983009808
        %v985 = vunpack.c.0.s8 %v984
        %v986 = vlaneseq
        %v987 = vshrl.u32 %v986, 7
        %v988 = vsub.s32 %v985, %v987
        %v989 = vrot.slane %v982, %v988
        %v990 = vcombine.low %v981, %v989
        %v992 = vunpack.c.l.s4 1934713408
        %v993 = vunpack.c.0.s8 %v992
        %v994 = vlaneseq
        %v995 = vshrl.u32 %v994, 7
        %v996 = vsub.s32 %v993, %v995
        %v997 = vrot.slane %v990, %v996
        %v998 = vcombine.high %v997, 0
        %v999 = vcombine.low %v948, %v964
        %v1001 = vunpack.c.l.s4 1983009808
        %v1002 = vunpack.c.0.s8 %v1001
        %v1003 = vlaneseq
        %v1004 = vshrl.u32 %v1003, 7
        %v1005 = vsub.s32 %v1002, %v1004
        %v1006 = vrot.slane %v999, %v1005
        %v1007 = vcombine.low %v956, %v972
        %v1009 = vunpack.c.l.s4 1983009808
        %v1010 = vunpack.c.0.s8 %v1009
        %v1011 = vlaneseq
        %v1012 = vshrl.u32 %v1011, 7
        %v1013 = vsub.s32 %v1010, %v1012
        %v1014 = vrot.slane %v1007, %v1013
        %v1015 = vcombine.low %v1006, %v1014
        %v1017 = vunpack.c.l.s4 1934713408
        %v1018 = vunpack.c.0.s8 %v1017
        %v1019 = vlaneseq
        %v1020 = vshrl.u32 %v1019, 7
        %v1021 = vsub.s32 %v1018, %v1020
        %v1022 = vrot.slane %v1015, %v1021
        %v1023 = vcombine.high %v1022, 0
        %v1026 = vpack.i.b16 %v1022, %v997
        %v1027 = vshrl.u32 %v997, 16
        %v1028 = vshrl.u32 %v1022, 16
        %v1029 = vpack.i.b16 %v1028, %v1027
        %v1032 = vpack.i.b16 %v1023, %v998
        %v1033 = vshrl.u32 %v998, 16
        %v1034 = vshrl.u32 %v1023, 16
        %v1035 = vpack.i.b16 %v1034, %v1033
        %v1036 = vld [vmem:[#allocation11] sm:$0xf]
        %v1037 = vld [vmem:[#allocation11 + $0x4] sm:$0xf]
        %v1038 = vld [vmem:[#allocation11 + $0x8] sm:$0xf]
        %v1039 = vld [vmem:[#allocation11 + $0xc] sm:$0xf]
        %v1040 = vld [vmem:[#allocation16] sm:$0x1]
        %v1042 = vlaneseq
        %v1043 = vshrl.u32 %v1042, 7
        %v1044 = vsub.s32 0, %v1043
        %v1045 = vrot.slane %v1040, %v1044
        %v1051 = vunpack.c.l.b16 %v1036
        %v1052 = vunpack.c.l.b16 %v1037
        %v1053 = vunpack.c.l.b16 %v1038
        %v1054 = vunpack.c.l.b16 %v1039
        %v1055 = vpack.c.b16 %v1052, %v1051
        %v1056 = vpack.c.b16 %v1054, %v1053
        %1059 = vmatprep.subr.bf16.mxu0 0
        %1060 = vmatpush1.bf16.msra.mxu0 %v1055
        %1061 = vmatprep.subr.bf16.mxu0 0
        %1062 = vmatpush1.bf16.msra.mxu0 %v1056
        %1063 = vmatprep.subr.bf16.mxu0 0
        %1064 = vmatpush1.bf16.msra.mxu0 0
        %1065 = vmatprep.subr.bf16.mxu0 0
        %1066 = vmatpush1.bf16.msra.mxu0 0
        %1067 = vmatprep.subr.bf16.mxu0 0
        %1068 = vmatpush1.bf16.msra.mxu0 0
        %1069 = vmatprep.subr.bf16.mxu0 0
        %1070 = vmatpush1.bf16.msra.mxu0 0
        %1071 = vmatprep.subr.bf16.mxu0 0
        %1072 = vmatpush1.bf16.msra.mxu0 0
        %1073 = vmatprep.subr.bf16.mxu0 0
        %1074 = vmatpush1.bf16.msra.mxu0 0
        %1075 = vmatprep.subr.bf16.mxu0 0
        %1076 = vmatpush1.bf16.msra.mxu0 0
        %1077 = vmatprep.subr.bf16.mxu0 0
        %1078 = vmatpush1.bf16.msra.mxu0 0
        %1079 = vmatprep.subr.bf16.mxu0 0
        %1080 = vmatpush1.bf16.msra.mxu0 0
        %1081 = vmatprep.subr.bf16.mxu0 0
        %1082 = vmatpush1.bf16.msra.mxu0 0
        %1083 = vmatprep.subr.bf16.mxu0 0
        %1084 = vmatpush1.bf16.msra.mxu0 0
        %1085 = vmatprep.subr.bf16.mxu0 0
        %1086 = vmatpush1.bf16.msra.mxu0 0
        %1087 = vmatprep.subr.bf16.mxu0 0
        %1088 = vmatpush1.bf16.msra.mxu0 0
        %1089 = vmatprep.subr.bf16.mxu0 0
        %1090 = vmatpush1.bf16.msra.mxu0 0
        %1091 = vmatprep.mubr.bf16.mxu0 0
        %1092 = vmatmul.mubr.bf16.gmra.mrb[0].mxu0 %v593
        %v1093 = vpop.f32.mrb[0].mxu0
        %v1094 = vadd.f32 %v1045, %v1093
        %v1095 = vpop.f32.mrb[0].mxu0
        %v1096 = vpop.f32.mrb[0].mxu0
        %v1097 = vpop.f32.mrb[0].mxu0
        %1098 = vdwg.mxu0
        %v1099 = vpack.c.bf16 %v1094, %v1094
        %1101 = vrot.lane.b32.xlu0 %v1099, 120
        %v1102 = vpop.permute.xlu0 %1101
        %1103 = vrot.lane.b32.xlu0 %v1099, 112
        %v1104 = vpop.permute.xlu0 %1103
        %1105 = vrot.lane.b32.xlu0 %v1099, 104
        %v1106 = vpop.permute.xlu0 %1105
        %v1108 = vunpack.c.l.s4 1983009808
        %v1109 = vunpack.c.0.s8 %v1108
        %v1110 = vlaneseq
        %v1111 = vshrl.u32 %v1110, 7
        %v1112 = vsub.s32 %v1109, %v1111
        %v1113 = vrot.slane %v1099, %v1112
        %v1116 = vunpack.c.l.s4 1983009808
        %v1117 = vunpack.c.0.s8 %v1116
        %v1118 = vlaneseq
        %v1119 = vshrl.u32 %v1118, 7
        %v1120 = vsub.s32 %v1117, %v1119
        %v1121 = vrot.slane %v1104, %v1120
        %v1122 = vcombine.low %v1113, %v1121
        %v1123 = vcombine.high %v1113, %v1121
        %v1125 = vunpack.c.l.s4 1934713408
        %v1126 = vunpack.c.0.s8 %v1125
        %v1127 = vlaneseq
        %v1128 = vshrl.u32 %v1127, 7
        %v1129 = vsub.s32 %v1126, %v1128
        %v1130 = vrot.slane %v1122, %v1129
        %v1132 = vunpack.c.l.s4 1934713408
        %v1133 = vunpack.c.0.s8 %v1132
        %v1134 = vlaneseq
        %v1135 = vshrl.u32 %v1134, 7
        %v1136 = vsub.s32 %v1133, %v1135
        %v1137 = vrot.slane %v1123, %v1136
        %v1138 = vcombine.high %v1130, 0
        %v1139 = vcombine.high %v1137, 0
        %v1142 = vunpack.c.l.s4 1983009808
        %v1143 = vunpack.c.0.s8 %v1142
        %v1144 = vlaneseq
        %v1145 = vshrl.u32 %v1144, 7
        %v1146 = vsub.s32 %v1143, %v1145
        %v1147 = vrot.slane %v1102, %v1146
        %v1150 = vunpack.c.l.s4 1983009808
        %v1151 = vunpack.c.0.s8 %v1150
        %v1152 = vlaneseq
        %v1153 = vshrl.u32 %v1152, 7
        %v1154 = vsub.s32 %v1151, %v1153
        %v1155 = vrot.slane %v1106, %v1154
        %v1156 = vcombine.low %v1147, %v1155
        %v1157 = vcombine.high %v1147, %v1155
        %v1159 = vunpack.c.l.s4 1934713408
        %v1160 = vunpack.c.0.s8 %v1159
        %v1161 = vlaneseq
        %v1162 = vshrl.u32 %v1161, 7
        %v1163 = vsub.s32 %v1160, %v1162
        %v1164 = vrot.slane %v1156, %v1163
        %v1166 = vunpack.c.l.s4 1934713408
        %v1167 = vunpack.c.0.s8 %v1166
        %v1168 = vlaneseq
        %v1169 = vshrl.u32 %v1168, 7
        %v1170 = vsub.s32 %v1167, %v1169
        %v1171 = vrot.slane %v1157, %v1170
        %v1172 = vcombine.high %v1164, 0
        %v1173 = vcombine.high %v1171, 0
        %v1176 = vpack.i.b16 %v1164, %v1130
        %v1178 = vshrl.u32 %v1130, 16
        %v1179 = vshrl.u32 %v1164, 16
        %v1180 = vpack.i.b16 %v1179, %v1178
        %v1184 = vpack.i.b16 %v1172, %v1138
        %v1186 = vshrl.u32 %v1138, 16
        %v1187 = vshrl.u32 %v1172, 16
        %v1188 = vpack.i.b16 %v1187, %v1186
        %v1192 = vpack.i.b16 %v1171, %v1137
        %v1194 = vshrl.u32 %v1137, 16
        %v1195 = vshrl.u32 %v1171, 16
        %v1196 = vpack.i.b16 %v1195, %v1194
        %v1200 = vpack.i.b16 %v1173, %v1139
        %v1202 = vshrl.u32 %v1139, 16
        %v1203 = vshrl.u32 %v1173, 16
        %v1204 = vpack.i.b16 %v1203, %v1202
        %v1206 = vcombine.low %v1176, %v1192
        %v1208 = vunpack.c.l.s4 1983009808
        %v1209 = vunpack.c.0.s8 %v1208
        %v1210 = vlaneseq
        %v1211 = vshrl.u32 %v1210, 7
        %v1212 = vsub.s32 %v1209, %v1211
        %v1213 = vrot.slane %v1206, %v1212
        %v1214 = vcombine.low %v1184, %v1200
        %v1216 = vunpack.c.l.s4 1983009808
        %v1217 = vunpack.c.0.s8 %v1216
        %v1218 = vlaneseq
        %v1219 = vshrl.u32 %v1218, 7
        %v1220 = vsub.s32 %v1217, %v1219
        %v1221 = vrot.slane %v1214, %v1220
        %v1222 = vcombine.low %v1213, %v1221
        %v1224 = vunpack.c.l.s4 1934713408
        %v1225 = vunpack.c.0.s8 %v1224
        %v1226 = vlaneseq
        %v1227 = vshrl.u32 %v1226, 7
        %v1228 = vsub.s32 %v1225, %v1227
        %v1229 = vrot.slane %v1222, %v1228
        %v1230 = vcombine.high %v1229, 0
        %v1231 = vcombine.low %v1180, %v1196
        %v1233 = vunpack.c.l.s4 1983009808
        %v1234 = vunpack.c.0.s8 %v1233
        %v1235 = vlaneseq
        %v1236 = vshrl.u32 %v1235, 7
        %v1237 = vsub.s32 %v1234, %v1236
        %v1238 = vrot.slane %v1231, %v1237
        %v1239 = vcombine.low %v1188, %v1204
        %v1241 = vunpack.c.l.s4 1983009808
        %v1242 = vunpack.c.0.s8 %v1241
        %v1243 = vlaneseq
        %v1244 = vshrl.u32 %v1243, 7
        %v1245 = vsub.s32 %v1242, %v1244
        %v1246 = vrot.slane %v1239, %v1245
        %v1247 = vcombine.low %v1238, %v1246
        %v1249 = vunpack.c.l.s4 1934713408
        %v1250 = vunpack.c.0.s8 %v1249
        %v1251 = vlaneseq
        %v1252 = vshrl.u32 %v1251, 7
        %v1253 = vsub.s32 %v1250, %v1252
        %v1254 = vrot.slane %v1247, %v1253
        %v1255 = vcombine.high %v1254, 0
        %v1258 = vpack.i.b16 %v1254, %v1229
        %v1259 = vshrl.u32 %v1229, 16
        %v1260 = vshrl.u32 %v1254, 16
        %v1261 = vpack.i.b16 %v1260, %v1259
        %v1264 = vpack.i.b16 %v1255, %v1230
        %v1265 = vshrl.u32 %v1230, 16
        %v1266 = vshrl.u32 %v1255, 16
        %v1267 = vpack.i.b16 %v1266, %v1265
        %v1268 = vlaneseq
        %v1269 = vshrl.u32 %v1268, 7
        %vm1270 = vcmask 64512
        %v1272 = vsel %vm1270, %v794, 0
        %v1275 = vsel %vm1270, %v1026, 0
        %1277 = vmatprep.subr.bf16.mxu0 0
        %1278 = vmatpush1.bf16.xpose.msra.mxu0 %v1275
        %1279 = vmatprep.subr.bf16.mxu0 0
        %1280 = vmatpush1.bf16.xpose.msra.mxu0 0
        %1281 = vmatprep.subr.bf16.mxu0 0
        %1282 = vmatpush1.bf16.xpose.msra.mxu0 0
        %1283 = vmatprep.subr.bf16.mxu0 0
        %1284 = vmatpush1.bf16.xpose.msra.mxu0 0
        %1285 = vmatprep.subr.bf16.mxu0 0
        %1286 = vmatpush1.bf16.xpose.msra.mxu0 0
        %1287 = vmatprep.subr.bf16.mxu0 0
        %1288 = vmatpush1.bf16.xpose.msra.mxu0 0
        %1289 = vmatprep.subr.bf16.mxu0 0
        %1290 = vmatpush1.bf16.xpose.msra.mxu0 0
        %1291 = vmatprep.subr.bf16.mxu0 0
        %1292 = vmatpush1.bf16.xpose.msra.mxu0 0
        %1293 = vmatprep.subr.bf16.mxu0 0
        %1294 = vmatpush1.bf16.xpose.msra.mxu0 0
        %1295 = vmatprep.subr.bf16.mxu0 0
        %1296 = vmatpush1.bf16.xpose.msra.mxu0 0
        %1297 = vmatprep.subr.bf16.mxu0 0
        %1298 = vmatpush1.bf16.xpose.msra.mxu0 0
        %1299 = vmatprep.subr.bf16.mxu0 0
        %1300 = vmatpush1.bf16.xpose.msra.mxu0 0
        %1301 = vmatprep.subr.bf16.mxu0 0
        %1302 = vmatpush1.bf16.xpose.msra.mxu0 0
        %1303 = vmatprep.subr.bf16.mxu0 0
        %1304 = vmatpush1.bf16.xpose.msra.mxu0 0
        %1305 = vmatprep.subr.bf16.mxu0 0
        %1306 = vmatpush1.bf16.xpose.msra.mxu0 0
        %1307 = vmatprep.subr.bf16.mxu0 0
        %1308 = vmatpush1.bf16.xpose.msra.mxu0 0
        %1309 = vmatprep.mubr.bf16.mxu0 0
        %1310 = vmatmul.mubr.bf16.gmra.mrb[0].mxu0 %v1272
        %v1311 = vpop.f32.mrb[0].mxu0
        %v1312 = vadd.f32 0.0, %v1311
        %v1313 = vpop.f32.mrb[0].mxu0
        %v1314 = vpop.f32.mrb[0].mxu0
        %v1315 = vpop.f32.mrb[0].mxu0
        %1316 = vdwg.mxu0
        %v1318 = vsel %vm1270, %v797, 0
        %v1321 = vsel %vm1270, %v1029, 0
        %1323 = vmatprep.subr.bf16.mxu0 0
        %1324 = vmatpush1.bf16.xpose.msra.mxu0 %v1321
        %1325 = vmatprep.subr.bf16.mxu0 0
        %1326 = vmatpush1.bf16.xpose.msra.mxu0 0
        %1327 = vmatprep.subr.bf16.mxu0 0
        %1328 = vmatpush1.bf16.xpose.msra.mxu0 0
        %1329 = vmatprep.subr.bf16.mxu0 0
        %1330 = vmatpush1.bf16.xpose.msra.mxu0 0
        %1331 = vmatprep.subr.bf16.mxu0 0
        %1332 = vmatpush1.bf16.xpose.msra.mxu0 0
        %1333 = vmatprep.subr.bf16.mxu0 0
        %1334 = vmatpush1.bf16.xpose.msra.mxu0 0
        %1335 = vmatprep.subr.bf16.mxu0 0
        %1336 = vmatpush1.bf16.xpose.msra.mxu0 0
        %1337 = vmatprep.subr.bf16.mxu0 0
        %1338 = vmatpush1.bf16.xpose.msra.mxu0 0
        %1339 = vmatprep.subr.bf16.mxu0 0
        %1340 = vmatpush1.bf16.xpose.msra.mxu0 0
        %1341 = vmatprep.subr.bf16.mxu0 0
        %1342 = vmatpush1.bf16.xpose.msra.mxu0 0
        %1343 = vmatprep.subr.bf16.mxu0 0
        %1344 = vmatpush1.bf16.xpose.msra.mxu0 0
        %1345 = vmatprep.subr.bf16.mxu0 0
        %1346 = vmatpush1.bf16.xpose.msra.mxu0 0
        %1347 = vmatprep.subr.bf16.mxu0 0
        %1348 = vmatpush1.bf16.xpose.msra.mxu0 0
        %1349 = vmatprep.subr.bf16.mxu0 0
        %1350 = vmatpush1.bf16.xpose.msra.mxu0 0
        %1351 = vmatprep.subr.bf16.mxu0 0
        %1352 = vmatpush1.bf16.xpose.msra.mxu0 0
        %1353 = vmatprep.subr.bf16.mxu0 0
        %1354 = vmatpush1.bf16.xpose.msra.mxu0 0
        %1355 = vmatprep.mubr.bf16.mxu0 0
        %1356 = vmatmul.mubr.bf16.gmra.mrb[0].mxu0 %v1318
        %v1357 = vpop.f32.mrb[0].mxu0
        %v1358 = vadd.f32 0.0, %v1357
        %v1359 = vpop.f32.mrb[0].mxu0
        %v1360 = vpop.f32.mrb[0].mxu0
        %v1361 = vpop.f32.mrb[0].mxu0
        %1362 = vdwg.mxu0
        %v1364 = vsel %vm1270, %v800, 0
        %v1367 = vsel %vm1270, %v1032, 0
        %1369 = vmatprep.subr.bf16.mxu0 0
        %1370 = vmatpush1.bf16.xpose.msra.mxu0 %v1367
        %1371 = vmatprep.subr.bf16.mxu0 0
        %1372 = vmatpush1.bf16.xpose.msra.mxu0 0
        %1373 = vmatprep.subr.bf16.mxu0 0
        %1374 = vmatpush1.bf16.xpose.msra.mxu0 0
        %1375 = vmatprep.subr.bf16.mxu0 0
        %1376 = vmatpush1.bf16.xpose.msra.mxu0 0
        %1377 = vmatprep.subr.bf16.mxu0 0
        %1378 = vmatpush1.bf16.xpose.msra.mxu0 0
        %1379 = vmatprep.subr.bf16.mxu0 0
        %1380 = vmatpush1.bf16.xpose.msra.mxu0 0
        %1381 = vmatprep.subr.bf16.mxu0 0
        %1382 = vmatpush1.bf16.xpose.msra.mxu0 0
        %1383 = vmatprep.subr.bf16.mxu0 0
        %1384 = vmatpush1.bf16.xpose.msra.mxu0 0
        %1385 = vmatprep.subr.bf16.mxu0 0
        %1386 = vmatpush1.bf16.xpose.msra.mxu0 0
        %1387 = vmatprep.subr.bf16.mxu0 0
        %1388 = vmatpush1.bf16.xpose.msra.mxu0 0
        %1389 = vmatprep.subr.bf16.mxu0 0
        %1390 = vmatpush1.bf16.xpose.msra.mxu0 0
        %1391 = vmatprep.subr.bf16.mxu0 0
        %1392 = vmatpush1.bf16.xpose.msra.mxu0 0
        %1393 = vmatprep.subr.bf16.mxu0 0
        %1394 = vmatpush1.bf16.xpose.msra.mxu0 0
        %1395 = vmatprep.subr.bf16.mxu0 0
        %1396 = vmatpush1.bf16.xpose.msra.mxu0 0
        %1397 = vmatprep.subr.bf16.mxu0 0
        %1398 = vmatpush1.bf16.xpose.msra.mxu0 0
        %1399 = vmatprep.subr.bf16.mxu0 0
        %1400 = vmatpush1.bf16.xpose.msra.mxu0 0
        %1401 = vmatprep.mubr.bf16.mxu0 0
        %1402 = vmatmul.mubr.bf16.gmra.mrb[0].mxu0 %v1364
        %v1403 = vpop.f32.mrb[0].mxu0
        %v1404 = vadd.f32 0.0, %v1403
        %v1405 = vpop.f32.mrb[0].mxu0
        %v1406 = vpop.f32.mrb[0].mxu0
        %v1407 = vpop.f32.mrb[0].mxu0
        %1408 = vdwg.mxu0
        %v1410 = vsel %vm1270, %v803, 0
        %v1413 = vsel %vm1270, %v1035, 0
        %1415 = vmatprep.subr.bf16.mxu0 0
        %1416 = vmatpush1.bf16.xpose.msra.mxu0 %v1413
        %1417 = vmatprep.subr.bf16.mxu0 0
        %1418 = vmatpush1.bf16.xpose.msra.mxu0 0
        %1419 = vmatprep.subr.bf16.mxu0 0
        %1420 = vmatpush1.bf16.xpose.msra.mxu0 0
        %1421 = vmatprep.subr.bf16.mxu0 0
        %1422 = vmatpush1.bf16.xpose.msra.mxu0 0
        %1423 = vmatprep.subr.bf16.mxu0 0
        %1424 = vmatpush1.bf16.xpose.msra.mxu0 0
        %1425 = vmatprep.subr.bf16.mxu0 0
        %1426 = vmatpush1.bf16.xpose.msra.mxu0 0
        %1427 = vmatprep.subr.bf16.mxu0 0
        %1428 = vmatpush1.bf16.xpose.msra.mxu0 0
        %1429 = vmatprep.subr.bf16.mxu0 0
        %1430 = vmatpush1.bf16.xpose.msra.mxu0 0
        %1431 = vmatprep.subr.bf16.mxu0 0
        %1432 = vmatpush1.bf16.xpose.msra.mxu0 0
        %1433 = vmatprep.subr.bf16.mxu0 0
        %1434 = vmatpush1.bf16.xpose.msra.mxu0 0
        %1435 = vmatprep.subr.bf16.mxu0 0
        %1436 = vmatpush1.bf16.xpose.msra.mxu0 0
        %1437 = vmatprep.subr.bf16.mxu0 0
        %1438 = vmatpush1.bf16.xpose.msra.mxu0 0
        %1439 = vmatprep.subr.bf16.mxu0 0
        %1440 = vmatpush1.bf16.xpose.msra.mxu0 0
        %1441 = vmatprep.subr.bf16.mxu0 0
        %1442 = vmatpush1.bf16.xpose.msra.mxu0 0
        %1443 = vmatprep.subr.bf16.mxu0 0
        %1444 = vmatpush1.bf16.xpose.msra.mxu0 0
        %1445 = vmatprep.subr.bf16.mxu0 0
        %1446 = vmatpush1.bf16.xpose.msra.mxu0 0
        %1447 = vmatprep.mubr.bf16.mxu0 0
        %1448 = vmatmul.mubr.bf16.gmra.mrb[0].mxu0 %v1410
        %v1449 = vpop.f32.mrb[0].mxu0
        %v1450 = vadd.f32 0.0, %v1449
        %v1451 = vpop.f32.mrb[0].mxu0
        %v1452 = vpop.f32.mrb[0].mxu0
        %v1453 = vpop.f32.mrb[0].mxu0
        %1454 = vdwg.mxu0
        %v1455 = vmul.f32 %v1312, 0.35355338
        %v1456 = vmul.f32 %v1358, 0.35355338
        %v1457 = vmul.f32 %v1404, 0.35355338
        %v1458 = vmul.f32 %v1450, 0.35355338
        %v1459 = vlaneseq
        %v1460 = vand.u32 %v1459, 127
        %vm1461 = vcmp.le.s32.totalorder %v1460, %v1269
        %v1462 = vsel %vm1461, %v1455, -1e+10
        %v1463 = vsel %vm1461, %v1456, -1e+10
        %v1464 = vsel %vm1461, %v1457, -1e+10
        %v1465 = vsel %vm1461, %v1458, -1e+10
        %v1466 = vsel %vm1270, %v1462, -inf
        %1467 = vmax.xlane.f32.xlu0 %v1466
        %v1468 = vpop.xlane.xlu0 %1467
        %v1469 = vsel %vm1270, %v1463, -inf
        %1470 = vmax.xlane.f32.xlu0 %v1469
        %v1471 = vpop.xlane.xlu0 %1470
        %v1472 = vsel %vm1270, %v1464, -inf
        %1473 = vmax.xlane.f32.xlu0 %v1472
        %v1474 = vpop.xlane.xlu0 %1473
        %v1475 = vsel %vm1270, %v1465, -inf
        %1476 = vmax.xlane.f32.xlu0 %v1475
        %v1477 = vpop.xlane.xlu0 %1476
        %v1478 = vmax.f32 %v1468, -1e+30
        %v1479 = vmax.f32 %v1471, -1e+30
        %v1480 = vmax.f32 %v1474, -1e+30
        %v1481 = vmax.f32 %v1477, -1e+30
        %v1482 = vsub.f32 -1e+30, %v1478
        %v1483 = vsub.f32 -1e+30, %v1479
        %v1484 = vsub.f32 -1e+30, %v1480
        %v1485 = vsub.f32 -1e+30, %v1481
        %v1486 = vmul.f32 %v1482, 1.442695
        %v1487 = vpow.pop %v1486
        %v1488 = vmul.f32 %v1483, 1.442695
        %v1489 = vpow.pop %v1488
        %v1490 = vmul.f32 %v1484, 1.442695
        %v1491 = vpow.pop %v1490
        %v1492 = vmul.f32 %v1485, 1.442695
        %v1493 = vpow.pop %v1492
        %v1494 = vsub.f32 %v1462, %v1478
        %v1495 = vsub.f32 %v1463, %v1479
        %v1496 = vsub.f32 %v1464, %v1480
        %v1497 = vsub.f32 %v1465, %v1481
        %v1498 = vmul.f32 %v1494, 1.442695
        %v1499 = vpow.pop %v1498
        %v1500 = vmul.f32 %v1495, 1.442695
        %v1501 = vpow.pop %v1500
        %v1502 = vmul.f32 %v1496, 1.442695
        %v1503 = vpow.pop %v1502
        %v1504 = vmul.f32 %v1497, 1.442695
        %v1505 = vpow.pop %v1504
        %v1506 = vmul.f32 %v1487, 0.0
        %v1507 = vmul.f32 %v1489, 0.0
        %v1508 = vmul.f32 %v1491, 0.0
        %v1509 = vmul.f32 %v1493, 0.0
        %v1510 = vsel %vm1270, %v1499, 0.0
        %1511 = vadd.xlane.f32.xlu0 %v1510
        %v1512 = vpop.xlane.xlu0 %1511
        %v1513 = vsel %vm1270, %v1501, 0.0
        %1514 = vadd.xlane.f32.xlu0 %v1513
        %v1515 = vpop.xlane.xlu0 %1514
        %v1516 = vsel %vm1270, %v1503, 0.0
        %1517 = vadd.xlane.f32.xlu0 %v1516
        %v1518 = vpop.xlane.xlu0 %1517
        %v1519 = vsel %vm1270, %v1505, 0.0
        %1520 = vadd.xlane.f32.xlu0 %v1519
        %v1521 = vpop.xlane.xlu0 %1520
        %v1522 = vadd.f32 %v1506, %v1512
        %v1523 = vadd.f32 %v1507, %v1515
        %v1524 = vadd.f32 %v1508, %v1518
        %v1525 = vadd.f32 %v1509, %v1521
        %v1526 = vpack.c.bf16 %v1499, %v1499
        %v1527 = vpack.c.bf16 %v1501, %v1501
        %v1528 = vpack.c.bf16 %v1503, %v1503
        %v1529 = vpack.c.bf16 %v1505, %v1505
        %v1531 = vsel %vm1270, %v1526, 0
        %vm1533 = vcmask 1043456
        %v1535 = vsel %vm1533, %v1258, 0
        %1537 = vmatprep.subr.bf16.mxu0 0
        %1538 = vmatpush1.bf16.msra.mxu0 %v1535
        %1539 = vmatprep.subr.bf16.mxu0 0
        %1540 = vmatpush1.bf16.msra.mxu0 0
        %1541 = vmatprep.subr.bf16.mxu0 0
        %1542 = vmatpush1.bf16.msra.mxu0 0
        %1543 = vmatprep.subr.bf16.mxu0 0
        %1544 = vmatpush1.bf16.msra.mxu0 0
        %1545 = vmatprep.subr.bf16.mxu0 0
        %1546 = vmatpush1.bf16.msra.mxu0 0
        %1547 = vmatprep.subr.bf16.mxu0 0
        %1548 = vmatpush1.bf16.msra.mxu0 0
        %1549 = vmatprep.subr.bf16.mxu0 0
        %1550 = vmatpush1.bf16.msra.mxu0 0
        %1551 = vmatprep.subr.bf16.mxu0 0
        %1552 = vmatpush1.bf16.msra.mxu0 0
        %1553 = vmatprep.subr.bf16.mxu0 0
        %1554 = vmatpush1.bf16.msra.mxu0 0
        %1555 = vmatprep.subr.bf16.mxu0 0
        %1556 = vmatpush1.bf16.msra.mxu0 0
        %1557 = vmatprep.subr.bf16.mxu0 0
        %1558 = vmatpush1.bf16.msra.mxu0 0
        %1559 = vmatprep.subr.bf16.mxu0 0
        %1560 = vmatpush1.bf16.msra.mxu0 0
        %1561 = vmatprep.subr.bf16.mxu0 0
        %1562 = vmatpush1.bf16.msra.mxu0 0
        %1563 = vmatprep.subr.bf16.mxu0 0
        %1564 = vmatpush1.bf16.msra.mxu0 0
        %1565 = vmatprep.subr.bf16.mxu0 0
        %1566 = vmatpush1.bf16.msra.mxu0 0
        %1567 = vmatprep.subr.bf16.mxu0 0
        %1568 = vmatpush1.bf16.msra.mxu0 0
        %1569 = vmatprep.mubr.bf16.mxu0 0
        %1570 = vmatmul.mubr.bf16.gmra.mrb[0].mxu0 %v1531
        %v1571 = vpop.f32.mrb[0].mxu0
        %v1572 = vadd.f32 0.0, %v1571
        %v1573 = vpop.f32.mrb[0].mxu0
        %v1574 = vpop.f32.mrb[0].mxu0
        %v1575 = vpop.f32.mrb[0].mxu0
        %1576 = vdwg.mxu0
        %v1578 = vsel %vm1270, %v1527, 0
        %v1581 = vsel %vm1533, %v1261, 0
        %1583 = vmatprep.subr.bf16.mxu0 0
        %1584 = vmatpush1.bf16.msra.mxu0 %v1581
        %1585 = vmatprep.subr.bf16.mxu0 0
        %1586 = vmatpush1.bf16.msra.mxu0 0
        %1587 = vmatprep.subr.bf16.mxu0 0
        %1588 = vmatpush1.bf16.msra.mxu0 0
        %1589 = vmatprep.subr.bf16.mxu0 0
        %1590 = vmatpush1.bf16.msra.mxu0 0
        %1591 = vmatprep.subr.bf16.mxu0 0
        %1592 = vmatpush1.bf16.msra.mxu0 0
        %1593 = vmatprep.subr.bf16.mxu0 0
        %1594 = vmatpush1.bf16.msra.mxu0 0
        %1595 = vmatprep.subr.bf16.mxu0 0
        %1596 = vmatpush1.bf16.msra.mxu0 0
        %1597 = vmatprep.subr.bf16.mxu0 0
        %1598 = vmatpush1.bf16.msra.mxu0 0
        %1599 = vmatprep.subr.bf16.mxu0 0
        %1600 = vmatpush1.bf16.msra.mxu0 0
        %1601 = vmatprep.subr.bf16.mxu0 0
        %1602 = vmatpush1.bf16.msra.mxu0 0
        %1603 = vmatprep.subr.bf16.mxu0 0
        %1604 = vmatpush1.bf16.msra.mxu0 0
        %1605 = vmatprep.subr.bf16.mxu0 0
        %1606 = vmatpush1.bf16.msra.mxu0 0
        %1607 = vmatprep.subr.bf16.mxu0 0
        %1608 = vmatpush1.bf16.msra.mxu0 0
        %1609 = vmatprep.subr.bf16.mxu0 0
        %1610 = vmatpush1.bf16.msra.mxu0 0
        %1611 = vmatprep.subr.bf16.mxu0 0
        %1612 = vmatpush1.bf16.msra.mxu0 0
        %1613 = vmatprep.subr.bf16.mxu0 0
        %1614 = vmatpush1.bf16.msra.mxu0 0
        %1615 = vmatprep.mubr.bf16.mxu0 0
        %1616 = vmatmul.mubr.bf16.gmra.mrb[0].mxu0 %v1578
        %v1617 = vpop.f32.mrb[0].mxu0
        %v1618 = vadd.f32 0.0, %v1617
        %v1619 = vpop.f32.mrb[0].mxu0
        %v1620 = vpop.f32.mrb[0].mxu0
        %v1621 = vpop.f32.mrb[0].mxu0
        %1622 = vdwg.mxu0
        %v1624 = vsel %vm1270, %v1528, 0
        %v1627 = vsel %vm1533, %v1264, 0
        %1629 = vmatprep.subr.bf16.mxu0 0
        %1630 = vmatpush1.bf16.msra.mxu0 %v1627
        %1631 = vmatprep.subr.bf16.mxu0 0
        %1632 = vmatpush1.bf16.msra.mxu0 0
        %1633 = vmatprep.subr.bf16.mxu0 0
        %1634 = vmatpush1.bf16.msra.mxu0 0
        %1635 = vmatprep.subr.bf16.mxu0 0
        %1636 = vmatpush1.bf16.msra.mxu0 0
        %1637 = vmatprep.subr.bf16.mxu0 0
        %1638 = vmatpush1.bf16.msra.mxu0 0
        %1639 = vmatprep.subr.bf16.mxu0 0
        %1640 = vmatpush1.bf16.msra.mxu0 0
        %1641 = vmatprep.subr.bf16.mxu0 0
        %1642 = vmatpush1.bf16.msra.mxu0 0
        %1643 = vmatprep.subr.bf16.mxu0 0
        %1644 = vmatpush1.bf16.msra.mxu0 0
        %1645 = vmatprep.subr.bf16.mxu0 0
        %1646 = vmatpush1.bf16.msra.mxu0 0
        %1647 = vmatprep.subr.bf16.mxu0 0
        %1648 = vmatpush1.bf16.msra.mxu0 0
        %1649 = vmatprep.subr.bf16.mxu0 0
        %1650 = vmatpush1.bf16.msra.mxu0 0
        %1651 = vmatprep.subr.bf16.mxu0 0
        %1652 = vmatpush1.bf16.msra.mxu0 0
        %1653 = vmatprep.subr.bf16.mxu0 0
        %1654 = vmatpush1.bf16.msra.mxu0 0
        %1655 = vmatprep.subr.bf16.mxu0 0
        %1656 = vmatpush1.bf16.msra.mxu0 0
        %1657 = vmatprep.subr.bf16.mxu0 0
        %1658 = vmatpush1.bf16.msra.mxu0 0
        %1659 = vmatprep.subr.bf16.mxu0 0
        %1660 = vmatpush1.bf16.msra.mxu0 0
        %1661 = vmatprep.mubr.bf16.mxu0 0
        %1662 = vmatmul.mubr.bf16.gmra.mrb[0].mxu0 %v1624
        %v1663 = vpop.f32.mrb[0].mxu0
        %v1664 = vadd.f32 0.0, %v1663
        %v1665 = vpop.f32.mrb[0].mxu0
        %v1666 = vpop.f32.mrb[0].mxu0
        %v1667 = vpop.f32.mrb[0].mxu0
        %1668 = vdwg.mxu0
        %v1670 = vsel %vm1270, %v1529, 0
        %v1673 = vsel %vm1533, %v1267, 0
        %1675 = vmatprep.subr.bf16.mxu0 0
        %1676 = vmatpush1.bf16.msra.mxu0 %v1673
        %1677 = vmatprep.subr.bf16.mxu0 0
        %1678 = vmatpush1.bf16.msra.mxu0 0
        %1679 = vmatprep.subr.bf16.mxu0 0
        %1680 = vmatpush1.bf16.msra.mxu0 0
        %1681 = vmatprep.subr.bf16.mxu0 0
        %1682 = vmatpush1.bf16.msra.mxu0 0
        %1683 = vmatprep.subr.bf16.mxu0 0
        %1684 = vmatpush1.bf16.msra.mxu0 0
        %1685 = vmatprep.subr.bf16.mxu0 0
        %1686 = vmatpush1.bf16.msra.mxu0 0
        %1687 = vmatprep.subr.bf16.mxu0 0
        %1688 = vmatpush1.bf16.msra.mxu0 0
        %1689 = vmatprep.subr.bf16.mxu0 0
        %1690 = vmatpush1.bf16.msra.mxu0 0
        %1691 = vmatprep.subr.bf16.mxu0 0
        %1692 = vmatpush1.bf16.msra.mxu0 0
        %1693 = vmatprep.subr.bf16.mxu0 0
        %1694 = vmatpush1.bf16.msra.mxu0 0
        %1695 = vmatprep.subr.bf16.mxu0 0
        %1696 = vmatpush1.bf16.msra.mxu0 0
        %1697 = vmatprep.subr.bf16.mxu0 0
        %1698 = vmatpush1.bf16.msra.mxu0 0
        %1699 = vmatprep.subr.bf16.mxu0 0
        %1700 = vmatpush1.bf16.msra.mxu0 0
        %1701 = vmatprep.subr.bf16.mxu0 0
        %1702 = vmatpush1.bf16.msra.mxu0 0
        %1703 = vmatprep.subr.bf16.mxu0 0
        %1704 = vmatpush1.bf16.msra.mxu0 0
        %1705 = vmatprep.subr.bf16.mxu0 0
        %1706 = vmatpush1.bf16.msra.mxu0 0
        %1707 = vmatprep.mubr.bf16.mxu0 0
        %1708 = vmatmul.mubr.bf16.gmra.mrb[0].mxu0 %v1670
        %v1709 = vpop.f32.mrb[0].mxu0
        %v1710 = vadd.f32 0.0, %v1709
        %v1711 = vpop.f32.mrb[0].mxu0
        %v1712 = vpop.f32.mrb[0].mxu0
        %v1713 = vpop.f32.mrb[0].mxu0
        %1714 = vdwg.mxu0
        %v1715 = vadd.f32 %v1506, %v1572
        %v1716 = vadd.f32 %v1507, %v1618
        %v1717 = vadd.f32 %v1508, %v1664
        %v1718 = vadd.f32 %v1509, %v1710
        %v1719 = vrcp.pop %v1522
        %v1720 = vmul.f32 %v1715, %v1719
        %v1721 = vrcp.pop %v1523
        %v1722 = vmul.f32 %v1716, %v1721
        %v1723 = vrcp.pop %v1524
        %v1724 = vmul.f32 %v1717, %v1723
        %v1725 = vrcp.pop %v1525
        %v1726 = vmul.f32 %v1718, %v1725
        %v1727 = vcombine.low %v1720, %v1724
        %v1728 = vcombine.high %v1720, %v1724
        %v1730 = vunpack.c.l.s4 1983009808
        %v1731 = vunpack.c.0.s8 %v1730
        %v1732 = vlaneseq
        %v1733 = vshrl.u32 %v1732, 7
        %v1734 = vsub.s32 %v1731, %v1733
        %v1735 = vrot.slane %v1727, %v1734
        %v1737 = vunpack.c.l.s4 1983009808
        %v1738 = vunpack.c.0.s8 %v1737
        %v1739 = vlaneseq
        %v1740 = vshrl.u32 %v1739, 7
        %v1741 = vsub.s32 %v1738, %v1740
        %v1742 = vrot.slane %v1728, %v1741
        %v1743 = vcombine.low %v1722, %v1726
        %v1744 = vcombine.high %v1722, %v1726
        %v1746 = vunpack.c.l.s4 1983009808
        %v1747 = vunpack.c.0.s8 %v1746
        %v1748 = vlaneseq
        %v1749 = vshrl.u32 %v1748, 7
        %v1750 = vsub.s32 %v1747, %v1749
        %v1751 = vrot.slane %v1743, %v1750
        %v1753 = vunpack.c.l.s4 1983009808
        %v1754 = vunpack.c.0.s8 %v1753
        %v1755 = vlaneseq
        %v1756 = vshrl.u32 %v1755, 7
        %v1757 = vsub.s32 %v1754, %v1756
        %v1758 = vrot.slane %v1744, %v1757
        %v1759 = vcombine.low %v1735, %v1751
        %v1760 = vcombine.high %v1735, %v1751
        %v1762 = vunpack.c.l.s4 1934713408
        %v1763 = vunpack.c.0.s8 %v1762
        %v1764 = vlaneseq
        %v1765 = vshrl.u32 %v1764, 7
        %v1766 = vsub.s32 %v1763, %v1765
        %v1767 = vrot.slane %v1759, %v1766
        %v1769 = vunpack.c.l.s4 1934713408
        %v1770 = vunpack.c.0.s8 %v1769
        %v1771 = vlaneseq
        %v1772 = vshrl.u32 %v1771, 7
        %v1773 = vsub.s32 %v1770, %v1772
        %v1774 = vrot.slane %v1760, %v1773
        %v1775 = vcombine.low %v1742, %v1758
        %v1776 = vcombine.high %v1742, %v1758
        %v1778 = vunpack.c.l.s4 1934713408
        %v1779 = vunpack.c.0.s8 %v1778
        %v1780 = vlaneseq
        %v1781 = vshrl.u32 %v1780, 7
        %v1782 = vsub.s32 %v1779, %v1781
        %v1783 = vrot.slane %v1775, %v1782
        %v1785 = vunpack.c.l.s4 1934713408
        %v1786 = vunpack.c.0.s8 %v1785
        %v1787 = vlaneseq
        %v1788 = vshrl.u32 %v1787, 7
        %v1789 = vsub.s32 %v1786, %v1788
        %v1790 = vrot.slane %v1776, %v1789
        %v1791 = vcombine.high %v1767, 0.0
        %v1792 = vcombine.high %v1774, 0.0
        %v1793 = vcombine.high %v1783, 0.0
        %v1794 = vcombine.high %v1790, 0.0
        %v1795 = vcombine.low %v1767, %v1774
        %v1797 = vunpack.c.l.s4 1983009808
        %v1798 = vunpack.c.0.s8 %v1797
        %v1799 = vlaneseq
        %v1800 = vshrl.u32 %v1799, 7
        %v1801 = vsub.s32 %v1798, %v1800
        %v1802 = vrot.slane %v1795, %v1801
        %v1803 = vcombine.low %v1791, %v1792
        %v1805 = vunpack.c.l.s4 1983009808
        %v1806 = vunpack.c.0.s8 %v1805
        %v1807 = vlaneseq
        %v1808 = vshrl.u32 %v1807, 7
        %v1809 = vsub.s32 %v1806, %v1808
        %v1810 = vrot.slane %v1803, %v1809
        %v1811 = vcombine.low %v1783, %v1790
        %v1813 = vunpack.c.l.s4 1983009808
        %v1814 = vunpack.c.0.s8 %v1813
        %v1815 = vlaneseq
        %v1816 = vshrl.u32 %v1815, 7
        %v1817 = vsub.s32 %v1814, %v1816
        %v1818 = vrot.slane %v1811, %v1817
        %v1819 = vcombine.low %v1793, %v1794
        %v1821 = vunpack.c.l.s4 1983009808
        %v1822 = vunpack.c.0.s8 %v1821
        %v1823 = vlaneseq
        %v1824 = vshrl.u32 %v1823, 7
        %v1825 = vsub.s32 %v1822, %v1824
        %v1826 = vrot.slane %v1819, %v1825
        %v1827 = vcombine.low %v1802, %v1810
        %v1828 = vcombine.high %v1802, %v1810
        %v1830 = vunpack.c.l.s4 1934713408
        %v1831 = vunpack.c.0.s8 %v1830
        %v1832 = vlaneseq
        %v1833 = vshrl.u32 %v1832, 7
        %v1834 = vsub.s32 %v1831, %v1833
        %v1835 = vrot.slane %v1827, %v1834
        %v1837 = vunpack.c.l.s4 1934713408
        %v1838 = vunpack.c.0.s8 %v1837
        %v1839 = vlaneseq
        %v1840 = vshrl.u32 %v1839, 7
        %v1841 = vsub.s32 %v1838, %v1840
        %v1842 = vrot.slane %v1828, %v1841
        %v1843 = vcombine.low %v1818, %v1826
        %v1844 = vcombine.high %v1818, %v1826
        %v1846 = vunpack.c.l.s4 1934713408
        %v1847 = vunpack.c.0.s8 %v1846
        %v1848 = vlaneseq
        %v1849 = vshrl.u32 %v1848, 7
        %v1850 = vsub.s32 %v1847, %v1849
        %v1851 = vrot.slane %v1843, %v1850
        %v1853 = vunpack.c.l.s4 1934713408
        %v1854 = vunpack.c.0.s8 %v1853
        %v1855 = vlaneseq
        %v1856 = vshrl.u32 %v1855, 7
        %v1857 = vsub.s32 %v1854, %v1856
        %v1858 = vrot.slane %v1844, %v1857
        %v1859 = vcombine.low %v1835, %v1851
        %v1860 = vcombine.high %v1835, %v1851
        %v1861 = vcombine.low %v1842, %v1858
        %v1862 = vcombine.high %v1842, %v1858
        %1864 = vrot.lane.b32.xlu0 %v1860, 8
        %v1865 = vpop.permute.xlu0 %1864
        %1868 = vrot.lane.b32.xlu0 %v1861, 16
        %v1869 = vpop.permute.xlu0 %1868
        %1872 = vrot.lane.b32.xlu0 %v1862, 24
        %v1873 = vpop.permute.xlu0 %1872
        %v1875 = vsel %vm1270, %v1859, %v1865
        %vm1876 = vcmask 130048
        %v1877 = vsel %vm1876, %v1875, %v1869
        %vm1878 = vcmask 195584
        %v1879 = vsel %vm1878, %v1877, %v1873
        %v1880 = vpack.c.bf16 %v1879, %v1879
        %v1881 = vld [vmem:[#allocation17] sm:$0xf]
        %v1882 = vld [vmem:[#allocation17 + $0x4] sm:$0xf]
        %v1883 = vld [vmem:[#allocation17 + $0x8] sm:$0xf]
        %v1884 = vld [vmem:[#allocation17 + $0xc] sm:$0xf]
        %v1885 = vld [vmem:[#allocation19] sm:$0x1]
        %v1887 = vlaneseq
        %v1888 = vshrl.u32 %v1887, 7
        %v1889 = vsub.s32 0, %v1888
        %v1890 = vrot.slane %v1885, %v1889
        %v1896 = vunpack.c.l.b16 %v1881
        %v1897 = vunpack.c.l.b16 %v1882
        %v1898 = vunpack.c.l.b16 %v1883
        %v1899 = vunpack.c.l.b16 %v1884
        %v1900 = vpack.c.b16 %v1897, %v1896
        %v1901 = vpack.c.b16 %v1899, %v1898
        %v1905 = vsel %vm539, %v1880, 0
        %1907 = vmatprep.subr.bf16.mxu0 0
        %1908 = vmatpush1.bf16.msra.mxu0 %v1900
        %1909 = vmatprep.subr.bf16.mxu0 0
        %1910 = vmatpush1.bf16.msra.mxu0 %v1901
        %1911 = vmatprep.subr.bf16.mxu0 0
        %1912 = vmatpush1.bf16.msra.mxu0 0
        %1913 = vmatprep.subr.bf16.mxu0 0
        %1914 = vmatpush1.bf16.msra.mxu0 0
        %1915 = vmatprep.subr.bf16.mxu0 0
        %1916 = vmatpush1.bf16.msra.mxu0 0
        %1917 = vmatprep.subr.bf16.mxu0 0
        %1918 = vmatpush1.bf16.msra.mxu0 0
        %1919 = vmatprep.subr.bf16.mxu0 0
        %1920 = vmatpush1.bf16.msra.mxu0 0
        %1921 = vmatprep.subr.bf16.mxu0 0
        %1922 = vmatpush1.bf16.msra.mxu0 0
        %1923 = vmatprep.subr.bf16.mxu0 0
        %1924 = vmatpush1.bf16.msra.mxu0 0
        %1925 = vmatprep.subr.bf16.mxu0 0
        %1926 = vmatpush1.bf16.msra.mxu0 0
        %1927 = vmatprep.subr.bf16.mxu0 0
        %1928 = vmatpush1.bf16.msra.mxu0 0
        %1929 = vmatprep.subr.bf16.mxu0 0
        %1930 = vmatpush1.bf16.msra.mxu0 0
        %1931 = vmatprep.subr.bf16.mxu0 0
        %1932 = vmatpush1.bf16.msra.mxu0 0
        %1933 = vmatprep.subr.bf16.mxu0 0
        %1934 = vmatpush1.bf16.msra.mxu0 0
        %1935 = vmatprep.subr.bf16.mxu0 0
        %1936 = vmatpush1.bf16.msra.mxu0 0
        %1937 = vmatprep.subr.bf16.mxu0 0
        %1938 = vmatpush1.bf16.msra.mxu0 0
        %1939 = vmatprep.mubr.bf16.mxu0 0
        %1940 = vmatmul.mubr.bf16.gmra.mrb[0].mxu0 %v1905
        %v1941 = vpop.f32.mrb[0].mxu0
        %v1942 = vadd.f32 %v1890, %v1941
        %v1943 = vpop.f32.mrb[0].mxu0
        %v1944 = vpop.f32.mrb[0].mxu0
        %v1945 = vpop.f32.mrb[0].mxu0
        %1946 = vdwg.mxu0
        %v1947 = vadd.f32 %v536, %v1942
        %1948 = vst.msk [vmem:[%s534] sm:$0xff] %vm539, %v1947
        %s1949 = sand.u32 %s277, 1
        %s1950 = scalar_lea.sflag [#allocation4], %s1949
        %s1951 = sand.u32 %s277, 1
        %s1952 = smul.addr %s1951, 8
        %s1953 = scalar_lea.vmem [#allocation20], %s1952
        // Predicated region
        $region109: #{tpu_custom_call.1} parent=63 // pred_check
          %p1954 = pneg %p287
        $region110: #{tpu_custom_call.1} parent=63 // pred_check_branch
          %1956 = sbr.rel (%p1954) target = $region112
        $region111: #{tpu_custom_call.1} parent=63 // pred_region
          %s1958 = ssub.s32 128, 128
          %1959 = vsyncadd %s1950, %s1958
          %s1960 = smul.addr %s33, 128
          %s1961 = scalar_lea.hbm %s11, %s1960
          %s1963 = sshll.u32 %s1953, 4
          %s1964 = int_to_ptr.vmem [resolvable:$true] %s1963
          %1966 = dma.vmem_to_hbm [thread:$0]  %s1964, 128, %s1961, %s1950
        $region112: #{tpu_custom_call.1} parent=63 // pred_fallthru
          _
      $region64: #{tpu_custom_call.1} parent=5 // pred_fallthru
        _
      %p1967 = scmp.le.s32.totalorder 2, %s28
      // Predicated region
      $region113: #{tpu_custom_call.1} parent=5 // pred_check
        %p1968 = pneg %p1967
      $region114: #{tpu_custom_call.1} parent=5 // pred_check_branch
        %1970 = sbr.rel (%p1968) target = $region116
      $region115: #{tpu_custom_call.1} parent=5 // pred_region
        %s1971 = ssub.s32 %s28, 2
        // Predicated region
        $region117: #{tpu_custom_call.1} parent=115 // pred_check
          %p1972 = pneg %p293
        $region118: #{tpu_custom_call.1} parent=115 // pred_check_branch
          %1974 = sbr.rel (%p1972) target = $region120
        $region119: #{tpu_custom_call.1} parent=115 // pred_region
          %s1975 = sand.u32 %s278, 1
          %s1976 = scalar_lea.sflag [#allocation4], %s1975
          %s1977 = sand.u32 %s278, 1
          %s1978 = smul.addr %s1977, 8
          %s1979 = scalar_lea.vmem [#allocation20], %s1978
          %1980 = dma.done %s1976, 128
        $region120: #{tpu_custom_call.1} parent=115 // pred_fallthru
          _
      $region116: #{tpu_custom_call.1} parent=5 // pred_fallthru
        _
    $region6: #{tpu_custom_call.1} parent=1 // loop_footer
      %s32 = sadd.s32 1, %s28
    $region7: #{tpu_custom_call.1} parent=1 // loop_footer_branch
      %27 = sbr.rel target = $region3
    $region8: #{tpu_custom_call.1} parent=1 // loop_exit
      _
    %1981 = vsyncpa [#allocation3], 1
    %s1982 = scalar_lea.sflag [#allocation3], 1
    %1983 = vsyncpa %s1982, 1
    %1984 = vsyncpa [#allocation6], 1
    %1985 = vsyncpa [#allocation9], 1
    %1986 = vsyncpa [#allocation12], 1
    %1987 = vsyncpa [#allocation15], 1
    %1988 = vsyncpa [#allocation18], 1
    %1989 = vsyncpa [#allocation4], 1
    %s1990 = scalar_lea.sflag [#allocation4], 1
    %1991 = vsyncpa %s1990, 1

</llo_original>
